<compile_context>
chip_gen: v6e
topology: v6e:2x2x1
jax: 0.10.0
libtpu: 0.0.40
codegen_flags: <defaults>
</compile_context>

<pallas_src>
import functools

import numpy as np
import jax
import jax.numpy as jnp
from jax import lax
from jax.experimental import pallas as pl
from jax.experimental.pallas import tpu as pltpu


_SQRT_HALF = 0.7071067811865476


def _erf(x):
    # TODO(synk): lax.erf may lack a Mosaic lowering; use Abramowitz & Stegun
    # 7.1.26 rational approximation (|err| < 1.5e-7 ~ f32 eps); exp -> EUP.
    a1, a2, a3, a4, a5 = 0.254829592, -0.284496736, 1.421413741, -1.453152027, 1.061405429
    p = 0.3275911
    ax = jnp.abs(x)
    t = 1.0 / (1.0 + p * ax)
    poly = ((((a5 * t + a4) * t + a3) * t + a2) * t + a1) * t
    y = 1.0 - poly * jnp.exp(-ax * ax)
    return jnp.where(x >= 0, y, -y)


def _gelu(x):
    # exact (erf-based) GELU, matching torch.nn.functional.gelu default
    return 0.5 * x * (1.0 + _erf(x * _SQRT_HALF))


# ---------------------------------------------------------------------------
# Fused kernel: fc0 -> 4x (SpectralConv1d + Conv1d(1x1) + GELU) -> fc1/gelu/fc2
# ---------------------------------------------------------------------------
def _fno_fused_kernel(x_ref, fc0_ref, wmix_ref, wc_ref, fdft_ref, gdft_ref,
                      fc1_ref, fc2_ref, o_ref, *, dot_dtype):
    # x_ref   : (Bt, 3, S)        rows = [a(x); grid; ones]
    # fc0_ref : (W, 3)            [fc0_w^T | fc0_b]
    # wmix_ref: (L, M, 2W, 2W)    per-mode [[Wr, Wi], [-Wi, Wr]]
    # wc_ref  : (L, W, W+1)       [conv1x1 weight | bias]
    # fdft_ref: (2M, S)           [cos ; -sin]           (truncated rfft)
    # gdft_ref: (2M, S)           [ck*cos/S ; -ck*sin/S] (zero-padded irfft)
    # fc1_ref : (128, W+1)        [fc1_w^T | fc1_b]
    # fc2_ref : (1, 129)          [fc2_w | fc2_b]
    # o_ref   : (Bt, 1, S)
    Bt = x_ref.shape[0]
    S = x_ref.shape[2]
    W = fc0_ref.shape[0]
    M = fdft_ref.shape[0] // 2
    L = wmix_ref.shape[0]
    f32 = jnp.float32

    def mm(a, b):            # a @ b                (f32 accumulation on MXU)
        return jnp.dot(a.astype(dot_dtype), b.astype(dot_dtype),
                       preferred_element_type=f32)

    def mm_nt(a, b):         # a @ b.T   (contract last dims of both operands)
        return lax.dot_general(a.astype(dot_dtype), b.astype(dot_dtype),
                               (((1,), (1,)), ((), ())),
                               preferred_element_type=f32)

    def mm_tn(a, b):         # a.T @ b   (contract first dims of both operands)
        return lax.dot_general(a.astype(dot_dtype), b.astype(dot_dtype),
                               (((0,), (0,)), ((), ())),
                               preferred_element_type=f32)

    ones_row = jnp.ones((1, S), f32)
    fdft = fdft_ref[...]                              # (2M, S)
    gdft = gdft_ref[...]                              # (2M, S)

    # ---- fc0 lift (bias folded via the ones row of the input block) --------
    hs = [mm(fc0_ref[...], x_ref[b]) for b in range(Bt)]      # each (W, S)

    # ---- Fourier layers ------------------------------------------------------
    for l in range(L):
        wmix = wmix_ref[l]                            # (M, 2W, 2W)
        wc = wc_ref[l]                                # (W, W+1)

        # truncated rfft: modes on sublanes, channels on lanes
        specs = [mm_nt(fdft, hs[b]) for b in range(Bt)]       # each (2M, W)
        xs = jnp.stack(specs, axis=1)                         # (2M, Bt, W)
        xcat = jnp.concatenate([xs[:M], xs[M:]], axis=2)      # (M, Bt, 2W)

        # per-mode complex channel mixing on the MXU, batched over modes
        ycat = jnp.einsum('mbi,mio->mbo',
                          xcat.astype(dot_dtype), wmix.astype(dot_dtype),
                          preferred_element_type=f32)          # (M, Bt, 2W)

        new_hs = []
        for b in range(Bt):
            yb = ycat[:, b, :]                                          # (M, 2W)
            ystk = jnp.concatenate([yb[:, :W], yb[:, W:]], axis=0)      # (2M, W)
            spec_out = mm_tn(ystk, gdft)                                # (W, S) irfft
            h_aug = jnp.concatenate([hs[b], ones_row], axis=0)          # (W+1, S)
            y = spec_out + mm(wc, h_aug)                                # + Conv1d(1) + bias
            if l < L - 1:
                y = _gelu(y)
            new_hs.append(y)
        hs = new_hs

    # ---- projection head ----------------------------------------------------
    outs = []
    for b in range(Bt):
        h_aug = jnp.concatenate([hs[b], ones_row], axis=0)              # (W+1, S)
        h1 = _gelu(mm(fc1_ref[...], h_aug))                             # (128, S)
        h1_aug = jnp.concatenate([h1, ones_row], axis=0)                # (129, S)
        outs.append(mm(fc2_ref[...], h1_aug))                           # (1, S)
    o_ref[...] = jnp.stack(outs, axis=0)                                # (Bt, 1, S)


# ---------------------------------------------------------------------------
# Operand packing (DFT matrices, bias folding, per-mode block matrices)
# ---------------------------------------------------------------------------
def _dft_matrices(S, M):
    k = np.arange(M)
    s = np.arange(S)
    ang = 2.0 * np.pi * np.outer(k, s) / S                       # (M, S)
    fdft = np.concatenate([np.cos(ang), -np.sin(ang)], axis=0)   # (2M, S)
    ck = np.where((k == 0) | ((S % 2 == 0) & (k == S // 2)), 1.0, 2.0)[:, None]
    gdft = np.concatenate([ck * np.cos(ang) / S, -ck * np.sin(ang) / S], axis=0)
    return jnp.asarray(fdft, jnp.float32), jnp.asarray(gdft, jnp.float32)


def _pack_operands(params, S, modes, n_layers=4):
    fc0_aug = jnp.concatenate([params["fc0_w"].T, params["fc0_b"].T], axis=1)   # (W, 3)
    wmix, wc_aug = [], []
    for l in range(n_layers):
        wrT = jnp.transpose(params[f"wr{l}"], (2, 0, 1))          # (M, W_in, W_out)
        wiT = jnp.transpose(params[f"wi{l}"], (2, 0, 1))
        top = jnp.concatenate([wrT, wiT], axis=2)                 # (M, W, 2W)
        bot = jnp.concatenate([-wiT, wrT], axis=2)                # (M, W, 2W)
        wmix.append(jnp.concatenate([top, bot], axis=1))          # (M, 2W, 2W)
        wc_aug.append(jnp.concatenate([params[f"wc{l}"], params[f"bc{l}"]], axis=1))
    wmix = jnp.stack(wmix, axis=0)                                # (L, M, 2W, 2W)
    wc_aug = jnp.stack(wc_aug, axis=0)                            # (L, W, W+1)
    fc1_aug = jnp.concatenate([params["fc1_w"].T, params["fc1_b"].T], axis=1)   # (128, W+1)
    fc2_aug = jnp.concatenate([params["fc2_w"], params["fc2_b"]], axis=1)       # (1, 129)
    fdft, gdft = _dft_matrices(S, modes)
    return fc0_aug, wmix, wc_aug, fdft, gdft, fc1_aug, fc2_aug


# ---------------------------------------------------------------------------
# Forward pass wrapper
# ---------------------------------------------------------------------------
def fno1d_forward(params, x, *, modes, b_tile=1, dot_dtype=jnp.float32):
    B, S, _ = x.shape
    assert B % b_tile == 0, "batch must be divisible by b_tile"
    W = params["fc0_w"].shape[1]
    H = params["fc1_w"].shape[1]          # 128
    M = modes
    L = 4

    fc0_aug, wmix, wc_aug, fdft, gdft, fc1_aug, fc2_aug = _pack_operands(params, S, M, L)

    # input block (B, 3, S): [a(x); grid; ones]  (fc0 bias folded; lane-dense)
    gridx = jnp.broadcast_to(
        jnp.linspace(0.0, 1.0, S, dtype=jnp.float32)[None, None, :], (B, 1, S))
    ones = jnp.ones((B, 1, S), jnp.float32)
    xin = jnp.concatenate([jnp.transpose(x, (0, 2, 1)), gridx, ones], axis=1)   # (B, 3, S)

    nb = B // b_tile
    kernel = functools.partial(_fno_fused_kernel, dot_dtype=dot_dtype)

    flops = int(B * (2 * 3 * W * S
                     + L * (2 * (2 * M) * W * S        # forward DFT
                            + 2 * M * (2 * W) * (2 * W)  # per-mode mixing
                            + 2 * W * (2 * M) * S        # inverse DFT
                            + 2 * W * (W + 1) * S)       # conv1x1 (+bias)
                     + 2 * H * (W + 1) * S + 2 * (H + 1) * S))
    transcendentals = int(B * S * ((L - 1) * W + H))
    bytes_accessed = int(4 * (B * 3 * S + B * S + W * 3 + L * M * 4 * W * W
                              + L * W * (W + 1) + 2 * (2 * M) * S
                              + H * (W + 1) + H + 1))

    out = pl.pallas_call(
        kernel,
        out_shape=jax.ShapeDtypeStruct((B, 1, S), jnp.float32),
        grid=(nb,),
        in_specs=[
            pl.BlockSpec((b_tile, 3, S), lambda i: (i, 0, 0)),
            pl.BlockSpec((W, 3), lambda i: (0, 0)),
            pl.BlockSpec((L, M, 2 * W, 2 * W), lambda i: (0, 0, 0, 0)),
            pl.BlockSpec((L, W, W + 1), lambda i: (0, 0, 0)),
            pl.BlockSpec((2 * M, S), lambda i: (0, 0)),
            pl.BlockSpec((2 * M, S), lambda i: (0, 0)),
            pl.BlockSpec((H, W + 1), lambda i: (0, 0)),
            pl.BlockSpec((1, H + 1), lambda i: (0, 0)),
        ],
        out_specs=pl.BlockSpec((b_tile, 1, S), lambda i: (i, 0, 0)),
        compiler_params=pltpu.CompilerParams(
            dimension_semantics=("parallel",),
            vmem_limit_bytes=32 * 1024 * 1024),
        cost_estimate=pl.CostEstimate(flops=flops,
                                      transcendentals=transcendentals,
                                      bytes_accessed=bytes_accessed),
    )(xin, fc0_aug, wmix, wc_aug, fdft, gdft, fc1_aug, fc2_aug)

    return jnp.transpose(out, (0, 2, 1))                          # (B, S, 1)


# ---------------------------------------------------------------------------
# Parameter init (deterministic, shapes per FNO1d.__init__)
# ---------------------------------------------------------------------------
def init_params(key, width, modes):
    keys = jax.random.split(key, 24)

    def u(k, shape, bound):
        return jax.random.uniform(k, shape, jnp.float32, -bound, bound)

    p = {}
    ki = 0
    b = 1.0 / np.sqrt(2.0)
    p["fc0_w"] = u(keys[ki], (2, width), b); ki += 1
    p["fc0_b"] = u(keys[ki], (1, width), b); ki += 1
    scale = 1.0 / (width * width)
    cb = 1.0 / np.sqrt(width)
    for l in range(4):
        p[f"wr{l}"] = scale * jax.random.uniform(keys[ki], (width, width, modes), jnp.float32); ki += 1
        p[f"wi{l}"] = scale * jax.random.uniform(keys[ki], (width, width, modes), jnp.float32); ki += 1
        p[f"wc{l}"] = u(keys[ki], (width, width), cb); ki += 1
        p[f"bc{l}"] = u(keys[ki], (width, 1), cb); ki += 1
    b1 = 1.0 / np.sqrt(width)
    p["fc1_w"] = u(keys[ki], (width, 128), b1); ki += 1
    p["fc1_b"] = u(keys[ki], (1, 128), b1); ki += 1
    b2 = 1.0 / np.sqrt(128.0)
    p["fc2_w"] = u(keys[ki], (1, 128), b2); ki += 1
    p["fc2_b"] = u(keys[ki], (1, 1), b2); ki += 1
    return p


# ---------------------------------------------------------------------------
# Pure-JAX reference (jnp.fft) for the correctness check
# ---------------------------------------------------------------------------
def fno1d_reference(params, x, modes):
    B, S, _ = x.shape
    grid = jnp.broadcast_to(
        jnp.linspace(0.0, 1.0, S, dtype=jnp.float32).reshape(1, S, 1), (B, S, 1))
    h = jnp.concatenate([x, grid], axis=-1) @ params["fc0_w"] + params["fc0_b"]
    h = jnp.transpose(h, (0, 2, 1))                        # (B, W, S)
    gelu = lambda v: jax.nn.gelu(v, approximate=False)
    for l in range(4):
        w = params[f"wr{l}"] + 1j * params[f"wi{l}"]
        hft = jnp.fft.rfft(h, axis=-1)
        out_ft = jnp.zeros((B, h.shape[1], S // 2 + 1), dtype=jnp.complex64)
        out_ft = out_ft.at[:, :, :modes].set(
            jnp.einsum('bix,iox->box', hft[:, :, :modes], w))
        spec = jnp.fft.irfft(out_ft, n=S, axis=-1)
        loc = jnp.einsum('oi,bis->bos', params[f"wc{l}"], h) + params[f"bc{l}"][None]
        h = spec + loc
        if l < 3:
            h = gelu(h)
    h = jnp.transpose(h, (0, 2, 1))
    h = gelu(h @ params["fc1_w"] + params["fc1_b"])
    return jnp.einsum('bsk,ok->bso', h, params["fc2_w"]) + params["fc2_b"]


if __name__ == "__main__":
    B, S, width, modes = 2, 16, 32, 8
    key = jax.random.PRNGKey(0)
    kx, kp = jax.random.split(key)
    x = jax.random.normal(kx, (B, S, 1), jnp.float32)
    params = init_params(kp, width, modes)

    # f32 MXU operands, b_tile=1 (2 parallel grid blocks -> both v7x cores busy)
    fwd = jax.jit(functools.partial(fno1d_forward, modes=modes, b_tile=1))
    out = jax.block_until_ready(fwd(params, x))
    assert out.shape == (B, S, 1) and out.dtype == jnp.float32

    ref = jax.block_until_ready(fno1d_reference(params, x, modes))
    err = float(jnp.max(jnp.abs(out - ref)))
    assert jnp.allclose(out, ref, atol=1e-2, rtol=1e-2), f"f32 max abs err {err}"

    # batch-tiled variant: whole batch in one block (b_tile=2)
    fwd2 = jax.jit(functools.partial(fno1d_forward, modes=modes, b_tile=2))
    out2 = jax.block_until_ready(fwd2(params, x))
    assert jnp.allclose(out2, ref, atol=1e-2, rtol=1e-2), "b_tile=2 mismatch"

    # bf16 MXU operands with f32 accumulation (looser tolerance)
    fwd_bf16 = jax.jit(functools.partial(fno1d_forward, modes=modes, b_tile=1,
                                         dot_dtype=jnp.bfloat16))
    out_bf16 = jax.block_until_ready(fwd_bf16(params, x))
    assert jnp.allclose(out_bf16, ref, atol=1e-1, rtol=1e-1), "bf16 mismatch"

    print("KERNEL_OK")
</pallas_src>

<mosaic_0001>
module attributes {stable_mosaic.version = 11 : i64} {
  func.func @_fno_fused_kernel(%arg0: i32, %arg1: memref<1x3x16xf32, #tpu.memory_space<vmem>>, %arg2: memref<32x3xf32, #tpu.memory_space<vmem>>, %arg3: memref<4x8x64x64xf32, #tpu.memory_space<vmem>>, %arg4: memref<4x32x33xf32, #tpu.memory_space<vmem>>, %arg5: memref<16x16xf32, #tpu.memory_space<vmem>>, %arg6: memref<16x16xf32, #tpu.memory_space<vmem>>, %arg7: memref<128x33xf32, #tpu.memory_space<vmem>>, %arg8: memref<1x129xf32, #tpu.memory_space<vmem>>, %arg9: memref<1x1x16xf32, #tpu.memory_space<vmem>>) attributes {dimension_semantics = [#tpu.dimension_semantics<parallel>], iteration_bounds = array<i64: 2>, scalar_prefetch = 0 : i64, scratch_operands = 0 : i64, tpu.core_type = #tpu.core_type<tc>, window_params = [{transform_indices = @transform_0, window_bounds = array<i64: 1, 3, 16>}, {pipeline_mode = #tpu.pipeline_mode<synchronous>, transform_indices = @transform_1, window_bounds = array<i64: 32, 3>}, {pipeline_mode = #tpu.pipeline_mode<synchronous>, transform_indices = @transform_2, window_bounds = array<i64: 4, 8, 64, 64>}, {pipeline_mode = #tpu.pipeline_mode<synchronous>, transform_indices = @transform_3, window_bounds = array<i64: 4, 32, 33>}, {pipeline_mode = #tpu.pipeline_mode<synchronous>, transform_indices = @transform_4, window_bounds = array<i64: 16, 16>}, {pipeline_mode = #tpu.pipeline_mode<synchronous>, transform_indices = @transform_5, window_bounds = array<i64: 16, 16>}, {pipeline_mode = #tpu.pipeline_mode<synchronous>, transform_indices = @transform_6, window_bounds = array<i64: 128, 33>}, {pipeline_mode = #tpu.pipeline_mode<synchronous>, transform_indices = @transform_7, window_bounds = array<i64: 1, 129>}, {transform_indices = @transform_8, window_bounds = array<i64: 1, 1, 16>}]} {
    %cst = arith.constant 1.000000e+00 : f32
    %0 = vector.broadcast %cst : f32 to vector<1x16xf32>
    %c0 = arith.constant 0 : index
    %c0_0 = arith.constant 0 : index
    %1 = vector.load %arg5[%c0, %c0_0] : memref<16x16xf32, #tpu.memory_space<vmem>>, vector<16x16xf32>
    %c0_1 = arith.constant 0 : index
    %c0_2 = arith.constant 0 : index
    %2 = vector.load %arg6[%c0_1, %c0_2] : memref<16x16xf32, #tpu.memory_space<vmem>>, vector<16x16xf32>
    %c0_3 = arith.constant 0 : index
    %c0_4 = arith.constant 0 : index
    %3 = vector.load %arg2[%c0_3, %c0_4] : memref<32x3xf32, #tpu.memory_space<vmem>>, vector<32x3xf32>
    %c0_5 = arith.constant 0 : index
    %c0_6 = arith.constant 0 : index
    %c0_7 = arith.constant 0 : index
    %4 = vector.load %arg1[%c0_5, %c0_6, %c0_7] : memref<1x3x16xf32, #tpu.memory_space<vmem>>, vector<1x3x16xf32>
    %5 = vector.shape_cast %4 : vector<1x3x16xf32> to vector<3x16xf32>
    %cst_8 = arith.constant dense<0.000000e+00> : vector<32x16xf32>
    %6 = tpu.matmul %3, %5, %cst_8 {dimension_numbers = #tpu.dot_dimension_numbers<[1], [0], [0], [1], [0, 0, 1, 1], [], []>} : vector<32x3xf32>, vector<3x16xf32>, vector<32x16xf32> -> vector<32x16xf32>
    %c0_9 = arith.constant 0 : index
    %c0_10 = arith.constant 0 : index
    %c0_11 = arith.constant 0 : index
    %c0_12 = arith.constant 0 : index
    %7 = vector.load %arg3[%c0_9, %c0_10, %c0_11, %c0_12] : memref<4x8x64x64xf32, #tpu.memory_space<vmem>>, vector<1x8x64x64xf32>
    %8 = vector.shape_cast %7 : vector<1x8x64x64xf32> to vector<8x64x64xf32>
    %c0_13 = arith.constant 0 : index
    %c0_14 = arith.constant 0 : index
    %c0_15 = arith.constant 0 : index
    %9 = vector.load %arg4[%c0_13, %c0_14, %c0_15] : memref<4x32x33xf32, #tpu.memory_space<vmem>>, vector<1x32x33xf32>
    %10 = vector.shape_cast %9 : vector<1x32x33xf32> to vector<32x33xf32>
    %cst_16 = arith.constant dense<0.000000e+00> : vector<16x32xf32>
    %11 = tpu.matmul %1, %6, %cst_16 {dimension_numbers = #tpu.dot_dimension_numbers<[1], [1], [0], [0], [0, 0, 1, 0], [], []>} : vector<16x16xf32>, vector<32x16xf32>, vector<16x32xf32> -> vector<16x32xf32>
    %12 = vector.shape_cast %11 : vector<16x32xf32> to vector<16x1x32xf32>
    %13 = vector.extract_strided_slice %12 {offsets = [0, 0, 0], sizes = [8, 1, 32], strides = [1, 1, 1]} : vector<16x1x32xf32> to vector<8x1x32xf32>
    %14 = vector.extract_strided_slice %12 {offsets = [8, 0, 0], sizes = [8, 1, 32], strides = [1, 1, 1]} : vector<16x1x32xf32> to vector<8x1x32xf32>
    %15 = tpu.concatenate %13, %14 in 2 : vector<8x1x32xf32>, vector<8x1x32xf32> -> vector<8x1x64xf32>
    "tpu.trace_start"() <{level = 10 : i32, message = "mbi,mio->mbo"}> : () -> ()
    %cst_17 = arith.constant dense<0.000000e+00> : vector<8x1x64xf32>
    %16 = tpu.matmul %15, %8, %cst_17 {dimension_numbers = #tpu.dot_dimension_numbers<[2], [1], [1], [2], [0, 0, 0, 1, 1, 2], [0], [0]>} : vector<8x1x64xf32>, vector<8x64x64xf32>, vector<8x1x64xf32> -> vector<8x1x64xf32>
    "tpu.trace_stop"() : () -> ()
    %17 = vector.shape_cast %16 : vector<8x1x64xf32> to vector<8x64xf32>
    %18 = vector.extract_strided_slice %17 {offsets = [0, 0], sizes = [8, 32], strides = [1, 1]} : vector<8x64xf32> to vector<8x32xf32>
    %19 = vector.extract_strided_slice %17 {offsets = [0, 32], sizes = [8, 32], strides = [1, 1]} : vector<8x64xf32> to vector<8x32xf32>
    %20 = tpu.concatenate %18, %19 in 0 : vector<8x32xf32>, vector<8x32xf32> -> vector<16x32xf32>
    %cst_18 = arith.constant dense<0.000000e+00> : vector<32x16xf32>
    %21 = tpu.matmul %20, %2, %cst_18 {dimension_numbers = #tpu.dot_dimension_numbers<[0], [0], [1], [1], [0, 1, 1, 1], [], []>} : vector<16x32xf32>, vector<16x16xf32>, vector<32x16xf32> -> vector<32x16xf32>
    %22 = tpu.concatenate %6, %0 in 0 : vector<32x16xf32>, vector<1x16xf32> -> vector<33x16xf32>
    %cst_19 = arith.constant dense<0.000000e+00> : vector<32x16xf32>
    %23 = tpu.matmul %10, %22, %cst_19 {dimension_numbers = #tpu.dot_dimension_numbers<[1], [0], [0], [1], [0, 0, 1, 1], [], []>} : vector<32x33xf32>, vector<33x16xf32>, vector<32x16xf32> -> vector<32x16xf32>
    %24 = arith.addf %21, %23 : vector<32x16xf32>
    %cst_20 = arith.constant 5.000000e-01 : f32
    %25 = vector.broadcast %cst_20 : f32 to vector<32x16xf32>
    %26 = arith.mulf %25, %24 : vector<32x16xf32>
    %cst_21 = arith.constant 0.707106769 : f32
    %27 = vector.broadcast %cst_21 : f32 to vector<32x16xf32>
    %28 = arith.mulf %24, %27 : vector<32x16xf32>
    %29 = math.absf %28 : vector<32x16xf32>
    %cst_22 = arith.constant 0.327591091 : f32
    %30 = vector.broadcast %cst_22 : f32 to vector<32x16xf32>
    %31 = arith.mulf %30, %29 : vector<32x16xf32>
    %cst_23 = arith.constant 1.000000e+00 : f32
    %32 = vector.broadcast %cst_23 : f32 to vector<32x16xf32>
    %33 = arith.addf %32, %31 : vector<32x16xf32>
    %cst_24 = arith.constant 1.000000e+00 : f32
    %34 = vector.broadcast %cst_24 : f32 to vector<32x16xf32>
    %35 = arith.divf %34, %33 : vector<32x16xf32>
    %cst_25 = arith.constant 1.06140542 : f32
    %36 = vector.broadcast %cst_25 : f32 to vector<32x16xf32>
    %37 = arith.mulf %36, %35 : vector<32x16xf32>
    %cst_26 = arith.constant -1.45315206 : f32
    %38 = vector.broadcast %cst_26 : f32 to vector<32x16xf32>
    %39 = arith.addf %37, %38 : vector<32x16xf32>
    %40 = arith.mulf %39, %35 : vector<32x16xf32>
    %cst_27 = arith.constant 1.42141378 : f32
    %41 = vector.broadcast %cst_27 : f32 to vector<32x16xf32>
    %42 = arith.addf %40, %41 : vector<32x16xf32>
    %43 = arith.mulf %42, %35 : vector<32x16xf32>
    %cst_28 = arith.constant -0.284496725 : f32
    %44 = vector.broadcast %cst_28 : f32 to vector<32x16xf32>
    %45 = arith.addf %43, %44 : vector<32x16xf32>
    %46 = arith.mulf %45, %35 : vector<32x16xf32>
    %cst_29 = arith.constant 0.254829586 : f32
    %47 = vector.broadcast %cst_29 : f32 to vector<32x16xf32>
    %48 = arith.addf %46, %47 : vector<32x16xf32>
    %49 = arith.mulf %48, %35 : vector<32x16xf32>
    %cst_30 = arith.constant 0.000000e+00 : f32
    %50 = vector.broadcast %cst_30 : f32 to vector<32x16xf32>
    %51 = arith.subf %50, %29 : vector<32x16xf32>
    %52 = arith.mulf %51, %29 : vector<32x16xf32>
    %53 = math.exp %52 : vector<32x16xf32>
    %54 = arith.mulf %49, %53 : vector<32x16xf32>
    %cst_31 = arith.constant 1.000000e+00 : f32
    %55 = vector.broadcast %cst_31 : f32 to vector<32x16xf32>
    %56 = arith.subf %55, %54 : vector<32x16xf32>
    %cst_32 = arith.constant 0.000000e+00 : f32
    %57 = vector.broadcast %cst_32 : f32 to vector<32x16xf32>
    %58 = arith.cmpf oge, %28, %57 : vector<32x16xf32>
    %cst_33 = arith.constant 0.000000e+00 : f32
    %59 = vector.broadcast %cst_33 : f32 to vector<32x16xf32>
    %60 = arith.subf %59, %56 : vector<32x16xf32>
    %61 = arith.select %58, %56, %60 : vector<32x16xi1>, vector<32x16xf32>
    %cst_34 = arith.constant 1.000000e+00 : f32
    %62 = vector.broadcast %cst_34 : f32 to vector<32x16xf32>
    %63 = arith.addf %62, %61 : vector<32x16xf32>
    %64 = arith.mulf %26, %63 : vector<32x16xf32>
    %c1 = arith.constant 1 : index
    %c0_35 = arith.constant 0 : index
    %c0_36 = arith.constant 0 : index
    %c0_37 = arith.constant 0 : index
    %65 = vector.load %arg3[%c1, %c0_35, %c0_36, %c0_37] : memref<4x8x64x64xf32, #tpu.memory_space<vmem>>, vector<1x8x64x64xf32>
    %66 = vector.shape_cast %65 : vector<1x8x64x64xf32> to vector<8x64x64xf32>
    %c1_38 = arith.constant 1 : index
    %c0_39 = arith.constant 0 : index
    %c0_40 = arith.constant 0 : index
    %67 = vector.load %arg4[%c1_38, %c0_39, %c0_40] : memref<4x32x33xf32, #tpu.memory_space<vmem>>, vector<1x32x33xf32>
    %68 = vector.shape_cast %67 : vector<1x32x33xf32> to vector<32x33xf32>
    %cst_41 = arith.constant dense<0.000000e+00> : vector<16x32xf32>
    %69 = tpu.matmul %1, %64, %cst_41 {dimension_numbers = #tpu.dot_dimension_numbers<[1], [1], [0], [0], [0, 0, 1, 0], [], []>} : vector<16x16xf32>, vector<32x16xf32>, vector<16x32xf32> -> vector<16x32xf32>
    %70 = vector.shape_cast %69 : vector<16x32xf32> to vector<16x1x32xf32>
    %71 = vector.extract_strided_slice %70 {offsets = [0, 0, 0], sizes = [8, 1, 32], strides = [1, 1, 1]} : vector<16x1x32xf32> to vector<8x1x32xf32>
    %72 = vector.extract_strided_slice %70 {offsets = [8, 0, 0], sizes = [8, 1, 32], strides = [1, 1, 1]} : vector<16x1x32xf32> to vector<8x1x32xf32>
    %73 = tpu.concatenate %71, %72 in 2 : vector<8x1x32xf32>, vector<8x1x32xf32> -> vector<8x1x64xf32>
    "tpu.trace_start"() <{level = 10 : i32, message = "mbi,mio->mbo"}> : () -> ()
    %cst_42 = arith.constant dense<0.000000e+00> : vector<8x1x64xf32>
    %74 = tpu.matmul %73, %66, %cst_42 {dimension_numbers = #tpu.dot_dimension_numbers<[2], [1], [1], [2], [0, 0, 0, 1, 1, 2], [0], [0]>} : vector<8x1x64xf32>, vector<8x64x64xf32>, vector<8x1x64xf32> -> vector<8x1x64xf32>
    "tpu.trace_stop"() : () -> ()
    %75 = vector.shape_cast %74 : vector<8x1x64xf32> to vector<8x64xf32>
    %76 = vector.extract_strided_slice %75 {offsets = [0, 0], sizes = [8, 32], strides = [1, 1]} : vector<8x64xf32> to vector<8x32xf32>
    %77 = vector.extract_strided_slice %75 {offsets = [0, 32], sizes = [8, 32], strides = [1, 1]} : vector<8x64xf32> to vector<8x32xf32>
    %78 = tpu.concatenate %76, %77 in 0 : vector<8x32xf32>, vector<8x32xf32> -> vector<16x32xf32>
    %cst_43 = arith.constant dense<0.000000e+00> : vector<32x16xf32>
    %79 = tpu.matmul %78, %2, %cst_43 {dimension_numbers = #tpu.dot_dimension_numbers<[0], [0], [1], [1], [0, 1, 1, 1], [], []>} : vector<16x32xf32>, vector<16x16xf32>, vector<32x16xf32> -> vector<32x16xf32>
    %80 = tpu.concatenate %64, %0 in 0 : vector<32x16xf32>, vector<1x16xf32> -> vector<33x16xf32>
    %cst_44 = arith.constant dense<0.000000e+00> : vector<32x16xf32>
    %81 = tpu.matmul %68, %80, %cst_44 {dimension_numbers = #tpu.dot_dimension_numbers<[1], [0], [0], [1], [0, 0, 1, 1], [], []>} : vector<32x33xf32>, vector<33x16xf32>, vector<32x16xf32> -> vector<32x16xf32>
    %82 = arith.addf %79, %81 : vector<32x16xf32>
    %cst_45 = arith.constant 5.000000e-01 : f32
    %83 = vector.broadcast %cst_45 : f32 to vector<32x16xf32>
    %84 = arith.mulf %83, %82 : vector<32x16xf32>
    %cst_46 = arith.constant 0.707106769 : f32
    %85 = vector.broadcast %cst_46 : f32 to vector<32x16xf32>
    %86 = arith.mulf %82, %85 : vector<32x16xf32>
    %87 = math.absf %86 : vector<32x16xf32>
    %cst_47 = arith.constant 0.327591091 : f32
    %88 = vector.broadcast %cst_47 : f32 to vector<32x16xf32>
    %89 = arith.mulf %88, %87 : vector<32x16xf32>
    %cst_48 = arith.constant 1.000000e+00 : f32
    %90 = vector.broadcast %cst_48 : f32 to vector<32x16xf32>
    %91 = arith.addf %90, %89 : vector<32x16xf32>
    %cst_49 = arith.constant 1.000000e+00 : f32
    %92 = vector.broadcast %cst_49 : f32 to vector<32x16xf32>
    %93 = arith.divf %92, %91 : vector<32x16xf32>
    %cst_50 = arith.constant 1.06140542 : f32
    %94 = vector.broadcast %cst_50 : f32 to vector<32x16xf32>
    %95 = arith.mulf %94, %93 : vector<32x16xf32>
    %cst_51 = arith.constant -1.45315206 : f32
    %96 = vector.broadcast %cst_51 : f32 to vector<32x16xf32>
    %97 = arith.addf %95, %96 : vector<32x16xf32>
    %98 = arith.mulf %97, %93 : vector<32x16xf32>
    %cst_52 = arith.constant 1.42141378 : f32
    %99 = vector.broadcast %cst_52 : f32 to vector<32x16xf32>
    %100 = arith.addf %98, %99 : vector<32x16xf32>
    %101 = arith.mulf %100, %93 : vector<32x16xf32>
    %cst_53 = arith.constant -0.284496725 : f32
    %102 = vector.broadcast %cst_53 : f32 to vector<32x16xf32>
    %103 = arith.addf %101, %102 : vector<32x16xf32>
    %104 = arith.mulf %103, %93 : vector<32x16xf32>
    %cst_54 = arith.constant 0.254829586 : f32
    %105 = vector.broadcast %cst_54 : f32 to vector<32x16xf32>
    %106 = arith.addf %104, %105 : vector<32x16xf32>
    %107 = arith.mulf %106, %93 : vector<32x16xf32>
    %cst_55 = arith.constant 0.000000e+00 : f32
    %108 = vector.broadcast %cst_55 : f32 to vector<32x16xf32>
    %109 = arith.subf %108, %87 : vector<32x16xf32>
    %110 = arith.mulf %109, %87 : vector<32x16xf32>
    %111 = math.exp %110 : vector<32x16xf32>
    %112 = arith.mulf %107, %111 : vector<32x16xf32>
    %cst_56 = arith.constant 1.000000e+00 : f32
    %113 = vector.broadcast %cst_56 : f32 to vector<32x16xf32>
    %114 = arith.subf %113, %112 : vector<32x16xf32>
    %cst_57 = arith.constant 0.000000e+00 : f32
    %115 = vector.broadcast %cst_57 : f32 to vector<32x16xf32>
    %116 = arith.cmpf oge, %86, %115 : vector<32x16xf32>
    %cst_58 = arith.constant 0.000000e+00 : f32
    %117 = vector.broadcast %cst_58 : f32 to vector<32x16xf32>
    %118 = arith.subf %117, %114 : vector<32x16xf32>
    %119 = arith.select %116, %114, %118 : vector<32x16xi1>, vector<32x16xf32>
    %cst_59 = arith.constant 1.000000e+00 : f32
    %120 = vector.broadcast %cst_59 : f32 to vector<32x16xf32>
    %121 = arith.addf %120, %119 : vector<32x16xf32>
    %122 = arith.mulf %84, %121 : vector<32x16xf32>
    %c2 = arith.constant 2 : index
    %c0_60 = arith.constant 0 : index
    %c0_61 = arith.constant 0 : index
    %c0_62 = arith.constant 0 : index
    %123 = vector.load %arg3[%c2, %c0_60, %c0_61, %c0_62] : memref<4x8x64x64xf32, #tpu.memory_space<vmem>>, vector<1x8x64x64xf32>
    %124 = vector.shape_cast %123 : vector<1x8x64x64xf32> to vector<8x64x64xf32>
    %c2_63 = arith.constant 2 : index
    %c0_64 = arith.constant 0 : index
    %c0_65 = arith.constant 0 : index
    %125 = vector.load %arg4[%c2_63, %c0_64, %c0_65] : memref<4x32x33xf32, #tpu.memory_space<vmem>>, vector<1x32x33xf32>
    %126 = vector.shape_cast %125 : vector<1x32x33xf32> to vector<32x33xf32>
    %cst_66 = arith.constant dense<0.000000e+00> : vector<16x32xf32>
    %127 = tpu.matmul %1, %122, %cst_66 {dimension_numbers = #tpu.dot_dimension_numbers<[1], [1], [0], [0], [0, 0, 1, 0], [], []>} : vector<16x16xf32>, vector<32x16xf32>, vector<16x32xf32> -> vector<16x32xf32>
    %128 = vector.shape_cast %127 : vector<16x32xf32> to vector<16x1x32xf32>
    %129 = vector.extract_strided_slice %128 {offsets = [0, 0, 0], sizes = [8, 1, 32], strides = [1, 1, 1]} : vector<16x1x32xf32> to vector<8x1x32xf32>
    %130 = vector.extract_strided_slice %128 {offsets = [8, 0, 0], sizes = [8, 1, 32], strides = [1, 1, 1]} : vector<16x1x32xf32> to vector<8x1x32xf32>
    %131 = tpu.concatenate %129, %130 in 2 : vector<8x1x32xf32>, vector<8x1x32xf32> -> vector<8x1x64xf32>
    "tpu.trace_start"() <{level = 10 : i32, message = "mbi,mio->mbo"}> : () -> ()
    %cst_67 = arith.constant dense<0.000000e+00> : vector<8x1x64xf32>
    %132 = tpu.matmul %131, %124, %cst_67 {dimension_numbers = #tpu.dot_dimension_numbers<[2], [1], [1], [2], [0, 0, 0, 1, 1, 2], [0], [0]>} : vector<8x1x64xf32>, vector<8x64x64xf32>, vector<8x1x64xf32> -> vector<8x1x64xf32>
    "tpu.trace_stop"() : () -> ()
    %133 = vector.shape_cast %132 : vector<8x1x64xf32> to vector<8x64xf32>
    %134 = vector.extract_strided_slice %133 {offsets = [0, 0], sizes = [8, 32], strides = [1, 1]} : vector<8x64xf32> to vector<8x32xf32>
    %135 = vector.extract_strided_slice %133 {offsets = [0, 32], sizes = [8, 32], strides = [1, 1]} : vector<8x64xf32> to vector<8x32xf32>
    %136 = tpu.concatenate %134, %135 in 0 : vector<8x32xf32>, vector<8x32xf32> -> vector<16x32xf32>
    %cst_68 = arith.constant dense<0.000000e+00> : vector<32x16xf32>
    %137 = tpu.matmul %136, %2, %cst_68 {dimension_numbers = #tpu.dot_dimension_numbers<[0], [0], [1], [1], [0, 1, 1, 1], [], []>} : vector<16x32xf32>, vector<16x16xf32>, vector<32x16xf32> -> vector<32x16xf32>
    %138 = tpu.concatenate %122, %0 in 0 : vector<32x16xf32>, vector<1x16xf32> -> vector<33x16xf32>
    %cst_69 = arith.constant dense<0.000000e+00> : vector<32x16xf32>
    %139 = tpu.matmul %126, %138, %cst_69 {dimension_numbers = #tpu.dot_dimension_numbers<[1], [0], [0], [1], [0, 0, 1, 1], [], []>} : vector<32x33xf32>, vector<33x16xf32>, vector<32x16xf32> -> vector<32x16xf32>
    %140 = arith.addf %137, %139 : vector<32x16xf32>
    %cst_70 = arith.constant 5.000000e-01 : f32
    %141 = vector.broadcast %cst_70 : f32 to vector<32x16xf32>
    %142 = arith.mulf %141, %140 : vector<32x16xf32>
    %cst_71 = arith.constant 0.707106769 : f32
    %143 = vector.broadcast %cst_71 : f32 to vector<32x16xf32>
    %144 = arith.mulf %140, %143 : vector<32x16xf32>
    %145 = math.absf %144 : vector<32x16xf32>
    %cst_72 = arith.constant 0.327591091 : f32
    %146 = vector.broadcast %cst_72 : f32 to vector<32x16xf32>
    %147 = arith.mulf %146, %145 : vector<32x16xf32>
    %cst_73 = arith.constant 1.000000e+00 : f32
    %148 = vector.broadcast %cst_73 : f32 to vector<32x16xf32>
    %149 = arith.addf %148, %147 : vector<32x16xf32>
    %cst_74 = arith.constant 1.000000e+00 : f32
    %150 = vector.broadcast %cst_74 : f32 to vector<32x16xf32>
    %151 = arith.divf %150, %149 : vector<32x16xf32>
    %cst_75 = arith.constant 1.06140542 : f32
    %152 = vector.broadcast %cst_75 : f32 to vector<32x16xf32>
    %153 = arith.mulf %152, %151 : vector<32x16xf32>
    %cst_76 = arith.constant -1.45315206 : f32
    %154 = vector.broadcast %cst_76 : f32 to vector<32x16xf32>
    %155 = arith.addf %153, %154 : vector<32x16xf32>
    %156 = arith.mulf %155, %151 : vector<32x16xf32>
    %cst_77 = arith.constant 1.42141378 : f32
    %157 = vector.broadcast %cst_77 : f32 to vector<32x16xf32>
    %158 = arith.addf %156, %157 : vector<32x16xf32>
    %159 = arith.mulf %158, %151 : vector<32x16xf32>
    %cst_78 = arith.constant -0.284496725 : f32
    %160 = vector.broadcast %cst_78 : f32 to vector<32x16xf32>
    %161 = arith.addf %159, %160 : vector<32x16xf32>
    %162 = arith.mulf %161, %151 : vector<32x16xf32>
    %cst_79 = arith.constant 0.254829586 : f32
    %163 = vector.broadcast %cst_79 : f32 to vector<32x16xf32>
    %164 = arith.addf %162, %163 : vector<32x16xf32>
    %165 = arith.mulf %164, %151 : vector<32x16xf32>
    %cst_80 = arith.constant 0.000000e+00 : f32
    %166 = vector.broadcast %cst_80 : f32 to vector<32x16xf32>
    %167 = arith.subf %166, %145 : vector<32x16xf32>
    %168 = arith.mulf %167, %145 : vector<32x16xf32>
    %169 = math.exp %168 : vector<32x16xf32>
    %170 = arith.mulf %165, %169 : vector<32x16xf32>
    %cst_81 = arith.constant 1.000000e+00 : f32
    %171 = vector.broadcast %cst_81 : f32 to vector<32x16xf32>
    %172 = arith.subf %171, %170 : vector<32x16xf32>
    %cst_82 = arith.constant 0.000000e+00 : f32
    %173 = vector.broadcast %cst_82 : f32 to vector<32x16xf32>
    %174 = arith.cmpf oge, %144, %173 : vector<32x16xf32>
    %cst_83 = arith.constant 0.000000e+00 : f32
    %175 = vector.broadcast %cst_83 : f32 to vector<32x16xf32>
    %176 = arith.subf %175, %172 : vector<32x16xf32>
    %177 = arith.select %174, %172, %176 : vector<32x16xi1>, vector<32x16xf32>
    %cst_84 = arith.constant 1.000000e+00 : f32
    %178 = vector.broadcast %cst_84 : f32 to vector<32x16xf32>
    %179 = arith.addf %178, %177 : vector<32x16xf32>
    %180 = arith.mulf %142, %179 : vector<32x16xf32>
    %c3 = arith.constant 3 : index
    %c0_85 = arith.constant 0 : index
    %c0_86 = arith.constant 0 : index
    %c0_87 = arith.constant 0 : index
    %181 = vector.load %arg3[%c3, %c0_85, %c0_86, %c0_87] : memref<4x8x64x64xf32, #tpu.memory_space<vmem>>, vector<1x8x64x64xf32>
    %182 = vector.shape_cast %181 : vector<1x8x64x64xf32> to vector<8x64x64xf32>
    %c3_88 = arith.constant 3 : index
    %c0_89 = arith.constant 0 : index
    %c0_90 = arith.constant 0 : index
    %183 = vector.load %arg4[%c3_88, %c0_89, %c0_90] : memref<4x32x33xf32, #tpu.memory_space<vmem>>, vector<1x32x33xf32>
    %184 = vector.shape_cast %183 : vector<1x32x33xf32> to vector<32x33xf32>
    %cst_91 = arith.constant dense<0.000000e+00> : vector<16x32xf32>
    %185 = tpu.matmul %1, %180, %cst_91 {dimension_numbers = #tpu.dot_dimension_numbers<[1], [1], [0], [0], [0, 0, 1, 0], [], []>} : vector<16x16xf32>, vector<32x16xf32>, vector<16x32xf32> -> vector<16x32xf32>
    %186 = vector.shape_cast %185 : vector<16x32xf32> to vector<16x1x32xf32>
    %187 = vector.extract_strided_slice %186 {offsets = [0, 0, 0], sizes = [8, 1, 32], strides = [1, 1, 1]} : vector<16x1x32xf32> to vector<8x1x32xf32>
    %188 = vector.extract_strided_slice %186 {offsets = [8, 0, 0], sizes = [8, 1, 32], strides = [1, 1, 1]} : vector<16x1x32xf32> to vector<8x1x32xf32>
    %189 = tpu.concatenate %187, %188 in 2 : vector<8x1x32xf32>, vector<8x1x32xf32> -> vector<8x1x64xf32>
    "tpu.trace_start"() <{level = 10 : i32, message = "mbi,mio->mbo"}> : () -> ()
    %cst_92 = arith.constant dense<0.000000e+00> : vector<8x1x64xf32>
    %190 = tpu.matmul %189, %182, %cst_92 {dimension_numbers = #tpu.dot_dimension_numbers<[2], [1], [1], [2], [0, 0, 0, 1, 1, 2], [0], [0]>} : vector<8x1x64xf32>, vector<8x64x64xf32>, vector<8x1x64xf32> -> vector<8x1x64xf32>
    "tpu.trace_stop"() : () -> ()
    %191 = vector.shape_cast %190 : vector<8x1x64xf32> to vector<8x64xf32>
    %192 = vector.extract_strided_slice %191 {offsets = [0, 0], sizes = [8, 32], strides = [1, 1]} : vector<8x64xf32> to vector<8x32xf32>
    %193 = vector.extract_strided_slice %191 {offsets = [0, 32], sizes = [8, 32], strides = [1, 1]} : vector<8x64xf32> to vector<8x32xf32>
    %194 = tpu.concatenate %192, %193 in 0 : vector<8x32xf32>, vector<8x32xf32> -> vector<16x32xf32>
    %cst_93 = arith.constant dense<0.000000e+00> : vector<32x16xf32>
    %195 = tpu.matmul %194, %2, %cst_93 {dimension_numbers = #tpu.dot_dimension_numbers<[0], [0], [1], [1], [0, 1, 1, 1], [], []>} : vector<16x32xf32>, vector<16x16xf32>, vector<32x16xf32> -> vector<32x16xf32>
    %196 = tpu.concatenate %180, %0 in 0 : vector<32x16xf32>, vector<1x16xf32> -> vector<33x16xf32>
    %cst_94 = arith.constant dense<0.000000e+00> : vector<32x16xf32>
    %197 = tpu.matmul %184, %196, %cst_94 {dimension_numbers = #tpu.dot_dimension_numbers<[1], [0], [0], [1], [0, 0, 1, 1], [], []>} : vector<32x33xf32>, vector<33x16xf32>, vector<32x16xf32> -> vector<32x16xf32>
    %198 = arith.addf %195, %197 : vector<32x16xf32>
    %199 = tpu.concatenate %198, %0 in 0 : vector<32x16xf32>, vector<1x16xf32> -> vector<33x16xf32>
    %c0_95 = arith.constant 0 : index
    %c0_96 = arith.constant 0 : index
    %200 = vector.load %arg7[%c0_95, %c0_96] : memref<128x33xf32, #tpu.memory_space<vmem>>, vector<128x33xf32>
    %cst_97 = arith.constant dense<0.000000e+00> : vector<128x16xf32>
    %201 = tpu.matmul %200, %199, %cst_97 {dimension_numbers = #tpu.dot_dimension_numbers<[1], [0], [0], [1], [0, 0, 1, 1], [], []>} : vector<128x33xf32>, vector<33x16xf32>, vector<128x16xf32> -> vector<128x16xf32>
    %cst_98 = arith.constant 5.000000e-01 : f32
    %202 = vector.broadcast %cst_98 : f32 to vector<128x16xf32>
    %203 = arith.mulf %202, %201 : vector<128x16xf32>
    %cst_99 = arith.constant 0.707106769 : f32
    %204 = vector.broadcast %cst_99 : f32 to vector<128x16xf32>
    %205 = arith.mulf %201, %204 : vector<128x16xf32>
    %206 = math.absf %205 : vector<128x16xf32>
    %cst_100 = arith.constant 0.327591091 : f32
    %207 = vector.broadcast %cst_100 : f32 to vector<128x16xf32>
    %208 = arith.mulf %207, %206 : vector<128x16xf32>
    %cst_101 = arith.constant 1.000000e+00 : f32
    %209 = vector.broadcast %cst_101 : f32 to vector<128x16xf32>
    %210 = arith.addf %209, %208 : vector<128x16xf32>
    %cst_102 = arith.constant 1.000000e+00 : f32
    %211 = vector.broadcast %cst_102 : f32 to vector<128x16xf32>
    %212 = arith.divf %211, %210 : vector<128x16xf32>
    %cst_103 = arith.constant 1.06140542 : f32
    %213 = vector.broadcast %cst_103 : f32 to vector<128x16xf32>
    %214 = arith.mulf %213, %212 : vector<128x16xf32>
    %cst_104 = arith.constant -1.45315206 : f32
    %215 = vector.broadcast %cst_104 : f32 to vector<128x16xf32>
    %216 = arith.addf %214, %215 : vector<128x16xf32>
    %217 = arith.mulf %216, %212 : vector<128x16xf32>
    %cst_105 = arith.constant 1.42141378 : f32
    %218 = vector.broadcast %cst_105 : f32 to vector<128x16xf32>
    %219 = arith.addf %217, %218 : vector<128x16xf32>
    %220 = arith.mulf %219, %212 : vector<128x16xf32>
    %cst_106 = arith.constant -0.284496725 : f32
    %221 = vector.broadcast %cst_106 : f32 to vector<128x16xf32>
    %222 = arith.addf %220, %221 : vector<128x16xf32>
    %223 = arith.mulf %222, %212 : vector<128x16xf32>
    %cst_107 = arith.constant 0.254829586 : f32
    %224 = vector.broadcast %cst_107 : f32 to vector<128x16xf32>
    %225 = arith.addf %223, %224 : vector<128x16xf32>
    %226 = arith.mulf %225, %212 : vector<128x16xf32>
    %cst_108 = arith.constant 0.000000e+00 : f32
    %227 = vector.broadcast %cst_108 : f32 to vector<128x16xf32>
    %228 = arith.subf %227, %206 : vector<128x16xf32>
    %229 = arith.mulf %228, %206 : vector<128x16xf32>
    %230 = math.exp %229 : vector<128x16xf32>
    %231 = arith.mulf %226, %230 : vector<128x16xf32>
    %cst_109 = arith.constant 1.000000e+00 : f32
    %232 = vector.broadcast %cst_109 : f32 to vector<128x16xf32>
    %233 = arith.subf %232, %231 : vector<128x16xf32>
    %cst_110 = arith.constant 0.000000e+00 : f32
    %234 = vector.broadcast %cst_110 : f32 to vector<128x16xf32>
    %235 = arith.cmpf oge, %205, %234 : vector<128x16xf32>
    %cst_111 = arith.constant 0.000000e+00 : f32
    %236 = vector.broadcast %cst_111 : f32 to vector<128x16xf32>
    %237 = arith.subf %236, %233 : vector<128x16xf32>
    %238 = arith.select %235, %233, %237 : vector<128x16xi1>, vector<128x16xf32>
    %cst_112 = arith.constant 1.000000e+00 : f32
    %239 = vector.broadcast %cst_112 : f32 to vector<128x16xf32>
    %240 = arith.addf %239, %238 : vector<128x16xf32>
    %241 = arith.mulf %203, %240 : vector<128x16xf32>
    %242 = tpu.concatenate %241, %0 in 0 : vector<128x16xf32>, vector<1x16xf32> -> vector<129x16xf32>
    %c0_113 = arith.constant 0 : index
    %c0_114 = arith.constant 0 : index
    %243 = vector.load %arg8[%c0_113, %c0_114] : memref<1x129xf32, #tpu.memory_space<vmem>>, vector<1x129xf32>
    %cst_115 = arith.constant dense<0.000000e+00> : vector<1x16xf32>
    %244 = tpu.matmul %243, %242, %cst_115 {dimension_numbers = #tpu.dot_dimension_numbers<[1], [0], [0], [1], [0, 0, 1, 1], [], []>} : vector<1x129xf32>, vector<129x16xf32>, vector<1x16xf32> -> vector<1x16xf32>
    %245 = vector.shape_cast %244 : vector<1x16xf32> to vector<1x1x16xf32>
    %c0_116 = arith.constant 0 : index
    %c0_117 = arith.constant 0 : index
    %c0_118 = arith.constant 0 : index
    %246 = vector.load %arg9[%c0_116, %c0_117, %c0_118] : memref<1x1x16xf32, #tpu.memory_space<vmem>>, vector<1x1x16xf32>
    tpu.vector_store %arg9[%c0_116, %c0_117, %c0_118], %245 {strides = array<i32>} : memref<1x1x16xf32, #tpu.memory_space<vmem>>, vector<1x1x16xf32>,
    return
  }
  func.func @transform_0(%arg0: i32) -> (i32, i32, i32) {
    %c0_i32 = arith.constant 0 : i32
    %c0_i32_0 = arith.constant 0 : i32
    %c0_i32_1 = arith.constant 0 : i32
    return %arg0, %c0_i32, %c0_i32_0 : i32, i32, i32
  }
  func.func @transform_1(%arg0: i32) -> (i32, i32) {
    %c0_i32 = arith.constant 0 : i32
    %c0_i32_0 = arith.constant 0 : i32
    %c0_i32_1 = arith.constant 0 : i32
    return %c0_i32, %c0_i32_0 : i32, i32
  }
  func.func @transform_2(%arg0: i32) -> (i32, i32, i32, i32) {
    %c0_i32 = arith.constant 0 : i32
    %c0_i32_0 = arith.constant 0 : i32
    %c0_i32_1 = arith.constant 0 : i32
    %c0_i32_2 = arith.constant 0 : i32
    %c0_i32_3 = arith.constant 0 : i32
    return %c0_i32, %c0_i32_0, %c0_i32_1, %c0_i32_2 : i32, i32, i32, i32
  }
  func.func @transform_3(%arg0: i32) -> (i32, i32, i32) {
    %c0_i32 = arith.constant 0 : i32
    %c0_i32_0 = arith.constant 0 : i32
    %c0_i32_1 = arith.constant 0 : i32
    %c0_i32_2 = arith.constant 0 : i32
    return %c0_i32, %c0_i32_0, %c0_i32_1 : i32, i32, i32
  }
  func.func @transform_4(%arg0: i32) -> (i32, i32) {
    %c0_i32 = arith.constant 0 : i32
    %c0_i32_0 = arith.constant 0 : i32
    %c0_i32_1 = arith.constant 0 : i32
    return %c0_i32, %c0_i32_0 : i32, i32
  }
  func.func @transform_5(%arg0: i32) -> (i32, i32) {
    %c0_i32 = arith.constant 0 : i32
    %c0_i32_0 = arith.constant 0 : i32
    %c0_i32_1 = arith.constant 0 : i32
    return %c0_i32, %c0_i32_0 : i32, i32
  }
  func.func @transform_6(%arg0: i32) -> (i32, i32) {
    %c0_i32 = arith.constant 0 : i32
    %c0_i32_0 = arith.constant 0 : i32
    %c0_i32_1 = arith.constant 0 : i32
    return %c0_i32, %c0_i32_0 : i32, i32
  }
  func.func @transform_7(%arg0: i32) -> (i32, i32) {
    %c0_i32 = arith.constant 0 : i32
    %c0_i32_0 = arith.constant 0 : i32
    %c0_i32_1 = arith.constant 0 : i32
    return %c0_i32, %c0_i32_0 : i32, i32
  }
  func.func @transform_8(%arg0: i32) -> (i32, i32, i32) {
    %c0_i32 = arith.constant 0 : i32
    %c0_i32_0 = arith.constant 0 : i32
    %c0_i32_1 = arith.constant 0 : i32
    return %arg0, %c0_i32, %c0_i32_0 : i32, i32, i32
  }
}

</mosaic_0001>

<llo_original>
// kernel: fno1d_forward.1
$region0: #{fno1d_forward.1}
  #allocation0 [shape = 'u32[]', space=smem, size = 0x4, offset = 0x4, fixed_abs, tag = 'smem constant byte address 0x4 - core index']
  #allocation1 [shape = 'u32[144,128]{1,0:T(1,128)}', space=vmem, size = 0x12000, scoped, tag = 'internal scratch']
  %s0 = inlined_call_operand.vmem [shape: f32[2,3,16], index: 0, kind: input, shape index: {}]
  %s1 = inlined_call_operand.vmem [shape: f32[32,3], index: 1, kind: input, shape index: {}]
  %s2 = inlined_call_operand.vmem [shape: f32[4,8,64,64], index: 2, kind: input, shape index: {}]
  %s3 = inlined_call_operand.vmem [shape: f32[4,32,33], index: 3, kind: input, shape index: {}]
  %s4 = inlined_call_operand.vmem [shape: f32[16,16], index: 4, kind: input, shape index: {}]
  %s5 = inlined_call_operand.vmem [shape: f32[16,16], index: 5, kind: input, shape index: {}]
  %s6 = inlined_call_operand.vmem [shape: f32[128,33], index: 6, kind: input, shape index: {}]
  %s7 = inlined_call_operand.vmem [shape: f32[1,129], index: 7, kind: input, shape index: {}]
  %s8 = inlined_call_operand.hbm [shape: f32[2,1,16], index: 8, kind: output, shape index: {}]
  %s9 = sld [smem:[#allocation0]]
  $region65: #{fno1d_forward.1} parent=0
    _
  %s11 = ssub.s32 1, %s9
  %s12 = scalar_select 0, %s11, %s9
  $region1: #{fno1d_forward.1} parent=0
    #allocation2 [shape = 'u8[1024]{0}', space=vmem, size = 0x400, scoped, tag = 'output window, operand 0']
    #allocation3 [shape = 's32[2]{0}', space=sflag, size = 0x8, scoped, tag = 'scoped memory for fno1d_forward.1']
    %13 = vsyncpa [#allocation3], 0
    %s14 = scalar_lea.sflag [#allocation3], 1
    %15 = vsyncpa %s14, 0
    loop: start=0, step=1, limit=4
    $region2: #{fno1d_forward.1} parent=1 // loop_pre_header
      _
    $region3: #{fno1d_forward.1} parent=1 // loop_header
      %s17 = sphi 0, %s21
      %p18 = scmp.ge.s32.totalorder %s17, 4
      %s27 = sphi 0, %s29
      %s30 = sphi 0, %s27
      %s31 = sphi 0, %s30
      %s47 = sphi 0, %s31
      %s51 = sphi 0, %s51
      %s53 = sphi 0, %s51
      %s54 = sphi 0, %s53
      %s68 = sphi 0, %s54
      %s72 = sphi 0, %s72
      %s74 = sphi 0, %s72
      %s75 = sphi 0, %s74
      %s89 = sphi 0, %s75
      %s93 = sphi 0, %s93
      %s95 = sphi 0, %s93
      %s96 = sphi 0, %s95
      %s110 = sphi 0, %s96
      %s114 = sphi 0, %s114
      %s116 = sphi 0, %s114
      %s117 = sphi 0, %s116
      %s131 = sphi 0, %s117
      %s135 = sphi 0, %s135
      %s137 = sphi 0, %s135
      %s138 = sphi 0, %s137
      %s152 = sphi 0, %s138
      %s156 = sphi 0, %s156
      %s158 = sphi 0, %s156
      %s159 = sphi 0, %s158
      %s173 = sphi 0, %s159
      %s177 = sphi 0, %s177
      %s179 = sphi 0, %s177
      %s180 = sphi 0, %s179
      %s194 = sphi 0, %s180
      %s200 = sphi 0, %s202
      %s203 = sphi 0, %s200
      %s204 = sphi 0, %s203
      %s220 = sphi 0, %s204
    $region4: #{fno1d_forward.1} parent=1 // loop_header_branch
      %20 = sbr.rel (%p18) target = $region8
    $region5: #{fno1d_forward.1} parent=1 // loop_body
      %s22 = ssub.s32 %s17, 1
      %s23 = ssub.s32 %s17, 2
      %s24 = sadd.s32 %s17, 1
      %s25 = ssub.s32 %s17, %s24
      %p26 = scmp.eq.s32.totalorder %s25, 0
      %s28 = sadd.s32 %s27, 1
      %s29 = scalar_select %p26, %s27, %s28
      %p32 = pneg %p26
      %p33 = scmp.eq.s32.totalorder %s17, 1
      %p34 = por %p32, %p33
      %p35 = scmp.ne.s32.totalorder %s27, %s30
      %p36 = scmp.eq.s32.totalorder %s17, 0
      %p37 = por %p35, %p36
      %p38 = scmp.ne.s32.totalorder %s27, %s30
      %p39 = scmp.eq.s32.totalorder %s22, 1
      %p40 = por %p38, %p39
      %p41 = scmp.ne.s32.totalorder %s30, %s31
      %p42 = scmp.eq.s32.totalorder %s22, 0
      %p43 = por %p41, %p42
      %p44 = scmp.ne.s32.totalorder %s30, %s31
      %p45 = scmp.eq.s32.totalorder %s23, 1
      %p46 = por %p44, %p45
      %p48 = scmp.ne.s32.totalorder %s31, %s47
      %p49 = scmp.eq.s32.totalorder %s23, 0
      %p50 = por %p48, %p49
      %s52 = sadd.s32 %s51, 1
      %p55 = scmp.eq.s32.totalorder %s17, 1
      %p56 = scmp.ne.s32.totalorder %s51, %s53
      %p57 = scmp.eq.s32.totalorder %s17, 0
      %p58 = por %p56, %p57
      %p59 = scmp.ne.s32.totalorder %s51, %s53
      %p60 = scmp.eq.s32.totalorder %s22, 1
      %p61 = por %p59, %p60
      %p62 = scmp.ne.s32.totalorder %s53, %s54
      %p63 = scmp.eq.s32.totalorder %s22, 0
      %p64 = por %p62, %p63
      %p65 = scmp.ne.s32.totalorder %s53, %s54
      %p66 = scmp.eq.s32.totalorder %s23, 1
      %p67 = por %p65, %p66
      %p69 = scmp.ne.s32.totalorder %s54, %s68
      %p70 = scmp.eq.s32.totalorder %s23, 0
      %p71 = por %p69, %p70
      %s73 = sadd.s32 %s72, 1
      %p76 = scmp.eq.s32.totalorder %s17, 1
      %p77 = scmp.ne.s32.totalorder %s72, %s74
      %p78 = scmp.eq.s32.totalorder %s17, 0
      %p79 = por %p77, %p78
      %p80 = scmp.ne.s32.totalorder %s72, %s74
      %p81 = scmp.eq.s32.totalorder %s22, 1
      %p82 = por %p80, %p81
      %p83 = scmp.ne.s32.totalorder %s74, %s75
      %p84 = scmp.eq.s32.totalorder %s22, 0
      %p85 = por %p83, %p84
      %p86 = scmp.ne.s32.totalorder %s74, %s75
      %p87 = scmp.eq.s32.totalorder %s23, 1
      %p88 = por %p86, %p87
      %p90 = scmp.ne.s32.totalorder %s75, %s89
      %p91 = scmp.eq.s32.totalorder %s23, 0
      %p92 = por %p90, %p91
      %s94 = sadd.s32 %s93, 1
      %p97 = scmp.eq.s32.totalorder %s17, 1
      %p98 = scmp.ne.s32.totalorder %s93, %s95
      %p99 = scmp.eq.s32.totalorder %s17, 0
      %p100 = por %p98, %p99
      %p101 = scmp.ne.s32.totalorder %s93, %s95
      %p102 = scmp.eq.s32.totalorder %s22, 1
      %p103 = por %p101, %p102
      %p104 = scmp.ne.s32.totalorder %s95, %s96
      %p105 = scmp.eq.s32.totalorder %s22, 0
      %p106 = por %p104, %p105
      %p107 = scmp.ne.s32.totalorder %s95, %s96
      %p108 = scmp.eq.s32.totalorder %s23, 1
      %p109 = por %p107, %p108
      %p111 = scmp.ne.s32.totalorder %s96, %s110
      %p112 = scmp.eq.s32.totalorder %s23, 0
      %p113 = por %p111, %p112
      %s115 = sadd.s32 %s114, 1
      %p118 = scmp.eq.s32.totalorder %s17, 1
      %p119 = scmp.ne.s32.totalorder %s114, %s116
      %p120 = scmp.eq.s32.totalorder %s17, 0
      %p121 = por %p119, %p120
      %p122 = scmp.ne.s32.totalorder %s114, %s116
      %p123 = scmp.eq.s32.totalorder %s22, 1
      %p124 = por %p122, %p123
      %p125 = scmp.ne.s32.totalorder %s116, %s117
      %p126 = scmp.eq.s32.totalorder %s22, 0
      %p127 = por %p125, %p126
      %p128 = scmp.ne.s32.totalorder %s116, %s117
      %p129 = scmp.eq.s32.totalorder %s23, 1
      %p130 = por %p128, %p129
      %p132 = scmp.ne.s32.totalorder %s117, %s131
      %p133 = scmp.eq.s32.totalorder %s23, 0
      %p134 = por %p132, %p133
      %s136 = sadd.s32 %s135, 1
      %p139 = scmp.eq.s32.totalorder %s17, 1
      %p140 = scmp.ne.s32.totalorder %s135, %s137
      %p141 = scmp.eq.s32.totalorder %s17, 0
      %p142 = por %p140, %p141
      %p143 = scmp.ne.s32.totalorder %s135, %s137
      %p144 = scmp.eq.s32.totalorder %s22, 1
      %p145 = por %p143, %p144
      %p146 = scmp.ne.s32.totalorder %s137, %s138
      %p147 = scmp.eq.s32.totalorder %s22, 0
      %p148 = por %p146, %p147
      %p149 = scmp.ne.s32.totalorder %s137, %s138
      %p150 = scmp.eq.s32.totalorder %s23, 1
      %p151 = por %p149, %p150
      %p153 = scmp.ne.s32.totalorder %s138, %s152
      %p154 = scmp.eq.s32.totalorder %s23, 0
      %p155 = por %p153, %p154
      %s157 = sadd.s32 %s156, 1
      %p160 = scmp.eq.s32.totalorder %s17, 1
      %p161 = scmp.ne.s32.totalorder %s156, %s158
      %p162 = scmp.eq.s32.totalorder %s17, 0
      %p163 = por %p161, %p162
      %p164 = scmp.ne.s32.totalorder %s156, %s158
      %p165 = scmp.eq.s32.totalorder %s22, 1
      %p166 = por %p164, %p165
      %p167 = scmp.ne.s32.totalorder %s158, %s159
      %p168 = scmp.eq.s32.totalorder %s22, 0
      %p169 = por %p167, %p168
      %p170 = scmp.ne.s32.totalorder %s158, %s159
      %p171 = scmp.eq.s32.totalorder %s23, 1
      %p172 = por %p170, %p171
      %p174 = scmp.ne.s32.totalorder %s159, %s173
      %p175 = scmp.eq.s32.totalorder %s23, 0
      %p176 = por %p174, %p175
      %s178 = sadd.s32 %s177, 1
      %p181 = scmp.eq.s32.totalorder %s17, 1
      %p182 = scmp.ne.s32.totalorder %s177, %s179
      %p183 = scmp.eq.s32.totalorder %s17, 0
      %p184 = por %p182, %p183
      %p185 = scmp.ne.s32.totalorder %s177, %s179
      %p186 = scmp.eq.s32.totalorder %s22, 1
      %p187 = por %p185, %p186
      %p188 = scmp.ne.s32.totalorder %s179, %s180
      %p189 = scmp.eq.s32.totalorder %s22, 0
      %p190 = por %p188, %p189
      %p191 = scmp.ne.s32.totalorder %s179, %s180
      %p192 = scmp.eq.s32.totalorder %s23, 1
      %p193 = por %p191, %p192
      %p195 = scmp.ne.s32.totalorder %s180, %s194
      %p196 = scmp.eq.s32.totalorder %s23, 0
      %p197 = por %p195, %p196
      %s198 = ssub.s32 %s17, %s24
      %p199 = scmp.eq.s32.totalorder %s198, 0
      %s201 = sadd.s32 %s200, 1
      %s202 = scalar_select %p199, %s200, %s201
      %p205 = pneg %p199
      %p206 = scmp.eq.s32.totalorder %s17, 1
      %p207 = por %p205, %p206
      %p208 = scmp.ne.s32.totalorder %s200, %s203
      %p209 = scmp.eq.s32.totalorder %s17, 0
      %p210 = por %p208, %p209
      %p211 = scmp.ne.s32.totalorder %s200, %s203
      %p212 = scmp.eq.s32.totalorder %s22, 1
      %p213 = por %p211, %p212
      %p214 = scmp.ne.s32.totalorder %s203, %s204
      %p215 = scmp.eq.s32.totalorder %s22, 0
      %p216 = por %p214, %p215
      %p217 = scmp.ne.s32.totalorder %s203, %s204
      %p218 = scmp.eq.s32.totalorder %s23, 1
      %p219 = por %p217, %p218
      %p221 = scmp.ne.s32.totalorder %s204, %s220
      %p222 = scmp.eq.s32.totalorder %s23, 0
      %p223 = por %p221, %p222
      %p224 = scmp.le.s32.totalorder 1, %s17
      %p225 = scmp.lt.s32.totalorder %s17, 3
      %p226 = pnand %p224, %p225
      %p227 = pneg %p226
      // Predicated region
      $region9: #{fno1d_forward.1} parent=5 // pred_check
        _
      $region10: #{fno1d_forward.1} parent=5 // pred_check_branch
        %229 = sbr.rel (%p226) target = $region12
      $region11: #{fno1d_forward.1} parent=5 // pred_region
        %s230 = ssub.s32 %s17, 1
        // Predicated region
        $region13: #{fno1d_forward.1} parent=11 // pred_check
          %p231 = pneg %p64
        $region14: #{fno1d_forward.1} parent=11 // pred_check_branch
          %233 = sbr.rel (%p231) target = $region16
        $region15: #{fno1d_forward.1} parent=11 // pred_region
          _
        $region16: #{fno1d_forward.1} parent=11 // pred_fallthru
          _
        // Predicated region
        $region17: #{fno1d_forward.1} parent=11 // pred_check
          %p234 = pneg %p85
        $region18: #{fno1d_forward.1} parent=11 // pred_check_branch
          %236 = sbr.rel (%p234) target = $region20
        $region19: #{fno1d_forward.1} parent=11 // pred_region
          _
        $region20: #{fno1d_forward.1} parent=11 // pred_fallthru
          _
        // Predicated region
        $region21: #{fno1d_forward.1} parent=11 // pred_check
          %p237 = pneg %p106
        $region22: #{fno1d_forward.1} parent=11 // pred_check_branch
          %239 = sbr.rel (%p237) target = $region24
        $region23: #{fno1d_forward.1} parent=11 // pred_region
          _
        $region24: #{fno1d_forward.1} parent=11 // pred_fallthru
          _
        // Predicated region
        $region25: #{fno1d_forward.1} parent=11 // pred_check
          %p240 = pneg %p127
        $region26: #{fno1d_forward.1} parent=11 // pred_check_branch
          %242 = sbr.rel (%p240) target = $region28
        $region27: #{fno1d_forward.1} parent=11 // pred_region
          _
        $region28: #{fno1d_forward.1} parent=11 // pred_fallthru
          _
        // Predicated region
        $region29: #{fno1d_forward.1} parent=11 // pred_check
          %p243 = pneg %p148
        $region30: #{fno1d_forward.1} parent=11 // pred_check_branch
          %245 = sbr.rel (%p243) target = $region32
        $region31: #{fno1d_forward.1} parent=11 // pred_region
          _
        $region32: #{fno1d_forward.1} parent=11 // pred_fallthru
          _
        // Predicated region
        $region33: #{fno1d_forward.1} parent=11 // pred_check
          %p246 = pneg %p169
        $region34: #{fno1d_forward.1} parent=11 // pred_check_branch
          %248 = sbr.rel (%p246) target = $region36
        $region35: #{fno1d_forward.1} parent=11 // pred_region
          _
        $region36: #{fno1d_forward.1} parent=11 // pred_fallthru
          _
        // Predicated region
        $region37: #{fno1d_forward.1} parent=11 // pred_check
          %p249 = pneg %p190
        $region38: #{fno1d_forward.1} parent=11 // pred_check_branch
          %251 = sbr.rel (%p249) target = $region40
        $region39: #{fno1d_forward.1} parent=11 // pred_region
          _
        $region40: #{fno1d_forward.1} parent=11 // pred_fallthru
          _
      $region12: #{fno1d_forward.1} parent=5 // pred_fallthru
        _
      %p252 = scmp.lt.s32.totalorder %s17, 2
      // Predicated region
      $region41: #{fno1d_forward.1} parent=5 // pred_check
        %p253 = pneg %p252
      $region42: #{fno1d_forward.1} parent=5 // pred_check_branch
        %255 = sbr.rel (%p253) target = $region44
      $region43: #{fno1d_forward.1} parent=5 // pred_region
        // Predicated region
        $region45: #{fno1d_forward.1} parent=43 // pred_check
          %p256 = pneg %p37
        $region46: #{fno1d_forward.1} parent=43 // pred_check_branch
          %258 = sbr.rel (%p256) target = $region48
        $region47: #{fno1d_forward.1} parent=43 // pred_region
          %p259 = scmp.lt.s32.totalorder %s17, 1
          %s260 = scalar_select %p259, %s17, 1
          %s261 = smul.addr %s260, 4
          %s262 = scalar_lea.vmem %s0, %s261
        $region48: #{fno1d_forward.1} parent=43 // pred_fallthru
          _
      $region44: #{fno1d_forward.1} parent=5 // pred_fallthru
        _
      %p263 = scmp.le.s32.totalorder 1, %s17
      %p264 = scmp.lt.s32.totalorder %s17, 3
      %p265 = pnand %p263, %p264
      %p266 = pneg %p265
      // Predicated region
      $region49: #{fno1d_forward.1} parent=5 // pred_check
        _
      $region50: #{fno1d_forward.1} parent=5 // pred_check_branch
        %268 = sbr.rel (%p265) target = $region52
      $region51: #{fno1d_forward.1} parent=5 // pred_region
        %s269 = ssub.s32 %s17, 1
        %p270 = scmp.lt.s32.totalorder %s22, 1
        %s271 = scalar_select %p270, %s22, 1
        %s272 = smul.addr %s271, 4
        %s273 = scalar_lea.vmem %s0, %s272
        %p274 = pneg %p43
        %p275 = pneg %p40
        %p276 = pneg %p64
        %p277 = pneg %p61
        %p278 = pneg %p85
        %p279 = pneg %p82
        %p280 = pneg %p106
        %p281 = pneg %p103
        %p282 = pneg %p127
        %p283 = pneg %p124
        %p284 = pneg %p148
        %p285 = pneg %p145
        %p286 = pneg %p169
        %p287 = pneg %p166
        %p288 = pneg %p190
        %p289 = pneg %p187
        %p290 = pneg %p216
        %p291 = pneg %p213
        %s292 = sand.u32 %s203, 1
        %s293 = scalar_lea.sflag [#allocation3], %s292
        %s294 = sand.u32 %s203, 1
        %s295 = scalar_lea.vmem [#allocation2], %s294
        %p296 = scmp.lt.s32.totalorder %s22, 1
        %s297 = scalar_select %p296, %s22, 1
        %s298 = smul.addr %s297, 4
        %s299 = scalar_lea.vmem %s0, %s298
        %v300 = vld [vmem:[%s4] sm:$0xff]
        %v301 = vld [vmem:[%s4 + $0x8] sm:$0xff]
        %v302 = vld [vmem:[%s5] sm:$0xff]
        %v303 = vld [vmem:[%s5 + $0x8] sm:$0xff]
        %v304 = vld [vmem:[%s1] sm:$0xff]
        %v305 = vld [vmem:[%s1 + $0x8] sm:$0xff]
        %v306 = vld [vmem:[%s1 + $0x10] sm:$0xff]
        %v307 = vld [vmem:[%s1 + $0x18] sm:$0xff]
        %v308 = vld [vmem:[%s299] sm:$0x7]
        %vm309 = vcmask 23552
        %v311 = vsel %vm309, %v304, 0
        %v314 = vsel %vm309, %v305, 0
        %v317 = vsel %vm309, %v306, 0
        %v320 = vsel %vm309, %v307, 0
        %vm322 = vcmask 1042432
        %v324 = vsel %vm322, %v308, 0
        %326 = vmatprep.subr.mxu0 0.0
        %327 = vmatpush1.msra.mxu0 0.0
        %328 = vmatprep.subr.mxu0 0.0
        %329 = vmatpush1.msra.mxu0 0.0
        %330 = vmatprep.subr.mxu0 0.0
        %331 = vmatpush1.msra.mxu0 0.0
        %332 = vmatprep.subr.mxu0 0.0
        %333 = vmatpush1.msra.mxu0 0.0
        %334 = vmatprep.subr.mxu0 0.0
        %335 = vmatpush1.msra.mxu0 0.0
        %336 = vmatprep.subr.mxu0 0.0
        %337 = vmatpush1.msra.mxu0 0.0
        %338 = vmatprep.subr.mxu0 0.0
        %339 = vmatpush1.msra.mxu0 0.0
        %340 = vmatprep.subr.mxu0 0.0
        %341 = vmatpush1.msra.mxu0 0.0
        %342 = vmatprep.subr.mxu0 0.0
        %343 = vmatpush1.msra.mxu0 0.0
        %344 = vmatprep.subr.mxu0 0.0
        %345 = vmatpush1.msra.mxu0 0.0
        %346 = vmatprep.subr.mxu0 0.0
        %347 = vmatpush1.msra.mxu0 0.0
        %348 = vmatprep.subr.mxu0 0.0
        %349 = vmatpush1.msra.mxu0 0.0
        %350 = vmatprep.subr.mxu0 0.0
        %351 = vmatpush1.msra.mxu0 0.0
        %352 = vmatprep.subr.mxu0 0.0
        %353 = vmatpush1.msra.mxu0 0.0
        %354 = vmatprep.subr.mxu0 0.0
        %355 = vmatpush1.msra.mxu0 0.0
        %356 = vmatprep.subr.mxu0 0.0
        %357 = vmatpush1.msra.mxu0 %v324
        %358 = vmatprep.subr.mxu0 0.0
        %359 = vmatpush2.msra.mxu0 0.0
        %360 = vmatprep.subr.mxu0 0.0
        %361 = vmatpush2.msra.mxu0 0.0
        %362 = vmatprep.subr.mxu0 0.0
        %363 = vmatpush2.msra.mxu0 0.0
        %364 = vmatprep.subr.mxu0 0.0
        %365 = vmatpush2.msra.mxu0 0.0
        %366 = vmatprep.subr.mxu0 0.0
        %367 = vmatpush2.msra.mxu0 0.0
        %368 = vmatprep.subr.mxu0 0.0
        %369 = vmatpush2.msra.mxu0 0.0
        %370 = vmatprep.subr.mxu0 0.0
        %371 = vmatpush2.msra.mxu0 0.0
        %372 = vmatprep.subr.mxu0 0.0
        %373 = vmatpush2.msra.mxu0 0.0
        %374 = vmatprep.subr.mxu0 0.0
        %375 = vmatpush2.msra.mxu0 0.0
        %376 = vmatprep.subr.mxu0 0.0
        %377 = vmatpush2.msra.mxu0 0.0
        %378 = vmatprep.subr.mxu0 0.0
        %379 = vmatpush2.msra.mxu0 0.0
        %380 = vmatprep.subr.mxu0 0.0
        %381 = vmatpush2.msra.mxu0 0.0
        %382 = vmatprep.subr.mxu0 0.0
        %383 = vmatpush2.msra.mxu0 0.0
        %384 = vmatprep.subr.mxu0 0.0
        %385 = vmatpush2.msra.mxu0 0.0
        %386 = vmatprep.subr.mxu0 0.0
        %387 = vmatpush2.msra.mxu0 0.0
        %388 = vmatprep.subr.mxu0 0.0
        %389 = vmatpush2.msra.mxu0 0.0
        %390 = vmatprep.mubr.f32.mxu0 0.0
        %391 = vmatmul.mubr.f32.gmra.mxu0 %v311
        %v392 = vpop.f32.mrf.mxu0
        %v393 = vadd.f32 0.0, %v392
        %v394 = vpop.f32.mrf.mxu0
        %395 = vmatprep.mubr.f32.mxu0 0.0
        %396 = vmatmul.mubr.f32.gmra.mxu0 %v314
        %v397 = vpop.f32.mrf.mxu0
        %v398 = vadd.f32 0.0, %v397
        %v399 = vpop.f32.mrf.mxu0
        %400 = vmatprep.mubr.f32.mxu0 0.0
        %401 = vmatmul.mubr.f32.gmra.mxu0 %v317
        %v402 = vpop.f32.mrf.mxu0
        %v403 = vadd.f32 0.0, %v402
        %v404 = vpop.f32.mrf.mxu0
        %405 = vmatprep.mubr.f32.mxu0 0.0
        %406 = vmatmul.mubr.f32.gmra.mxu0 %v320
        %v407 = vpop.f32.mrf.mxu0
        %v408 = vadd.f32 0.0, %v407
        %v409 = vpop.f32.mrf.mxu0
        %410 = vdwg.mxu0
        %v411 = vld [vmem:[%s2] sm:$0xff]
        %v412 = vld [vmem:[%s2 + $0x8] sm:$0xff]
        %v413 = vld [vmem:[%s2 + $0x10] sm:$0xff]
        %v414 = vld [vmem:[%s2 + $0x18] sm:$0xff]
        %v415 = vld [vmem:[%s2 + $0x20] sm:$0xff]
        %v416 = vld [vmem:[%s2 + $0x28] sm:$0xff]
        %v417 = vld [vmem:[%s2 + $0x30] sm:$0xff]
        %v418 = vld [vmem:[%s2 + $0x38] sm:$0xff]
        %v419 = vld [vmem:[%s2 + $0x40] sm:$0xff]
        %v420 = vld [vmem:[%s2 + $0x48] sm:$0xff]
        %v421 = vld [vmem:[%s2 + $0x50] sm:$0xff]
        %v422 = vld [vmem:[%s2 + $0x58] sm:$0xff]
        %v423 = vld [vmem:[%s2 + $0x60] sm:$0xff]
        %v424 = vld [vmem:[%s2 + $0x68] sm:$0xff]
        %v425 = vld [vmem:[%s2 + $0x70] sm:$0xff]
        %v426 = vld [vmem:[%s2 + $0x78] sm:$0xff]
        %v427 = vld [vmem:[%s2 + $0x80] sm:$0xff]
        %v428 = vld [vmem:[%s2 + $0x88] sm:$0xff]
        %v429 = vld [vmem:[%s2 + $0x90] sm:$0xff]
        %v430 = vld [vmem:[%s2 + $0x98] sm:$0xff]
        %v431 = vld [vmem:[%s2 + $0xa0] sm:$0xff]
        %v432 = vld [vmem:[%s2 + $0xa8] sm:$0xff]
        %v433 = vld [vmem:[%s2 + $0xb0] sm:$0xff]
        %v434 = vld [vmem:[%s2 + $0xb8] sm:$0xff]
        %v435 = vld [vmem:[%s2 + $0xc0] sm:$0xff]
        %v436 = vld [vmem:[%s2 + $0xc8] sm:$0xff]
        %v437 = vld [vmem:[%s2 + $0xd0] sm:$0xff]
        %v438 = vld [vmem:[%s2 + $0xd8] sm:$0xff]
        %v439 = vld [vmem:[%s2 + $0xe0] sm:$0xff]
        %v440 = vld [vmem:[%s2 + $0xe8] sm:$0xff]
        %v441 = vld [vmem:[%s2 + $0xf0] sm:$0xff]
        %v442 = vld [vmem:[%s2 + $0xf8] sm:$0xff]
        %v443 = vld [vmem:[%s2 + $0x100] sm:$0xff]
        %v444 = vld [vmem:[%s2 + $0x108] sm:$0xff]
        %v445 = vld [vmem:[%s2 + $0x110] sm:$0xff]
        %v446 = vld [vmem:[%s2 + $0x118] sm:$0xff]
        %v447 = vld [vmem:[%s2 + $0x120] sm:$0xff]
        %v448 = vld [vmem:[%s2 + $0x128] sm:$0xff]
        %v449 = vld [vmem:[%s2 + $0x130] sm:$0xff]
        %v450 = vld [vmem:[%s2 + $0x138] sm:$0xff]
        %v451 = vld [vmem:[%s2 + $0x140] sm:$0xff]
        %v452 = vld [vmem:[%s2 + $0x148] sm:$0xff]
        %v453 = vld [vmem:[%s2 + $0x150] sm:$0xff]
        %v454 = vld [vmem:[%s2 + $0x158] sm:$0xff]
        %v455 = vld [vmem:[%s2 + $0x160] sm:$0xff]
        %v456 = vld [vmem:[%s2 + $0x168] sm:$0xff]
        %v457 = vld [vmem:[%s2 + $0x170] sm:$0xff]
        %v458 = vld [vmem:[%s2 + $0x178] sm:$0xff]
        %v459 = vld [vmem:[%s2 + $0x180] sm:$0xff]
        %v460 = vld [vmem:[%s2 + $0x188] sm:$0xff]
        %v461 = vld [vmem:[%s2 + $0x190] sm:$0xff]
        %v462 = vld [vmem:[%s2 + $0x198] sm:$0xff]
        %v463 = vld [vmem:[%s2 + $0x1a0] sm:$0xff]
        %v464 = vld [vmem:[%s2 + $0x1a8] sm:$0xff]
        %v465 = vld [vmem:[%s2 + $0x1b0] sm:$0xff]
        %v466 = vld [vmem:[%s2 + $0x1b8] sm:$0xff]
        %v467 = vld [vmem:[%s2 + $0x1c0] sm:$0xff]
        %v468 = vld [vmem:[%s2 + $0x1c8] sm:$0xff]
        %v469 = vld [vmem:[%s2 + $0x1d0] sm:$0xff]
        %v470 = vld [vmem:[%s2 + $0x1d8] sm:$0xff]
        %v471 = vld [vmem:[%s2 + $0x1e0] sm:$0xff]
        %v472 = vld [vmem:[%s2 + $0x1e8] sm:$0xff]
        %v473 = vld [vmem:[%s2 + $0x1f0] sm:$0xff]
        %v474 = vld [vmem:[%s2 + $0x1f8] sm:$0xff]
        %v475 = vld [vmem:[%s3] sm:$0xff]
        %v476 = vld [vmem:[%s3 + $0x8] sm:$0xff]
        %v477 = vld [vmem:[%s3 + $0x10] sm:$0xff]
        %v478 = vld [vmem:[%s3 + $0x18] sm:$0xff]
        %vm479 = vcmask 130048
        %v481 = vsel %vm479, %v300, 0
        %v484 = vsel %vm479, %v301, 0
        %v487 = vsel %vm479, %v393, 0
        %v490 = vsel %vm479, %v398, 0
        %v493 = vsel %vm479, %v403, 0
        %v496 = vsel %vm479, %v408, 0
        %498 = vmatprep.subr.mxu0 0.0
        %499 = vmatpush1.xpose.msra.mxu0 0.0
        %500 = vmatprep.subr.mxu0 0.0
        %501 = vmatpush1.xpose.msra.mxu0 0.0
        %502 = vmatprep.subr.mxu0 0.0
        %503 = vmatpush1.xpose.msra.mxu0 0.0
        %504 = vmatprep.subr.mxu0 0.0
        %505 = vmatpush1.xpose.msra.mxu0 0.0
        %506 = vmatprep.subr.mxu0 0.0
        %507 = vmatpush1.xpose.msra.mxu0 0.0
        %508 = vmatprep.subr.mxu0 0.0
        %509 = vmatpush1.xpose.msra.mxu0 0.0
        %510 = vmatprep.subr.mxu0 0.0
        %511 = vmatpush1.xpose.msra.mxu0 0.0
        %512 = vmatprep.subr.mxu0 0.0
        %513 = vmatpush1.xpose.msra.mxu0 0.0
        %514 = vmatprep.subr.mxu0 0.0
        %515 = vmatpush1.xpose.msra.mxu0 0.0
        %516 = vmatprep.subr.mxu0 0.0
        %517 = vmatpush1.xpose.msra.mxu0 0.0
        %518 = vmatprep.subr.mxu0 0.0
        %519 = vmatpush1.xpose.msra.mxu0 0.0
        %520 = vmatprep.subr.mxu0 0.0
        %521 = vmatpush1.xpose.msra.mxu0 0.0
        %522 = vmatprep.subr.mxu0 0.0
        %523 = vmatpush1.xpose.msra.mxu0 %v496
        %524 = vmatprep.subr.mxu0 0.0
        %525 = vmatpush1.xpose.msra.mxu0 %v493
        %526 = vmatprep.subr.mxu0 0.0
        %527 = vmatpush1.xpose.msra.mxu0 %v490
        %528 = vmatprep.subr.mxu0 0.0
        %529 = vmatpush1.xpose.msra.mxu0 %v487
        %530 = vmatprep.subr.mxu0 0.0
        %531 = vmatpush2.xpose.msra.mxu0 0.0
        %532 = vmatprep.subr.mxu0 0.0
        %533 = vmatpush2.xpose.msra.mxu0 0.0
        %534 = vmatprep.subr.mxu0 0.0
        %535 = vmatpush2.xpose.msra.mxu0 0.0
        %536 = vmatprep.subr.mxu0 0.0
        %537 = vmatpush2.xpose.msra.mxu0 0.0
        %538 = vmatprep.subr.mxu0 0.0
        %539 = vmatpush2.xpose.msra.mxu0 0.0
        %540 = vmatprep.subr.mxu0 0.0
        %541 = vmatpush2.xpose.msra.mxu0 0.0
        %542 = vmatprep.subr.mxu0 0.0
        %543 = vmatpush2.xpose.msra.mxu0 0.0
        %544 = vmatprep.subr.mxu0 0.0
        %545 = vmatpush2.xpose.msra.mxu0 0.0
        %546 = vmatprep.subr.mxu0 0.0
        %547 = vmatpush2.xpose.msra.mxu0 0.0
        %548 = vmatprep.subr.mxu0 0.0
        %549 = vmatpush2.xpose.msra.mxu0 0.0
        %550 = vmatprep.subr.mxu0 0.0
        %551 = vmatpush2.xpose.msra.mxu0 0.0
        %552 = vmatprep.subr.mxu0 0.0
        %553 = vmatpush2.xpose.msra.mxu0 0.0
        %554 = vmatprep.subr.mxu0 0.0
        %555 = vmatpush2.xpose.msra.mxu0 0.0
        %556 = vmatprep.subr.mxu0 0.0
        %557 = vmatpush2.xpose.msra.mxu0 0.0
        %558 = vmatprep.subr.mxu0 0.0
        %559 = vmatpush2.xpose.msra.mxu0 0.0
        %560 = vmatprep.subr.mxu0 0.0
        %561 = vmatpush2.xpose.msra.mxu0 0.0
        %562 = vmatprep.mubr.f32.mxu0 0.0
        %563 = vmatmul.mubr.f32.gmra.mxu0 %v481
        %v564 = vpop.f32.mrf.mxu0
        %v565 = vadd.f32 0.0, %v564
        %v566 = vpop.f32.mrf.mxu0
        %567 = vmatprep.mubr.f32.mxu0 0.0
        %568 = vmatmul.mubr.f32.gmra.mxu0 %v484
        %v569 = vpop.f32.mrf.mxu0
        %v570 = vadd.f32 0.0, %v569
        %v571 = vpop.f32.mrf.mxu0
        %572 = vdwg.mxu0
        %v575 = vcombine.high %v565, %v565
        %v577 = vunpack.c.l.s4 1966171168
        %v578 = vunpack.c.0.s8 %v577
        %v579 = vlaneseq
        %v580 = vshrl.u32 %v579, 7
        %v581 = vsub.s32 %v578, %v580
        %v582 = vrot.slane %v565, %v581
        %v584 = vunpack.c.l.s4 1966171168
        %v585 = vunpack.c.0.s8 %v584
        %v586 = vlaneseq
        %v587 = vshrl.u32 %v586, 7
        %v588 = vsub.s32 %v585, %v587
        %v589 = vrot.slane %v575, %v588
        %v590 = vcombine.high %v582, %v582
        %v591 = vcombine.high %v589, %v589
        %v593 = vunpack.c.l.s4 1966171168
        %v594 = vunpack.c.0.s8 %v593
        %v595 = vlaneseq
        %v596 = vshrl.u32 %v595, 7
        %v597 = vsub.s32 %v594, %v596
        %v598 = vrot.slane %v582, %v597
        %v600 = vunpack.c.l.s4 1966171168
        %v601 = vunpack.c.0.s8 %v600
        %v602 = vlaneseq
        %v603 = vshrl.u32 %v602, 7
        %v604 = vsub.s32 %v601, %v603
        %v605 = vrot.slane %v589, %v604
        %v607 = vunpack.c.l.s4 1966171168
        %v608 = vunpack.c.0.s8 %v607
        %v609 = vlaneseq
        %v610 = vshrl.u32 %v609, 7
        %v611 = vsub.s32 %v608, %v610
        %v612 = vrot.slane %v590, %v611
        %v614 = vunpack.c.l.s4 1966171168
        %v615 = vunpack.c.0.s8 %v614
        %v616 = vlaneseq
        %v617 = vshrl.u32 %v616, 7
        %v618 = vsub.s32 %v615, %v617
        %v619 = vrot.slane %v591, %v618
        %v620 = vcombine.high %v598, %v598
        %v621 = vcombine.high %v605, %v605
        %v622 = vcombine.high %v612, %v612
        %v623 = vcombine.high %v619, %v619
        %v624 = vcombine.high %v570, %v570
        %v626 = vunpack.c.l.s4 1966171168
        %v627 = vunpack.c.0.s8 %v626
        %v628 = vlaneseq
        %v629 = vshrl.u32 %v628, 7
        %v630 = vsub.s32 %v627, %v629
        %v631 = vrot.slane %v570, %v630
        %v633 = vunpack.c.l.s4 1966171168
        %v634 = vunpack.c.0.s8 %v633
        %v635 = vlaneseq
        %v636 = vshrl.u32 %v635, 7
        %v637 = vsub.s32 %v634, %v636
        %v638 = vrot.slane %v624, %v637
        %v639 = vcombine.high %v631, %v631
        %v640 = vcombine.high %v638, %v638
        %v642 = vunpack.c.l.s4 1966171168
        %v643 = vunpack.c.0.s8 %v642
        %v644 = vlaneseq
        %v645 = vshrl.u32 %v644, 7
        %v646 = vsub.s32 %v643, %v645
        %v647 = vrot.slane %v631, %v646
        %v649 = vunpack.c.l.s4 1966171168
        %v650 = vunpack.c.0.s8 %v649
        %v651 = vlaneseq
        %v652 = vshrl.u32 %v651, 7
        %v653 = vsub.s32 %v650, %v652
        %v654 = vrot.slane %v638, %v653
        %v656 = vunpack.c.l.s4 1966171168
        %v657 = vunpack.c.0.s8 %v656
        %v658 = vlaneseq
        %v659 = vshrl.u32 %v658, 7
        %v660 = vsub.s32 %v657, %v659
        %v661 = vrot.slane %v639, %v660
        %v663 = vunpack.c.l.s4 1966171168
        %v664 = vunpack.c.0.s8 %v663
        %v665 = vlaneseq
        %v666 = vshrl.u32 %v665, 7
        %v667 = vsub.s32 %v664, %v666
        %v668 = vrot.slane %v640, %v667
        %v669 = vcombine.high %v647, %v647
        %v670 = vcombine.high %v654, %v654
        %v671 = vcombine.high %v661, %v661
        %v672 = vcombine.high %v668, %v668
        %v681 = vlaneseq
        %v682 = vshrl.u32 %v681, 7
        %v683 = vsub.s32 0, %v682
        %v684 = vrot.slane %v647, %v683
        %v685 = vlaneseq
        %v686 = vshrl.u32 %v685, 7
        %v687 = vsub.s32 0, %v686
        %v688 = vrot.slane %v661, %v687
        %v689 = vlaneseq
        %v690 = vshrl.u32 %v689, 7
        %v691 = vsub.s32 0, %v690
        %v692 = vrot.slane %v669, %v691
        %v693 = vlaneseq
        %v694 = vshrl.u32 %v693, 7
        %v695 = vsub.s32 0, %v694
        %v696 = vrot.slane %v671, %v695
        %v697 = vlaneseq
        %v698 = vshrl.u32 %v697, 7
        %v699 = vsub.s32 0, %v698
        %v700 = vrot.slane %v654, %v699
        %v701 = vlaneseq
        %v702 = vshrl.u32 %v701, 7
        %v703 = vsub.s32 0, %v702
        %v704 = vrot.slane %v668, %v703
        %v705 = vlaneseq
        %v706 = vshrl.u32 %v705, 7
        %v707 = vsub.s32 0, %v706
        %v708 = vrot.slane %v670, %v707
        %v709 = vlaneseq
        %v710 = vshrl.u32 %v709, 7
        %v711 = vsub.s32 0, %v710
        %v712 = vrot.slane %v672, %v711
        %713 = vrot.lane.b32.xlu0 %v684, 32
        %v714 = vpop.permute.xlu0 %713
        %715 = vrot.lane.b32.xlu0 %v688, 32
        %v716 = vpop.permute.xlu0 %715
        %717 = vrot.lane.b32.xlu0 %v692, 32
        %v718 = vpop.permute.xlu0 %717
        %719 = vrot.lane.b32.xlu0 %v696, 32
        %v720 = vpop.permute.xlu0 %719
        %721 = vrot.lane.b32.xlu0 %v700, 32
        %v722 = vpop.permute.xlu0 %721
        %723 = vrot.lane.b32.xlu0 %v704, 32
        %v724 = vpop.permute.xlu0 %723
        %725 = vrot.lane.b32.xlu0 %v708, 32
        %v726 = vpop.permute.xlu0 %725
        %727 = vrot.lane.b32.xlu0 %v712, 32
        %v728 = vpop.permute.xlu0 %727
        %vm737 = vcmask 261120
        %v738 = vsel %vm737, %v598, %v714
        %v739 = vsel %vm737, %v612, %v716
        %v740 = vsel %vm737, %v620, %v718
        %v741 = vsel %vm737, %v622, %v720
        %v742 = vsel %vm737, %v605, %v722
        %v743 = vsel %vm737, %v619, %v724
        %v744 = vsel %vm737, %v621, %v726
        %v745 = vsel %vm737, %v623, %v728
        %vm746 = vcmask 523264
        %v748 = vsel %vm746, %v738, 0
        %750 = vmatprep.subr.mxu0 0.0
        %751 = vmatpush1.msra.mxu0 0.0
        %752 = vmatprep.subr.mxu0 0.0
        %753 = vmatpush1.msra.mxu0 0.0
        %754 = vmatprep.subr.mxu0 0.0
        %755 = vmatpush1.msra.mxu0 0.0
        %756 = vmatprep.subr.mxu0 0.0
        %757 = vmatpush1.msra.mxu0 0.0
        %758 = vmatprep.subr.mxu0 0.0
        %759 = vmatpush1.msra.mxu0 0.0
        %760 = vmatprep.subr.mxu0 0.0
        %761 = vmatpush1.msra.mxu0 0.0
        %762 = vmatprep.subr.mxu0 0.0
        %763 = vmatpush1.msra.mxu0 0.0
        %764 = vmatprep.subr.mxu0 0.0
        %765 = vmatpush1.msra.mxu0 0.0
        %766 = vmatprep.subr.mxu0 0.0
        %767 = vmatpush1.msra.mxu0 %v418
        %768 = vmatprep.subr.mxu0 0.0
        %769 = vmatpush1.msra.mxu0 %v417
        %770 = vmatprep.subr.mxu0 0.0
        %771 = vmatpush1.msra.mxu0 %v416
        %772 = vmatprep.subr.mxu0 0.0
        %773 = vmatpush1.msra.mxu0 %v415
        %774 = vmatprep.subr.mxu0 0.0
        %775 = vmatpush1.msra.mxu0 %v414
        %776 = vmatprep.subr.mxu0 0.0
        %777 = vmatpush1.msra.mxu0 %v413
        %778 = vmatprep.subr.mxu0 0.0
        %779 = vmatpush1.msra.mxu0 %v412
        %780 = vmatprep.subr.mxu0 0.0
        %781 = vmatpush1.msra.mxu0 %v411
        %782 = vmatprep.subr.mxu0 0.0
        %783 = vmatpush2.msra.mxu0 0.0
        %784 = vmatprep.subr.mxu0 0.0
        %785 = vmatpush2.msra.mxu0 0.0
        %786 = vmatprep.subr.mxu0 0.0
        %787 = vmatpush2.msra.mxu0 0.0
        %788 = vmatprep.subr.mxu0 0.0
        %789 = vmatpush2.msra.mxu0 0.0
        %790 = vmatprep.subr.mxu0 0.0
        %791 = vmatpush2.msra.mxu0 0.0
        %792 = vmatprep.subr.mxu0 0.0
        %793 = vmatpush2.msra.mxu0 0.0
        %794 = vmatprep.subr.mxu0 0.0
        %795 = vmatpush2.msra.mxu0 0.0
        %796 = vmatprep.subr.mxu0 0.0
        %797 = vmatpush2.msra.mxu0 0.0
        %798 = vmatprep.subr.mxu0 0.0
        %799 = vmatpush2.msra.mxu0 0.0
        %800 = vmatprep.subr.mxu0 0.0
        %801 = vmatpush2.msra.mxu0 0.0
        %802 = vmatprep.subr.mxu0 0.0
        %803 = vmatpush2.msra.mxu0 0.0
        %804 = vmatprep.subr.mxu0 0.0
        %805 = vmatpush2.msra.mxu0 0.0
        %806 = vmatprep.subr.mxu0 0.0
        %807 = vmatpush2.msra.mxu0 0.0
        %808 = vmatprep.subr.mxu0 0.0
        %809 = vmatpush2.msra.mxu0 0.0
        %810 = vmatprep.subr.mxu0 0.0
        %811 = vmatpush2.msra.mxu0 0.0
        %812 = vmatprep.subr.mxu0 0.0
        %813 = vmatpush2.msra.mxu0 0.0
        %814 = vmatprep.mubr.f32.mxu0 0.0
        %815 = vmatmul.mubr.f32.gmra.mxu0 %v748
        %v816 = vpop.f32.mrf.mxu0
        %v817 = vadd.f32 0.0, %v816
        %v818 = vpop.f32.mrf.mxu0
        %819 = vdwg.mxu0
        %v821 = vsel %vm746, %v739, 0
        %823 = vmatprep.subr.mxu0 0.0
        %824 = vmatpush1.msra.mxu0 0.0
        %825 = vmatprep.subr.mxu0 0.0
        %826 = vmatpush1.msra.mxu0 0.0
        %827 = vmatprep.subr.mxu0 0.0
        %828 = vmatpush1.msra.mxu0 0.0
        %829 = vmatprep.subr.mxu0 0.0
        %830 = vmatpush1.msra.mxu0 0.0
        %831 = vmatprep.subr.mxu0 0.0
        %832 = vmatpush1.msra.mxu0 0.0
        %833 = vmatprep.subr.mxu0 0.0
        %834 = vmatpush1.msra.mxu0 0.0
        %835 = vmatprep.subr.mxu0 0.0
        %836 = vmatpush1.msra.mxu0 0.0
        %837 = vmatprep.subr.mxu0 0.0
        %838 = vmatpush1.msra.mxu0 0.0
        %839 = vmatprep.subr.mxu0 0.0
        %840 = vmatpush1.msra.mxu0 %v426
        %841 = vmatprep.subr.mxu0 0.0
        %842 = vmatpush1.msra.mxu0 %v425
        %843 = vmatprep.subr.mxu0 0.0
        %844 = vmatpush1.msra.mxu0 %v424
        %845 = vmatprep.subr.mxu0 0.0
        %846 = vmatpush1.msra.mxu0 %v423
        %847 = vmatprep.subr.mxu0 0.0
        %848 = vmatpush1.msra.mxu0 %v422
        %849 = vmatprep.subr.mxu0 0.0
        %850 = vmatpush1.msra.mxu0 %v421
        %851 = vmatprep.subr.mxu0 0.0
        %852 = vmatpush1.msra.mxu0 %v420
        %853 = vmatprep.subr.mxu0 0.0
        %854 = vmatpush1.msra.mxu0 %v419
        %855 = vmatprep.subr.mxu0 0.0
        %856 = vmatpush2.msra.mxu0 0.0
        %857 = vmatprep.subr.mxu0 0.0
        %858 = vmatpush2.msra.mxu0 0.0
        %859 = vmatprep.subr.mxu0 0.0
        %860 = vmatpush2.msra.mxu0 0.0
        %861 = vmatprep.subr.mxu0 0.0
        %862 = vmatpush2.msra.mxu0 0.0
        %863 = vmatprep.subr.mxu0 0.0
        %864 = vmatpush2.msra.mxu0 0.0
        %865 = vmatprep.subr.mxu0 0.0
        %866 = vmatpush2.msra.mxu0 0.0
        %867 = vmatprep.subr.mxu0 0.0
        %868 = vmatpush2.msra.mxu0 0.0
        %869 = vmatprep.subr.mxu0 0.0
        %870 = vmatpush2.msra.mxu0 0.0
        %871 = vmatprep.subr.mxu0 0.0
        %872 = vmatpush2.msra.mxu0 0.0
        %873 = vmatprep.subr.mxu0 0.0
        %874 = vmatpush2.msra.mxu0 0.0
        %875 = vmatprep.subr.mxu0 0.0
        %876 = vmatpush2.msra.mxu0 0.0
        %877 = vmatprep.subr.mxu0 0.0
        %878 = vmatpush2.msra.mxu0 0.0
        %879 = vmatprep.subr.mxu0 0.0
        %880 = vmatpush2.msra.mxu0 0.0
        %881 = vmatprep.subr.mxu0 0.0
        %882 = vmatpush2.msra.mxu0 0.0
        %883 = vmatprep.subr.mxu0 0.0
        %884 = vmatpush2.msra.mxu0 0.0
        %885 = vmatprep.subr.mxu0 0.0
        %886 = vmatpush2.msra.mxu0 0.0
        %887 = vmatprep.mubr.f32.mxu0 0.0
        %888 = vmatmul.mubr.f32.gmra.mxu0 %v821
        %v889 = vpop.f32.mrf.mxu0
        %v890 = vadd.f32 0.0, %v889
        %v891 = vpop.f32.mrf.mxu0
        %892 = vdwg.mxu0
        %v894 = vsel %vm746, %v740, 0
        %896 = vmatprep.subr.mxu0 0.0
        %897 = vmatpush1.msra.mxu0 0.0
        %898 = vmatprep.subr.mxu0 0.0
        %899 = vmatpush1.msra.mxu0 0.0
        %900 = vmatprep.subr.mxu0 0.0
        %901 = vmatpush1.msra.mxu0 0.0
        %902 = vmatprep.subr.mxu0 0.0
        %903 = vmatpush1.msra.mxu0 0.0
        %904 = vmatprep.subr.mxu0 0.0
        %905 = vmatpush1.msra.mxu0 0.0
        %906 = vmatprep.subr.mxu0 0.0
        %907 = vmatpush1.msra.mxu0 0.0
        %908 = vmatprep.subr.mxu0 0.0
        %909 = vmatpush1.msra.mxu0 0.0
        %910 = vmatprep.subr.mxu0 0.0
        %911 = vmatpush1.msra.mxu0 0.0
        %912 = vmatprep.subr.mxu0 0.0
        %913 = vmatpush1.msra.mxu0 %v434
        %914 = vmatprep.subr.mxu0 0.0
        %915 = vmatpush1.msra.mxu0 %v433
        %916 = vmatprep.subr.mxu0 0.0
        %917 = vmatpush1.msra.mxu0 %v432
        %918 = vmatprep.subr.mxu0 0.0
        %919 = vmatpush1.msra.mxu0 %v431
        %920 = vmatprep.subr.mxu0 0.0
        %921 = vmatpush1.msra.mxu0 %v430
        %922 = vmatprep.subr.mxu0 0.0
        %923 = vmatpush1.msra.mxu0 %v429
        %924 = vmatprep.subr.mxu0 0.0
        %925 = vmatpush1.msra.mxu0 %v428
        %926 = vmatprep.subr.mxu0 0.0
        %927 = vmatpush1.msra.mxu0 %v427
        %928 = vmatprep.subr.mxu0 0.0
        %929 = vmatpush2.msra.mxu0 0.0
        %930 = vmatprep.subr.mxu0 0.0
        %931 = vmatpush2.msra.mxu0 0.0
        %932 = vmatprep.subr.mxu0 0.0
        %933 = vmatpush2.msra.mxu0 0.0
        %934 = vmatprep.subr.mxu0 0.0
        %935 = vmatpush2.msra.mxu0 0.0
        %936 = vmatprep.subr.mxu0 0.0
        %937 = vmatpush2.msra.mxu0 0.0
        %938 = vmatprep.subr.mxu0 0.0
        %939 = vmatpush2.msra.mxu0 0.0
        %940 = vmatprep.subr.mxu0 0.0
        %941 = vmatpush2.msra.mxu0 0.0
        %942 = vmatprep.subr.mxu0 0.0
        %943 = vmatpush2.msra.mxu0 0.0
        %944 = vmatprep.subr.mxu0 0.0
        %945 = vmatpush2.msra.mxu0 0.0
        %946 = vmatprep.subr.mxu0 0.0
        %947 = vmatpush2.msra.mxu0 0.0
        %948 = vmatprep.subr.mxu0 0.0
        %949 = vmatpush2.msra.mxu0 0.0
        %950 = vmatprep.subr.mxu0 0.0
        %951 = vmatpush2.msra.mxu0 0.0
        %952 = vmatprep.subr.mxu0 0.0
        %953 = vmatpush2.msra.mxu0 0.0
        %954 = vmatprep.subr.mxu0 0.0
        %955 = vmatpush2.msra.mxu0 0.0
        %956 = vmatprep.subr.mxu0 0.0
        %957 = vmatpush2.msra.mxu0 0.0
        %958 = vmatprep.subr.mxu0 0.0
        %959 = vmatpush2.msra.mxu0 0.0
        %960 = vmatprep.mubr.f32.mxu0 0.0
        %961 = vmatmul.mubr.f32.gmra.mxu0 %v894
        %v962 = vpop.f32.mrf.mxu0
        %v963 = vadd.f32 0.0, %v962
        %v964 = vpop.f32.mrf.mxu0
        %965 = vdwg.mxu0
        %v967 = vsel %vm746, %v741, 0
        %969 = vmatprep.subr.mxu0 0.0
        %970 = vmatpush1.msra.mxu0 0.0
        %971 = vmatprep.subr.mxu0 0.0
        %972 = vmatpush1.msra.mxu0 0.0
        %973 = vmatprep.subr.mxu0 0.0
        %974 = vmatpush1.msra.mxu0 0.0
        %975 = vmatprep.subr.mxu0 0.0
        %976 = vmatpush1.msra.mxu0 0.0
        %977 = vmatprep.subr.mxu0 0.0
        %978 = vmatpush1.msra.mxu0 0.0
        %979 = vmatprep.subr.mxu0 0.0
        %980 = vmatpush1.msra.mxu0 0.0
        %981 = vmatprep.subr.mxu0 0.0
        %982 = vmatpush1.msra.mxu0 0.0
        %983 = vmatprep.subr.mxu0 0.0
        %984 = vmatpush1.msra.mxu0 0.0
        %985 = vmatprep.subr.mxu0 0.0
        %986 = vmatpush1.msra.mxu0 %v442
        %987 = vmatprep.subr.mxu0 0.0
        %988 = vmatpush1.msra.mxu0 %v441
        %989 = vmatprep.subr.mxu0 0.0
        %990 = vmatpush1.msra.mxu0 %v440
        %991 = vmatprep.subr.mxu0 0.0
        %992 = vmatpush1.msra.mxu0 %v439
        %993 = vmatprep.subr.mxu0 0.0
        %994 = vmatpush1.msra.mxu0 %v438
        %995 = vmatprep.subr.mxu0 0.0
        %996 = vmatpush1.msra.mxu0 %v437
        %997 = vmatprep.subr.mxu0 0.0
        %998 = vmatpush1.msra.mxu0 %v436
        %999 = vmatprep.subr.mxu0 0.0
        %1000 = vmatpush1.msra.mxu0 %v435
        %1001 = vmatprep.subr.mxu0 0.0
        %1002 = vmatpush2.msra.mxu0 0.0
        %1003 = vmatprep.subr.mxu0 0.0
        %1004 = vmatpush2.msra.mxu0 0.0
        %1005 = vmatprep.subr.mxu0 0.0
        %1006 = vmatpush2.msra.mxu0 0.0
        %1007 = vmatprep.subr.mxu0 0.0
        %1008 = vmatpush2.msra.mxu0 0.0
        %1009 = vmatprep.subr.mxu0 0.0
        %1010 = vmatpush2.msra.mxu0 0.0
        %1011 = vmatprep.subr.mxu0 0.0
        %1012 = vmatpush2.msra.mxu0 0.0
        %1013 = vmatprep.subr.mxu0 0.0
        %1014 = vmatpush2.msra.mxu0 0.0
        %1015 = vmatprep.subr.mxu0 0.0
        %1016 = vmatpush2.msra.mxu0 0.0
        %1017 = vmatprep.subr.mxu0 0.0
        %1018 = vmatpush2.msra.mxu0 0.0
        %1019 = vmatprep.subr.mxu0 0.0
        %1020 = vmatpush2.msra.mxu0 0.0
        %1021 = vmatprep.subr.mxu0 0.0
        %1022 = vmatpush2.msra.mxu0 0.0
        %1023 = vmatprep.subr.mxu0 0.0
        %1024 = vmatpush2.msra.mxu0 0.0
        %1025 = vmatprep.subr.mxu0 0.0
        %1026 = vmatpush2.msra.mxu0 0.0
        %1027 = vmatprep.subr.mxu0 0.0
        %1028 = vmatpush2.msra.mxu0 0.0
        %1029 = vmatprep.subr.mxu0 0.0
        %1030 = vmatpush2.msra.mxu0 0.0
        %1031 = vmatprep.subr.mxu0 0.0
        %1032 = vmatpush2.msra.mxu0 0.0
        %1033 = vmatprep.mubr.f32.mxu0 0.0
        %1034 = vmatmul.mubr.f32.gmra.mxu0 %v967
        %v1035 = vpop.f32.mrf.mxu0
        %v1036 = vadd.f32 0.0, %v1035
        %v1037 = vpop.f32.mrf.mxu0
        %1038 = vdwg.mxu0
        %v1040 = vsel %vm746, %v742, 0
        %1042 = vmatprep.subr.mxu0 0.0
        %1043 = vmatpush1.msra.mxu0 0.0
        %1044 = vmatprep.subr.mxu0 0.0
        %1045 = vmatpush1.msra.mxu0 0.0
        %1046 = vmatprep.subr.mxu0 0.0
        %1047 = vmatpush1.msra.mxu0 0.0
        %1048 = vmatprep.subr.mxu0 0.0
        %1049 = vmatpush1.msra.mxu0 0.0
        %1050 = vmatprep.subr.mxu0 0.0
        %1051 = vmatpush1.msra.mxu0 0.0
        %1052 = vmatprep.subr.mxu0 0.0
        %1053 = vmatpush1.msra.mxu0 0.0
        %1054 = vmatprep.subr.mxu0 0.0
        %1055 = vmatpush1.msra.mxu0 0.0
        %1056 = vmatprep.subr.mxu0 0.0
        %1057 = vmatpush1.msra.mxu0 0.0
        %1058 = vmatprep.subr.mxu0 0.0
        %1059 = vmatpush1.msra.mxu0 %v450
        %1060 = vmatprep.subr.mxu0 0.0
        %1061 = vmatpush1.msra.mxu0 %v449
        %1062 = vmatprep.subr.mxu0 0.0
        %1063 = vmatpush1.msra.mxu0 %v448
        %1064 = vmatprep.subr.mxu0 0.0
        %1065 = vmatpush1.msra.mxu0 %v447
        %1066 = vmatprep.subr.mxu0 0.0
        %1067 = vmatpush1.msra.mxu0 %v446
        %1068 = vmatprep.subr.mxu0 0.0
        %1069 = vmatpush1.msra.mxu0 %v445
        %1070 = vmatprep.subr.mxu0 0.0
        %1071 = vmatpush1.msra.mxu0 %v444
        %1072 = vmatprep.subr.mxu0 0.0
        %1073 = vmatpush1.msra.mxu0 %v443
        %1074 = vmatprep.subr.mxu0 0.0
        %1075 = vmatpush2.msra.mxu0 0.0
        %1076 = vmatprep.subr.mxu0 0.0
        %1077 = vmatpush2.msra.mxu0 0.0
        %1078 = vmatprep.subr.mxu0 0.0
        %1079 = vmatpush2.msra.mxu0 0.0
        %1080 = vmatprep.subr.mxu0 0.0
        %1081 = vmatpush2.msra.mxu0 0.0
        %1082 = vmatprep.subr.mxu0 0.0
        %1083 = vmatpush2.msra.mxu0 0.0
        %1084 = vmatprep.subr.mxu0 0.0
        %1085 = vmatpush2.msra.mxu0 0.0
        %1086 = vmatprep.subr.mxu0 0.0
        %1087 = vmatpush2.msra.mxu0 0.0
        %1088 = vmatprep.subr.mxu0 0.0
        %1089 = vmatpush2.msra.mxu0 0.0
        %1090 = vmatprep.subr.mxu0 0.0
        %1091 = vmatpush2.msra.mxu0 0.0
        %1092 = vmatprep.subr.mxu0 0.0
        %1093 = vmatpush2.msra.mxu0 0.0
        %1094 = vmatprep.subr.mxu0 0.0
        %1095 = vmatpush2.msra.mxu0 0.0
        %1096 = vmatprep.subr.mxu0 0.0
        %1097 = vmatpush2.msra.mxu0 0.0
        %1098 = vmatprep.subr.mxu0 0.0
        %1099 = vmatpush2.msra.mxu0 0.0
        %1100 = vmatprep.subr.mxu0 0.0
        %1101 = vmatpush2.msra.mxu0 0.0
        %1102 = vmatprep.subr.mxu0 0.0
        %1103 = vmatpush2.msra.mxu0 0.0
        %1104 = vmatprep.subr.mxu0 0.0
        %1105 = vmatpush2.msra.mxu0 0.0
        %1106 = vmatprep.mubr.f32.mxu0 0.0
        %1107 = vmatmul.mubr.f32.gmra.mxu0 %v1040
        %v1108 = vpop.f32.mrf.mxu0
        %v1109 = vadd.f32 0.0, %v1108
        %v1110 = vpop.f32.mrf.mxu0
        %1111 = vdwg.mxu0
        %v1113 = vsel %vm746, %v743, 0
        %1115 = vmatprep.subr.mxu0 0.0
        %1116 = vmatpush1.msra.mxu0 0.0
        %1117 = vmatprep.subr.mxu0 0.0
        %1118 = vmatpush1.msra.mxu0 0.0
        %1119 = vmatprep.subr.mxu0 0.0
        %1120 = vmatpush1.msra.mxu0 0.0
        %1121 = vmatprep.subr.mxu0 0.0
        %1122 = vmatpush1.msra.mxu0 0.0
        %1123 = vmatprep.subr.mxu0 0.0
        %1124 = vmatpush1.msra.mxu0 0.0
        %1125 = vmatprep.subr.mxu0 0.0
        %1126 = vmatpush1.msra.mxu0 0.0
        %1127 = vmatprep.subr.mxu0 0.0
        %1128 = vmatpush1.msra.mxu0 0.0
        %1129 = vmatprep.subr.mxu0 0.0
        %1130 = vmatpush1.msra.mxu0 0.0
        %1131 = vmatprep.subr.mxu0 0.0
        %1132 = vmatpush1.msra.mxu0 %v458
        %1133 = vmatprep.subr.mxu0 0.0
        %1134 = vmatpush1.msra.mxu0 %v457
        %1135 = vmatprep.subr.mxu0 0.0
        %1136 = vmatpush1.msra.mxu0 %v456
        %1137 = vmatprep.subr.mxu0 0.0
        %1138 = vmatpush1.msra.mxu0 %v455
        %1139 = vmatprep.subr.mxu0 0.0
        %1140 = vmatpush1.msra.mxu0 %v454
        %1141 = vmatprep.subr.mxu0 0.0
        %1142 = vmatpush1.msra.mxu0 %v453
        %1143 = vmatprep.subr.mxu0 0.0
        %1144 = vmatpush1.msra.mxu0 %v452
        %1145 = vmatprep.subr.mxu0 0.0
        %1146 = vmatpush1.msra.mxu0 %v451
        %1147 = vmatprep.subr.mxu0 0.0
        %1148 = vmatpush2.msra.mxu0 0.0
        %1149 = vmatprep.subr.mxu0 0.0
        %1150 = vmatpush2.msra.mxu0 0.0
        %1151 = vmatprep.subr.mxu0 0.0
        %1152 = vmatpush2.msra.mxu0 0.0
        %1153 = vmatprep.subr.mxu0 0.0
        %1154 = vmatpush2.msra.mxu0 0.0
        %1155 = vmatprep.subr.mxu0 0.0
        %1156 = vmatpush2.msra.mxu0 0.0
        %1157 = vmatprep.subr.mxu0 0.0
        %1158 = vmatpush2.msra.mxu0 0.0
        %1159 = vmatprep.subr.mxu0 0.0
        %1160 = vmatpush2.msra.mxu0 0.0
        %1161 = vmatprep.subr.mxu0 0.0
        %1162 = vmatpush2.msra.mxu0 0.0
        %1163 = vmatprep.subr.mxu0 0.0
        %1164 = vmatpush2.msra.mxu0 0.0
        %1165 = vmatprep.subr.mxu0 0.0
        %1166 = vmatpush2.msra.mxu0 0.0
        %1167 = vmatprep.subr.mxu0 0.0
        %1168 = vmatpush2.msra.mxu0 0.0
        %1169 = vmatprep.subr.mxu0 0.0
        %1170 = vmatpush2.msra.mxu0 0.0
        %1171 = vmatprep.subr.mxu0 0.0
        %1172 = vmatpush2.msra.mxu0 0.0
        %1173 = vmatprep.subr.mxu0 0.0
        %1174 = vmatpush2.msra.mxu0 0.0
        %1175 = vmatprep.subr.mxu0 0.0
        %1176 = vmatpush2.msra.mxu0 0.0
        %1177 = vmatprep.subr.mxu0 0.0
        %1178 = vmatpush2.msra.mxu0 0.0
        %1179 = vmatprep.mubr.f32.mxu0 0.0
        %1180 = vmatmul.mubr.f32.gmra.mxu0 %v1113
        %v1181 = vpop.f32.mrf.mxu0
        %v1182 = vadd.f32 0.0, %v1181
        %v1183 = vpop.f32.mrf.mxu0
        %1184 = vdwg.mxu0
        %v1186 = vsel %vm746, %v744, 0
        %1188 = vmatprep.subr.mxu0 0.0
        %1189 = vmatpush1.msra.mxu0 0.0
        %1190 = vmatprep.subr.mxu0 0.0
        %1191 = vmatpush1.msra.mxu0 0.0
        %1192 = vmatprep.subr.mxu0 0.0
        %1193 = vmatpush1.msra.mxu0 0.0
        %1194 = vmatprep.subr.mxu0 0.0
        %1195 = vmatpush1.msra.mxu0 0.0
        %1196 = vmatprep.subr.mxu0 0.0
        %1197 = vmatpush1.msra.mxu0 0.0
        %1198 = vmatprep.subr.mxu0 0.0
        %1199 = vmatpush1.msra.mxu0 0.0
        %1200 = vmatprep.subr.mxu0 0.0
        %1201 = vmatpush1.msra.mxu0 0.0
        %1202 = vmatprep.subr.mxu0 0.0
        %1203 = vmatpush1.msra.mxu0 0.0
        %1204 = vmatprep.subr.mxu0 0.0
        %1205 = vmatpush1.msra.mxu0 %v466
        %1206 = vmatprep.subr.mxu0 0.0
        %1207 = vmatpush1.msra.mxu0 %v465
        %1208 = vmatprep.subr.mxu0 0.0
        %1209 = vmatpush1.msra.mxu0 %v464
        %1210 = vmatprep.subr.mxu0 0.0
        %1211 = vmatpush1.msra.mxu0 %v463
        %1212 = vmatprep.subr.mxu0 0.0
        %1213 = vmatpush1.msra.mxu0 %v462
        %1214 = vmatprep.subr.mxu0 0.0
        %1215 = vmatpush1.msra.mxu0 %v461
        %1216 = vmatprep.subr.mxu0 0.0
        %1217 = vmatpush1.msra.mxu0 %v460
        %1218 = vmatprep.subr.mxu0 0.0
        %1219 = vmatpush1.msra.mxu0 %v459
        %1220 = vmatprep.subr.mxu0 0.0
        %1221 = vmatpush2.msra.mxu0 0.0
        %1222 = vmatprep.subr.mxu0 0.0
        %1223 = vmatpush2.msra.mxu0 0.0
        %1224 = vmatprep.subr.mxu0 0.0
        %1225 = vmatpush2.msra.mxu0 0.0
        %1226 = vmatprep.subr.mxu0 0.0
        %1227 = vmatpush2.msra.mxu0 0.0
        %1228 = vmatprep.subr.mxu0 0.0
        %1229 = vmatpush2.msra.mxu0 0.0
        %1230 = vmatprep.subr.mxu0 0.0
        %1231 = vmatpush2.msra.mxu0 0.0
        %1232 = vmatprep.subr.mxu0 0.0
        %1233 = vmatpush2.msra.mxu0 0.0
        %1234 = vmatprep.subr.mxu0 0.0
        %1235 = vmatpush2.msra.mxu0 0.0
        %1236 = vmatprep.subr.mxu0 0.0
        %1237 = vmatpush2.msra.mxu0 0.0
        %1238 = vmatprep.subr.mxu0 0.0
        %1239 = vmatpush2.msra.mxu0 0.0
        %1240 = vmatprep.subr.mxu0 0.0
        %1241 = vmatpush2.msra.mxu0 0.0
        %1242 = vmatprep.subr.mxu0 0.0
        %1243 = vmatpush2.msra.mxu0 0.0
        %1244 = vmatprep.subr.mxu0 0.0
        %1245 = vmatpush2.msra.mxu0 0.0
        %1246 = vmatprep.subr.mxu0 0.0
        %1247 = vmatpush2.msra.mxu0 0.0
        %1248 = vmatprep.subr.mxu0 0.0
        %1249 = vmatpush2.msra.mxu0 0.0
        %1250 = vmatprep.subr.mxu0 0.0
        %1251 = vmatpush2.msra.mxu0 0.0
        %1252 = vmatprep.mubr.f32.mxu0 0.0
        %1253 = vmatmul.mubr.f32.gmra.mxu0 %v1186
        %v1254 = vpop.f32.mrf.mxu0
        %v1255 = vadd.f32 0.0, %v1254
        %v1256 = vpop.f32.mrf.mxu0
        %1257 = vdwg.mxu0
        %v1259 = vsel %vm746, %v745, 0
        %1261 = vmatprep.subr.mxu0 0.0
        %1262 = vmatpush1.msra.mxu0 0.0
        %1263 = vmatprep.subr.mxu0 0.0
        %1264 = vmatpush1.msra.mxu0 0.0
        %1265 = vmatprep.subr.mxu0 0.0
        %1266 = vmatpush1.msra.mxu0 0.0
        %1267 = vmatprep.subr.mxu0 0.0
        %1268 = vmatpush1.msra.mxu0 0.0
        %1269 = vmatprep.subr.mxu0 0.0
        %1270 = vmatpush1.msra.mxu0 0.0
        %1271 = vmatprep.subr.mxu0 0.0
        %1272 = vmatpush1.msra.mxu0 0.0
        %1273 = vmatprep.subr.mxu0 0.0
        %1274 = vmatpush1.msra.mxu0 0.0
        %1275 = vmatprep.subr.mxu0 0.0
        %1276 = vmatpush1.msra.mxu0 0.0
        %1277 = vmatprep.subr.mxu0 0.0
        %1278 = vmatpush1.msra.mxu0 %v474
        %1279 = vmatprep.subr.mxu0 0.0
        %1280 = vmatpush1.msra.mxu0 %v473
        %1281 = vmatprep.subr.mxu0 0.0
        %1282 = vmatpush1.msra.mxu0 %v472
        %1283 = vmatprep.subr.mxu0 0.0
        %1284 = vmatpush1.msra.mxu0 %v471
        %1285 = vmatprep.subr.mxu0 0.0
        %1286 = vmatpush1.msra.mxu0 %v470
        %1287 = vmatprep.subr.mxu0 0.0
        %1288 = vmatpush1.msra.mxu0 %v469
        %1289 = vmatprep.subr.mxu0 0.0
        %1290 = vmatpush1.msra.mxu0 %v468
        %1291 = vmatprep.subr.mxu0 0.0
        %1292 = vmatpush1.msra.mxu0 %v467
        %1293 = vmatprep.subr.mxu0 0.0
        %1294 = vmatpush2.msra.mxu0 0.0
        %1295 = vmatprep.subr.mxu0 0.0
        %1296 = vmatpush2.msra.mxu0 0.0
        %1297 = vmatprep.subr.mxu0 0.0
        %1298 = vmatpush2.msra.mxu0 0.0
        %1299 = vmatprep.subr.mxu0 0.0
        %1300 = vmatpush2.msra.mxu0 0.0
        %1301 = vmatprep.subr.mxu0 0.0
        %1302 = vmatpush2.msra.mxu0 0.0
        %1303 = vmatprep.subr.mxu0 0.0
        %1304 = vmatpush2.msra.mxu0 0.0
        %1305 = vmatprep.subr.mxu0 0.0
        %1306 = vmatpush2.msra.mxu0 0.0
        %1307 = vmatprep.subr.mxu0 0.0
        %1308 = vmatpush2.msra.mxu0 0.0
        %1309 = vmatprep.subr.mxu0 0.0
        %1310 = vmatpush2.msra.mxu0 0.0
        %1311 = vmatprep.subr.mxu0 0.0
        %1312 = vmatpush2.msra.mxu0 0.0
        %1313 = vmatprep.subr.mxu0 0.0
        %1314 = vmatpush2.msra.mxu0 0.0
        %1315 = vmatprep.subr.mxu0 0.0
        %1316 = vmatpush2.msra.mxu0 0.0
        %1317 = vmatprep.subr.mxu0 0.0
        %1318 = vmatpush2.msra.mxu0 0.0
        %1319 = vmatprep.subr.mxu0 0.0
        %1320 = vmatpush2.msra.mxu0 0.0
        %1321 = vmatprep.subr.mxu0 0.0
        %1322 = vmatpush2.msra.mxu0 0.0
        %1323 = vmatprep.subr.mxu0 0.0
        %1324 = vmatpush2.msra.mxu0 0.0
        %1325 = vmatprep.mubr.f32.mxu0 0.0
        %1326 = vmatmul.mubr.f32.gmra.mxu0 %v1259
        %v1327 = vpop.f32.mrf.mxu0
        %v1328 = vadd.f32 0.0, %v1327
        %v1329 = vpop.f32.mrf.mxu0
        %1330 = vdwg.mxu0
        %v1339 = vrot.slane %v890, 7
        %vm1340 = vcmask 1041409
        %v1341 = vsel %vm1340, %v1339, %v817
        %v1342 = vrot.slane %v963, 6
        %vm1343 = vcmask 1042434
        %v1344 = vsel %vm1343, %v1342, %v1341
        %v1345 = vrot.slane %v1036, 5
        %vm1346 = vcmask 1043459
        %v1347 = vsel %vm1346, %v1345, %v1344
        %v1348 = vrot.slane %v1109, 4
        %vm1349 = vcmask 1044484
        %v1350 = vsel %vm1349, %v1348, %v1347
        %v1351 = vrot.slane %v1182, 3
        %vm1352 = vcmask 1045509
        %v1353 = vsel %vm1352, %v1351, %v1350
        %v1354 = vrot.slane %v1255, 2
        %vm1355 = vcmask 1046534
        %v1356 = vsel %vm1355, %v1354, %v1353
        %v1357 = vrot.slane %v1328, 1
        %vm1358 = vcmask 1047559
        %v1359 = vsel %vm1358, %v1357, %v1356
        %1361 = vrot.lane.b32.xlu0 %v1359, 96
        %v1362 = vpop.permute.xlu0 %1361
        %vm1364 = vcmask 269312
        %v1366 = vsel %vm1364, %v475, 0
        %v1369 = vsel %vm1364, %v476, 0
        %v1372 = vsel %vm1364, %v477, 0
        %v1375 = vsel %vm1364, %v478, 0
        %vm1377 = vcmask 1040384
        %v1379 = vsel %vm1377, 1.0, 0
        %1381 = vmatprep.subr.mxu0 0.0
        %1382 = vmatpush1.msra.mxu0 0.0
        %1383 = vmatprep.subr.mxu0 0.0
        %1384 = vmatpush1.msra.mxu0 0.0
        %1385 = vmatprep.subr.mxu0 0.0
        %1386 = vmatpush1.msra.mxu0 0.0
        %1387 = vmatprep.subr.mxu0 0.0
        %1388 = vmatpush1.msra.mxu0 0.0
        %1389 = vmatprep.subr.mxu0 0.0
        %1390 = vmatpush1.msra.mxu0 0.0
        %1391 = vmatprep.subr.mxu0 0.0
        %1392 = vmatpush1.msra.mxu0 0.0
        %1393 = vmatprep.subr.mxu0 0.0
        %1394 = vmatpush1.msra.mxu0 0.0
        %1395 = vmatprep.subr.mxu0 0.0
        %1396 = vmatpush1.msra.mxu0 0.0
        %1397 = vmatprep.subr.mxu0 0.0
        %1398 = vmatpush1.msra.mxu0 0.0
        %1399 = vmatprep.subr.mxu0 0.0
        %1400 = vmatpush1.msra.mxu0 0.0
        %1401 = vmatprep.subr.mxu0 0.0
        %1402 = vmatpush1.msra.mxu0 0.0
        %1403 = vmatprep.subr.mxu0 0.0
        %1404 = vmatpush1.msra.mxu0 %v1379
        %1405 = vmatprep.subr.mxu0 0.0
        %1406 = vmatpush1.msra.mxu0 %v408
        %1407 = vmatprep.subr.mxu0 0.0
        %1408 = vmatpush1.msra.mxu0 %v403
        %1409 = vmatprep.subr.mxu0 0.0
        %1410 = vmatpush1.msra.mxu0 %v398
        %1411 = vmatprep.subr.mxu0 0.0
        %1412 = vmatpush1.msra.mxu0 %v393
        %1413 = vmatprep.subr.mxu0 0.0
        %1414 = vmatpush2.msra.mxu0 0.0
        %1415 = vmatprep.subr.mxu0 0.0
        %1416 = vmatpush2.msra.mxu0 0.0
        %1417 = vmatprep.subr.mxu0 0.0
        %1418 = vmatpush2.msra.mxu0 0.0
        %1419 = vmatprep.subr.mxu0 0.0
        %1420 = vmatpush2.msra.mxu0 0.0
        %1421 = vmatprep.subr.mxu0 0.0
        %1422 = vmatpush2.msra.mxu0 0.0
        %1423 = vmatprep.subr.mxu0 0.0
        %1424 = vmatpush2.msra.mxu0 0.0
        %1425 = vmatprep.subr.mxu0 0.0
        %1426 = vmatpush2.msra.mxu0 0.0
        %1427 = vmatprep.subr.mxu0 0.0
        %1428 = vmatpush2.msra.mxu0 0.0
        %1429 = vmatprep.subr.mxu0 0.0
        %1430 = vmatpush2.msra.mxu0 0.0
        %1431 = vmatprep.subr.mxu0 0.0
        %1432 = vmatpush2.msra.mxu0 0.0
        %1433 = vmatprep.subr.mxu0 0.0
        %1434 = vmatpush2.msra.mxu0 0.0
        %1435 = vmatprep.subr.mxu0 0.0
        %1436 = vmatpush2.msra.mxu0 0.0
        %1437 = vmatprep.subr.mxu0 0.0
        %1438 = vmatpush2.msra.mxu0 0.0
        %1439 = vmatprep.subr.mxu0 0.0
        %1440 = vmatpush2.msra.mxu0 0.0
        %1441 = vmatprep.subr.mxu0 0.0
        %1442 = vmatpush2.msra.mxu0 0.0
        %1443 = vmatprep.subr.mxu0 0.0
        %1444 = vmatpush2.msra.mxu0 0.0
        %1445 = vmatprep.mubr.f32.mxu0 0.0
        %1446 = vmatmul.mubr.f32.gmra.mxu0 %v1366
        %v1447 = vpop.f32.mrf.mxu0
        %v1448 = vadd.f32 0.0, %v1447
        %v1449 = vpop.f32.mrf.mxu0
        %1450 = vmatprep.mubr.f32.mxu0 0.0
        %1451 = vmatmul.mubr.f32.gmra.mxu0 %v1369
        %v1452 = vpop.f32.mrf.mxu0
        %v1453 = vadd.f32 0.0, %v1452
        %v1454 = vpop.f32.mrf.mxu0
        %1455 = vmatprep.mubr.f32.mxu0 0.0
        %1456 = vmatmul.mubr.f32.gmra.mxu0 %v1372
        %v1457 = vpop.f32.mrf.mxu0
        %v1458 = vadd.f32 0.0, %v1457
        %v1459 = vpop.f32.mrf.mxu0
        %1460 = vmatprep.mubr.f32.mxu0 0.0
        %1461 = vmatmul.mubr.f32.gmra.mxu0 %v1375
        %v1462 = vpop.f32.mrf.mxu0
        %v1463 = vadd.f32 0.0, %v1462
        %v1464 = vpop.f32.mrf.mxu0
        %1465 = vdwg.mxu0
        %1466 = vxpose.xlu0.b32.start [1/16] %v1359, 128
        %1467 = vxpose.xlu0.b32.cont [2/16] %v1362, 128
        %1468 = vxpose.xlu0.b32.cont [3/16] 0.0, 128
        %1469 = vxpose.xlu0.b32.cont [4/16] 0.0, 128
        %1470 = vxpose.xlu0.b32.cont [5/16] 0.0, 128
        %1471 = vxpose.xlu0.b32.cont [6/16] 0.0, 128
        %1472 = vxpose.xlu0.b32.cont [7/16] 0.0, 128
        %1473 = vxpose.xlu0.b32.cont [8/16] 0.0, 128
        %1474 = vxpose.xlu0.b32.cont [9/16] 0.0, 128
        %1475 = vxpose.xlu0.b32.cont [10/16] 0.0, 128
        %1476 = vxpose.xlu0.b32.cont [11/16] 0.0, 128
        %1477 = vxpose.xlu0.b32.cont [12/16] 0.0, 128
        %1478 = vxpose.xlu0.b32.cont [13/16] 0.0, 128
        %1479 = vxpose.xlu0.b32.cont [14/16] 0.0, 128
        %1480 = vxpose.xlu0.b32.cont [15/16] 0.0, 128
        %1481 = vxpose.xlu0.b32.end [16/16] 0.0, 128
        %v1482 = vpop.trf.xlu0
        %v1483 = vpop.trf.xlu0
        %v1484 = vpop.trf.xlu0
        %v1485 = vpop.trf.xlu0
        %v1486 = vpop.trf.xlu0
        %v1487 = vpop.trf.xlu0
        %v1488 = vpop.trf.xlu0
        %v1489 = vpop.trf.xlu0
        %v1490 = vpop.trf.xlu0
        %v1491 = vpop.trf.xlu0
        %v1492 = vpop.trf.xlu0
        %v1493 = vpop.trf.xlu0
        %v1494 = vpop.trf.xlu0
        %v1495 = vpop.trf.xlu0
        %v1496 = vpop.trf.xlu0
        %v1497 = vpop.trf.xlu0
        %v1499 = vsel %vm479, %v1482, 0
        %v1502 = vsel %vm479, %v1483, 0
        %v1505 = vsel %vm479, %v1484, 0
        %v1508 = vsel %vm479, %v1485, 0
        %1510 = vmatprep.subr.mxu0 0.0
        %1511 = vmatpush1.msra.mxu0 0.0
        %1512 = vmatprep.subr.mxu0 0.0
        %1513 = vmatpush1.msra.mxu0 0.0
        %1514 = vmatprep.subr.mxu0 0.0
        %1515 = vmatpush1.msra.mxu0 0.0
        %1516 = vmatprep.subr.mxu0 0.0
        %1517 = vmatpush1.msra.mxu0 0.0
        %1518 = vmatprep.subr.mxu0 0.0
        %1519 = vmatpush1.msra.mxu0 0.0
        %1520 = vmatprep.subr.mxu0 0.0
        %1521 = vmatpush1.msra.mxu0 0.0
        %1522 = vmatprep.subr.mxu0 0.0
        %1523 = vmatpush1.msra.mxu0 0.0
        %1524 = vmatprep.subr.mxu0 0.0
        %1525 = vmatpush1.msra.mxu0 0.0
        %1526 = vmatprep.subr.mxu0 0.0
        %1527 = vmatpush1.msra.mxu0 0.0
        %1528 = vmatprep.subr.mxu0 0.0
        %1529 = vmatpush1.msra.mxu0 0.0
        %1530 = vmatprep.subr.mxu0 0.0
        %1531 = vmatpush1.msra.mxu0 0.0
        %1532 = vmatprep.subr.mxu0 0.0
        %1533 = vmatpush1.msra.mxu0 0.0
        %1534 = vmatprep.subr.mxu0 0.0
        %1535 = vmatpush1.msra.mxu0 0.0
        %1536 = vmatprep.subr.mxu0 0.0
        %1537 = vmatpush1.msra.mxu0 0.0
        %1538 = vmatprep.subr.mxu0 0.0
        %1539 = vmatpush1.msra.mxu0 %v303
        %1540 = vmatprep.subr.mxu0 0.0
        %1541 = vmatpush1.msra.mxu0 %v302
        %1542 = vmatprep.subr.mxu0 0.0
        %1543 = vmatpush2.msra.mxu0 0.0
        %1544 = vmatprep.subr.mxu0 0.0
        %1545 = vmatpush2.msra.mxu0 0.0
        %1546 = vmatprep.subr.mxu0 0.0
        %1547 = vmatpush2.msra.mxu0 0.0
        %1548 = vmatprep.subr.mxu0 0.0
        %1549 = vmatpush2.msra.mxu0 0.0
        %1550 = vmatprep.subr.mxu0 0.0
        %1551 = vmatpush2.msra.mxu0 0.0
        %1552 = vmatprep.subr.mxu0 0.0
        %1553 = vmatpush2.msra.mxu0 0.0
        %1554 = vmatprep.subr.mxu0 0.0
        %1555 = vmatpush2.msra.mxu0 0.0
        %1556 = vmatprep.subr.mxu0 0.0
        %1557 = vmatpush2.msra.mxu0 0.0
        %1558 = vmatprep.subr.mxu0 0.0
        %1559 = vmatpush2.msra.mxu0 0.0
        %1560 = vmatprep.subr.mxu0 0.0
        %1561 = vmatpush2.msra.mxu0 0.0
        %1562 = vmatprep.subr.mxu0 0.0
        %1563 = vmatpush2.msra.mxu0 0.0
        %1564 = vmatprep.subr.mxu0 0.0
        %1565 = vmatpush2.msra.mxu0 0.0
        %1566 = vmatprep.subr.mxu0 0.0
        %1567 = vmatpush2.msra.mxu0 0.0
        %1568 = vmatprep.subr.mxu0 0.0
        %1569 = vmatpush2.msra.mxu0 0.0
        %1570 = vmatprep.subr.mxu0 0.0
        %1571 = vmatpush2.msra.mxu0 0.0
        %1572 = vmatprep.subr.mxu0 0.0
        %1573 = vmatpush2.msra.mxu0 0.0
        %1574 = vmatprep.mubr.f32.mxu0 0.0
        %1575 = vmatmul.mubr.f32.gmra.mxu0 %v1499
        %v1576 = vpop.f32.mrf.mxu0
        %v1577 = vadd.f32 %v1448, %v1576
        %v1578 = vpop.f32.mrf.mxu0
        %1579 = vmatprep.mubr.f32.mxu0 0.0
        %1580 = vmatmul.mubr.f32.gmra.mxu0 %v1502
        %v1581 = vpop.f32.mrf.mxu0
        %v1582 = vadd.f32 %v1453, %v1581
        %v1583 = vpop.f32.mrf.mxu0
        %1584 = vmatprep.mubr.f32.mxu0 0.0
        %1585 = vmatmul.mubr.f32.gmra.mxu0 %v1505
        %v1586 = vpop.f32.mrf.mxu0
        %v1587 = vadd.f32 %v1458, %v1586
        %v1588 = vpop.f32.mrf.mxu0
        %1589 = vmatprep.mubr.f32.mxu0 0.0
        %1590 = vmatmul.mubr.f32.gmra.mxu0 %v1508
        %v1591 = vpop.f32.mrf.mxu0
        %v1592 = vadd.f32 %v1463, %v1591
        %v1593 = vpop.f32.mrf.mxu0
        %1594 = vdwg.mxu0
        %v1595 = vmul.f32 %v1577, 0.5
        %v1596 = vmul.f32 %v1582, 0.5
        %v1597 = vmul.f32 %v1587, 0.5
        %v1598 = vmul.f32 %v1592, 0.5
        %v1599 = vmul.f32 %v1577, 0.70710677
        %v1600 = vmul.f32 %v1582, 0.70710677
        %v1601 = vmul.f32 %v1587, 0.70710677
        %v1602 = vmul.f32 %v1592, 0.70710677
        %v1603 = vand.u32 2147483647, %v1599
        %v1604 = vand.u32 2147483647, %v1600
        %v1605 = vand.u32 2147483647, %v1601
        %v1606 = vand.u32 2147483647, %v1602
        %v1607 = vmul.f32 %v1603, 0.3275911
        %v1608 = vmul.f32 %v1604, 0.3275911
        %v1609 = vmul.f32 %v1605, 0.3275911
        %v1610 = vmul.f32 %v1606, 0.3275911
        %v1611 = vadd.f32 %v1607, 1.0
        %v1612 = vadd.f32 %v1608, 1.0
        %v1613 = vadd.f32 %v1609, 1.0
        %v1614 = vadd.f32 %v1610, 1.0
        %v1615 = vrcp.pop %v1611
        %v1616 = vmul.f32 1.0, %v1615
        %v1617 = vrcp.pop %v1612
        %v1618 = vmul.f32 1.0, %v1617
        %v1619 = vrcp.pop %v1613
        %v1620 = vmul.f32 1.0, %v1619
        %v1621 = vrcp.pop %v1614
        %v1622 = vmul.f32 1.0, %v1621
        %v1623 = vmul.f32 %v1616, 1.0614054
        %v1624 = vmul.f32 %v1618, 1.0614054
        %v1625 = vmul.f32 %v1620, 1.0614054
        %v1626 = vmul.f32 %v1622, 1.0614054
        %v1627 = vadd.f32 %v1623, -1.4531521
        %v1628 = vadd.f32 %v1624, -1.4531521
        %v1629 = vadd.f32 %v1625, -1.4531521
        %v1630 = vadd.f32 %v1626, -1.4531521
        %v1631 = vmul.f32 %v1627, %v1616
        %v1632 = vmul.f32 %v1628, %v1618
        %v1633 = vmul.f32 %v1629, %v1620
        %v1634 = vmul.f32 %v1630, %v1622
        %v1635 = vadd.f32 %v1631, 1.4214138
        %v1636 = vadd.f32 %v1632, 1.4214138
        %v1637 = vadd.f32 %v1633, 1.4214138
        %v1638 = vadd.f32 %v1634, 1.4214138
        %v1639 = vmul.f32 %v1635, %v1616
        %v1640 = vmul.f32 %v1636, %v1618
        %v1641 = vmul.f32 %v1637, %v1620
        %v1642 = vmul.f32 %v1638, %v1622
        %v1643 = vadd.f32 %v1639, -0.28449672
        %v1644 = vadd.f32 %v1640, -0.28449672
        %v1645 = vadd.f32 %v1641, -0.28449672
        %v1646 = vadd.f32 %v1642, -0.28449672
        %v1647 = vmul.f32 %v1643, %v1616
        %v1648 = vmul.f32 %v1644, %v1618
        %v1649 = vmul.f32 %v1645, %v1620
        %v1650 = vmul.f32 %v1646, %v1622
        %v1651 = vadd.f32 %v1647, 0.2548296
        %v1652 = vadd.f32 %v1648, 0.2548296
        %v1653 = vadd.f32 %v1649, 0.2548296
        %v1654 = vadd.f32 %v1650, 0.2548296
        %v1655 = vmul.f32 %v1651, %v1616
        %v1656 = vmul.f32 %v1652, %v1618
        %v1657 = vmul.f32 %v1653, %v1620
        %v1658 = vmul.f32 %v1654, %v1622
        %v1659 = vsub.f32 0.0, %v1603
        %v1660 = vsub.f32 0.0, %v1604
        %v1661 = vsub.f32 0.0, %v1605
        %v1662 = vsub.f32 0.0, %v1606
        %v1663 = vmul.f32 %v1659, %v1603
        %v1664 = vmul.f32 %v1660, %v1604
        %v1665 = vmul.f32 %v1661, %v1605
        %v1666 = vmul.f32 %v1662, %v1606
        %v1667 = vmul.f32 %v1663, 1.442695
        %v1668 = vpow.pop %v1667
        %v1669 = vmul.f32 %v1664, 1.442695
        %v1670 = vpow.pop %v1669
        %v1671 = vmul.f32 %v1665, 1.442695
        %v1672 = vpow.pop %v1671
        %v1673 = vmul.f32 %v1666, 1.442695
        %v1674 = vpow.pop %v1673
        %v1675 = vmul.f32 %v1655, %v1668
        %v1676 = vmul.f32 %v1656, %v1670
        %v1677 = vmul.f32 %v1657, %v1672
        %v1678 = vmul.f32 %v1658, %v1674
        %v1679 = vsub.f32 1.0, %v1675
        %v1680 = vsub.f32 1.0, %v1676
        %v1681 = vsub.f32 1.0, %v1677
        %v1682 = vsub.f32 1.0, %v1678
        %vm1683 = vcmp.ge.f32.partialorder %v1599, 0.0
        %vm1684 = vcmp.ge.f32.partialorder %v1600, 0.0
        %vm1685 = vcmp.ge.f32.partialorder %v1601, 0.0
        %vm1686 = vcmp.ge.f32.partialorder %v1602, 0.0
        %v1687 = vsub.f32 0.0, %v1679
        %v1688 = vsub.f32 0.0, %v1680
        %v1689 = vsub.f32 0.0, %v1681
        %v1690 = vsub.f32 0.0, %v1682
        %v1691 = vsel %vm1683, %v1679, %v1687
        %v1692 = vsel %vm1684, %v1680, %v1688
        %v1693 = vsel %vm1685, %v1681, %v1689
        %v1694 = vsel %vm1686, %v1682, %v1690
        %v1695 = vadd.f32 %v1691, 1.0
        %v1696 = vadd.f32 %v1692, 1.0
        %v1697 = vadd.f32 %v1693, 1.0
        %v1698 = vadd.f32 %v1694, 1.0
        %v1699 = vmul.f32 %v1595, %v1695
        %v1700 = vmul.f32 %v1596, %v1696
        %v1701 = vmul.f32 %v1597, %v1697
        %v1702 = vmul.f32 %v1598, %v1698
        %s1703 = scalar_lea.vmem %s2, 512
        %v1704 = vld [vmem:[%s1703] sm:$0xff]
        %v1705 = vld [vmem:[%s1703 + $0x8] sm:$0xff]
        %v1706 = vld [vmem:[%s1703 + $0x10] sm:$0xff]
        %v1707 = vld [vmem:[%s1703 + $0x18] sm:$0xff]
        %v1708 = vld [vmem:[%s1703 + $0x20] sm:$0xff]
        %v1709 = vld [vmem:[%s1703 + $0x28] sm:$0xff]
        %v1710 = vld [vmem:[%s1703 + $0x30] sm:$0xff]
        %v1711 = vld [vmem:[%s1703 + $0x38] sm:$0xff]
        %v1712 = vld [vmem:[%s1703 + $0x40] sm:$0xff]
        %v1713 = vld [vmem:[%s1703 + $0x48] sm:$0xff]
        %v1714 = vld [vmem:[%s1703 + $0x50] sm:$0xff]
        %v1715 = vld [vmem:[%s1703 + $0x58] sm:$0xff]
        %v1716 = vld [vmem:[%s1703 + $0x60] sm:$0xff]
        %v1717 = vld [vmem:[%s1703 + $0x68] sm:$0xff]
        %v1718 = vld [vmem:[%s1703 + $0x70] sm:$0xff]
        %v1719 = vld [vmem:[%s1703 + $0x78] sm:$0xff]
        %v1720 = vld [vmem:[%s1703 + $0x80] sm:$0xff]
        %v1721 = vld [vmem:[%s1703 + $0x88] sm:$0xff]
        %v1722 = vld [vmem:[%s1703 + $0x90] sm:$0xff]
        %v1723 = vld [vmem:[%s1703 + $0x98] sm:$0xff]
        %v1724 = vld [vmem:[%s1703 + $0xa0] sm:$0xff]
        %v1725 = vld [vmem:[%s1703 + $0xa8] sm:$0xff]
        %v1726 = vld [vmem:[%s1703 + $0xb0] sm:$0xff]
        %v1727 = vld [vmem:[%s1703 + $0xb8] sm:$0xff]
        %v1728 = vld [vmem:[%s1703 + $0xc0] sm:$0xff]
        %v1729 = vld [vmem:[%s1703 + $0xc8] sm:$0xff]
        %v1730 = vld [vmem:[%s1703 + $0xd0] sm:$0xff]
        %v1731 = vld [vmem:[%s1703 + $0xd8] sm:$0xff]
        %v1732 = vld [vmem:[%s1703 + $0xe0] sm:$0xff]
        %v1733 = vld [vmem:[%s1703 + $0xe8] sm:$0xff]
        %v1734 = vld [vmem:[%s1703 + $0xf0] sm:$0xff]
        %v1735 = vld [vmem:[%s1703 + $0xf8] sm:$0xff]
        %v1736 = vld [vmem:[%s1703 + $0x100] sm:$0xff]
        %v1737 = vld [vmem:[%s1703 + $0x108] sm:$0xff]
        %v1738 = vld [vmem:[%s1703 + $0x110] sm:$0xff]
        %v1739 = vld [vmem:[%s1703 + $0x118] sm:$0xff]
        %v1740 = vld [vmem:[%s1703 + $0x120] sm:$0xff]
        %v1741 = vld [vmem:[%s1703 + $0x128] sm:$0xff]
        %v1742 = vld [vmem:[%s1703 + $0x130] sm:$0xff]
        %v1743 = vld [vmem:[%s1703 + $0x138] sm:$0xff]
        %v1744 = vld [vmem:[%s1703 + $0x140] sm:$0xff]
        %v1745 = vld [vmem:[%s1703 + $0x148] sm:$0xff]
        %v1746 = vld [vmem:[%s1703 + $0x150] sm:$0xff]
        %v1747 = vld [vmem:[%s1703 + $0x158] sm:$0xff]
        %v1748 = vld [vmem:[%s1703 + $0x160] sm:$0xff]
        %v1749 = vld [vmem:[%s1703 + $0x168] sm:$0xff]
        %v1750 = vld [vmem:[%s1703 + $0x170] sm:$0xff]
        %v1751 = vld [vmem:[%s1703 + $0x178] sm:$0xff]
        %v1752 = vld [vmem:[%s1703 + $0x180] sm:$0xff]
        %v1753 = vld [vmem:[%s1703 + $0x188] sm:$0xff]
        %v1754 = vld [vmem:[%s1703 + $0x190] sm:$0xff]
        %v1755 = vld [vmem:[%s1703 + $0x198] sm:$0xff]
        %v1756 = vld [vmem:[%s1703 + $0x1a0] sm:$0xff]
        %v1757 = vld [vmem:[%s1703 + $0x1a8] sm:$0xff]
        %v1758 = vld [vmem:[%s1703 + $0x1b0] sm:$0xff]
        %v1759 = vld [vmem:[%s1703 + $0x1b8] sm:$0xff]
        %v1760 = vld [vmem:[%s1703 + $0x1c0] sm:$0xff]
        %v1761 = vld [vmem:[%s1703 + $0x1c8] sm:$0xff]
        %v1762 = vld [vmem:[%s1703 + $0x1d0] sm:$0xff]
        %v1763 = vld [vmem:[%s1703 + $0x1d8] sm:$0xff]
        %v1764 = vld [vmem:[%s1703 + $0x1e0] sm:$0xff]
        %v1765 = vld [vmem:[%s1703 + $0x1e8] sm:$0xff]
        %v1766 = vld [vmem:[%s1703 + $0x1f0] sm:$0xff]
        %v1767 = vld [vmem:[%s1703 + $0x1f8] sm:$0xff]
        %s1768 = scalar_lea.vmem %s3, 32
        %v1769 = vld [vmem:[%s1768] sm:$0xff]
        %v1770 = vld [vmem:[%s1768 + $0x8] sm:$0xff]
        %v1771 = vld [vmem:[%s1768 + $0x10] sm:$0xff]
        %v1772 = vld [vmem:[%s1768 + $0x18] sm:$0xff]
        %v1774 = vsel %vm479, %v1699, 0
        %v1777 = vsel %vm479, %v1700, 0
        %v1780 = vsel %vm479, %v1701, 0
        %v1783 = vsel %vm479, %v1702, 0
        %1785 = vmatprep.subr.mxu0 0.0
        %1786 = vmatpush1.xpose.msra.mxu0 0.0
        %1787 = vmatprep.subr.mxu0 0.0
        %1788 = vmatpush1.xpose.msra.mxu0 0.0
        %1789 = vmatprep.subr.mxu0 0.0
        %1790 = vmatpush1.xpose.msra.mxu0 0.0
        %1791 = vmatprep.subr.mxu0 0.0
        %1792 = vmatpush1.xpose.msra.mxu0 0.0
        %1793 = vmatprep.subr.mxu0 0.0
        %1794 = vmatpush1.xpose.msra.mxu0 0.0
        %1795 = vmatprep.subr.mxu0 0.0
        %1796 = vmatpush1.xpose.msra.mxu0 0.0
        %1797 = vmatprep.subr.mxu0 0.0
        %1798 = vmatpush1.xpose.msra.mxu0 0.0
        %1799 = vmatprep.subr.mxu0 0.0
        %1800 = vmatpush1.xpose.msra.mxu0 0.0
        %1801 = vmatprep.subr.mxu0 0.0
        %1802 = vmatpush1.xpose.msra.mxu0 0.0
        %1803 = vmatprep.subr.mxu0 0.0
        %1804 = vmatpush1.xpose.msra.mxu0 0.0
        %1805 = vmatprep.subr.mxu0 0.0
        %1806 = vmatpush1.xpose.msra.mxu0 0.0
        %1807 = vmatprep.subr.mxu0 0.0
        %1808 = vmatpush1.xpose.msra.mxu0 0.0
        %1809 = vmatprep.subr.mxu0 0.0
        %1810 = vmatpush1.xpose.msra.mxu0 %v1783
        %1811 = vmatprep.subr.mxu0 0.0
        %1812 = vmatpush1.xpose.msra.mxu0 %v1780
        %1813 = vmatprep.subr.mxu0 0.0
        %1814 = vmatpush1.xpose.msra.mxu0 %v1777
        %1815 = vmatprep.subr.mxu0 0.0
        %1816 = vmatpush1.xpose.msra.mxu0 %v1774
        %1817 = vmatprep.subr.mxu0 0.0
        %1818 = vmatpush2.xpose.msra.mxu0 0.0
        %1819 = vmatprep.subr.mxu0 0.0
        %1820 = vmatpush2.xpose.msra.mxu0 0.0
        %1821 = vmatprep.subr.mxu0 0.0
        %1822 = vmatpush2.xpose.msra.mxu0 0.0
        %1823 = vmatprep.subr.mxu0 0.0
        %1824 = vmatpush2.xpose.msra.mxu0 0.0
        %1825 = vmatprep.subr.mxu0 0.0
        %1826 = vmatpush2.xpose.msra.mxu0 0.0
        %1827 = vmatprep.subr.mxu0 0.0
        %1828 = vmatpush2.xpose.msra.mxu0 0.0
        %1829 = vmatprep.subr.mxu0 0.0
        %1830 = vmatpush2.xpose.msra.mxu0 0.0
        %1831 = vmatprep.subr.mxu0 0.0
        %1832 = vmatpush2.xpose.msra.mxu0 0.0
        %1833 = vmatprep.subr.mxu0 0.0
        %1834 = vmatpush2.xpose.msra.mxu0 0.0
        %1835 = vmatprep.subr.mxu0 0.0
        %1836 = vmatpush2.xpose.msra.mxu0 0.0
        %1837 = vmatprep.subr.mxu0 0.0
        %1838 = vmatpush2.xpose.msra.mxu0 0.0
        %1839 = vmatprep.subr.mxu0 0.0
        %1840 = vmatpush2.xpose.msra.mxu0 0.0
        %1841 = vmatprep.subr.mxu0 0.0
        %1842 = vmatpush2.xpose.msra.mxu0 0.0
        %1843 = vmatprep.subr.mxu0 0.0
        %1844 = vmatpush2.xpose.msra.mxu0 0.0
        %1845 = vmatprep.subr.mxu0 0.0
        %1846 = vmatpush2.xpose.msra.mxu0 0.0
        %1847 = vmatprep.subr.mxu0 0.0
        %1848 = vmatpush2.xpose.msra.mxu0 0.0
        %1849 = vmatprep.mubr.f32.mxu0 0.0
        %1850 = vmatmul.mubr.f32.gmra.mxu0 %v481
        %v1851 = vpop.f32.mrf.mxu0
        %v1852 = vadd.f32 0.0, %v1851
        %v1853 = vpop.f32.mrf.mxu0
        %1854 = vmatprep.mubr.f32.mxu0 0.0
        %1855 = vmatmul.mubr.f32.gmra.mxu0 %v484
        %v1856 = vpop.f32.mrf.mxu0
        %v1857 = vadd.f32 0.0, %v1856
        %v1858 = vpop.f32.mrf.mxu0
        %1859 = vdwg.mxu0
        %v1862 = vcombine.high %v1852, %v1852
        %v1864 = vunpack.c.l.s4 1966171168
        %v1865 = vunpack.c.0.s8 %v1864
        %v1866 = vlaneseq
        %v1867 = vshrl.u32 %v1866, 7
        %v1868 = vsub.s32 %v1865, %v1867
        %v1869 = vrot.slane %v1852, %v1868
        %v1871 = vunpack.c.l.s4 1966171168
        %v1872 = vunpack.c.0.s8 %v1871
        %v1873 = vlaneseq
        %v1874 = vshrl.u32 %v1873, 7
        %v1875 = vsub.s32 %v1872, %v1874
        %v1876 = vrot.slane %v1862, %v1875
        %v1877 = vcombine.high %v1869, %v1869
        %v1878 = vcombine.high %v1876, %v1876
        %v1880 = vunpack.c.l.s4 1966171168
        %v1881 = vunpack.c.0.s8 %v1880
        %v1882 = vlaneseq
        %v1883 = vshrl.u32 %v1882, 7
        %v1884 = vsub.s32 %v1881, %v1883
        %v1885 = vrot.slane %v1869, %v1884
        %v1887 = vunpack.c.l.s4 1966171168
        %v1888 = vunpack.c.0.s8 %v1887
        %v1889 = vlaneseq
        %v1890 = vshrl.u32 %v1889, 7
        %v1891 = vsub.s32 %v1888, %v1890
        %v1892 = vrot.slane %v1876, %v1891
        %v1894 = vunpack.c.l.s4 1966171168
        %v1895 = vunpack.c.0.s8 %v1894
        %v1896 = vlaneseq
        %v1897 = vshrl.u32 %v1896, 7
        %v1898 = vsub.s32 %v1895, %v1897
        %v1899 = vrot.slane %v1877, %v1898
        %v1901 = vunpack.c.l.s4 1966171168
        %v1902 = vunpack.c.0.s8 %v1901
        %v1903 = vlaneseq
        %v1904 = vshrl.u32 %v1903, 7
        %v1905 = vsub.s32 %v1902, %v1904
        %v1906 = vrot.slane %v1878, %v1905
        %v1907 = vcombine.high %v1885, %v1885
        %v1908 = vcombine.high %v1892, %v1892
        %v1909 = vcombine.high %v1899, %v1899
        %v1910 = vcombine.high %v1906, %v1906
        %v1911 = vcombine.high %v1857, %v1857
        %v1913 = vunpack.c.l.s4 1966171168
        %v1914 = vunpack.c.0.s8 %v1913
        %v1915 = vlaneseq
        %v1916 = vshrl.u32 %v1915, 7
        %v1917 = vsub.s32 %v1914, %v1916
        %v1918 = vrot.slane %v1857, %v1917
        %v1920 = vunpack.c.l.s4 1966171168
        %v1921 = vunpack.c.0.s8 %v1920
        %v1922 = vlaneseq
        %v1923 = vshrl.u32 %v1922, 7
        %v1924 = vsub.s32 %v1921, %v1923
        %v1925 = vrot.slane %v1911, %v1924
        %v1926 = vcombine.high %v1918, %v1918
        %v1927 = vcombine.high %v1925, %v1925
        %v1929 = vunpack.c.l.s4 1966171168
        %v1930 = vunpack.c.0.s8 %v1929
        %v1931 = vlaneseq
        %v1932 = vshrl.u32 %v1931, 7
        %v1933 = vsub.s32 %v1930, %v1932
        %v1934 = vrot.slane %v1918, %v1933
        %v1936 = vunpack.c.l.s4 1966171168
        %v1937 = vunpack.c.0.s8 %v1936
        %v1938 = vlaneseq
        %v1939 = vshrl.u32 %v1938, 7
        %v1940 = vsub.s32 %v1937, %v1939
        %v1941 = vrot.slane %v1925, %v1940
        %v1943 = vunpack.c.l.s4 1966171168
        %v1944 = vunpack.c.0.s8 %v1943
        %v1945 = vlaneseq
        %v1946 = vshrl.u32 %v1945, 7
        %v1947 = vsub.s32 %v1944, %v1946
        %v1948 = vrot.slane %v1926, %v1947
        %v1950 = vunpack.c.l.s4 1966171168
        %v1951 = vunpack.c.0.s8 %v1950
        %v1952 = vlaneseq
        %v1953 = vshrl.u32 %v1952, 7
        %v1954 = vsub.s32 %v1951, %v1953
        %v1955 = vrot.slane %v1927, %v1954
        %v1956 = vcombine.high %v1934, %v1934
        %v1957 = vcombine.high %v1941, %v1941
        %v1958 = vcombine.high %v1948, %v1948
        %v1959 = vcombine.high %v1955, %v1955
        %v1968 = vlaneseq
        %v1969 = vshrl.u32 %v1968, 7
        %v1970 = vsub.s32 0, %v1969
        %v1971 = vrot.slane %v1934, %v1970
        %v1972 = vlaneseq
        %v1973 = vshrl.u32 %v1972, 7
        %v1974 = vsub.s32 0, %v1973
        %v1975 = vrot.slane %v1948, %v1974
        %v1976 = vlaneseq
        %v1977 = vshrl.u32 %v1976, 7
        %v1978 = vsub.s32 0, %v1977
        %v1979 = vrot.slane %v1956, %v1978
        %v1980 = vlaneseq
        %v1981 = vshrl.u32 %v1980, 7
        %v1982 = vsub.s32 0, %v1981
        %v1983 = vrot.slane %v1958, %v1982
        %v1984 = vlaneseq
        %v1985 = vshrl.u32 %v1984, 7
        %v1986 = vsub.s32 0, %v1985
        %v1987 = vrot.slane %v1941, %v1986
        %v1988 = vlaneseq
        %v1989 = vshrl.u32 %v1988, 7
        %v1990 = vsub.s32 0, %v1989
        %v1991 = vrot.slane %v1955, %v1990
        %v1992 = vlaneseq
        %v1993 = vshrl.u32 %v1992, 7
        %v1994 = vsub.s32 0, %v1993
        %v1995 = vrot.slane %v1957, %v1994
        %v1996 = vlaneseq
        %v1997 = vshrl.u32 %v1996, 7
        %v1998 = vsub.s32 0, %v1997
        %v1999 = vrot.slane %v1959, %v1998
        %2000 = vrot.lane.b32.xlu0 %v1971, 32
        %v2001 = vpop.permute.xlu0 %2000
        %2002 = vrot.lane.b32.xlu0 %v1975, 32
        %v2003 = vpop.permute.xlu0 %2002
        %2004 = vrot.lane.b32.xlu0 %v1979, 32
        %v2005 = vpop.permute.xlu0 %2004
        %2006 = vrot.lane.b32.xlu0 %v1983, 32
        %v2007 = vpop.permute.xlu0 %2006
        %2008 = vrot.lane.b32.xlu0 %v1987, 32
        %v2009 = vpop.permute.xlu0 %2008
        %2010 = vrot.lane.b32.xlu0 %v1991, 32
        %v2011 = vpop.permute.xlu0 %2010
        %2012 = vrot.lane.b32.xlu0 %v1995, 32
        %v2013 = vpop.permute.xlu0 %2012
        %2014 = vrot.lane.b32.xlu0 %v1999, 32
        %v2015 = vpop.permute.xlu0 %2014
        %v2024 = vsel %vm737, %v1885, %v2001
        %v2025 = vsel %vm737, %v1899, %v2003
        %v2026 = vsel %vm737, %v1907, %v2005
        %v2027 = vsel %vm737, %v1909, %v2007
        %v2028 = vsel %vm737, %v1892, %v2009
        %v2029 = vsel %vm737, %v1906, %v2011
        %v2030 = vsel %vm737, %v1908, %v2013
        %v2031 = vsel %vm737, %v1910, %v2015
        %v2033 = vsel %vm746, %v2024, 0
        %2035 = vmatprep.subr.mxu0 0.0
        %2036 = vmatpush1.msra.mxu0 0.0
        %2037 = vmatprep.subr.mxu0 0.0
        %2038 = vmatpush1.msra.mxu0 0.0
        %2039 = vmatprep.subr.mxu0 0.0
        %2040 = vmatpush1.msra.mxu0 0.0
        %2041 = vmatprep.subr.mxu0 0.0
        %2042 = vmatpush1.msra.mxu0 0.0
        %2043 = vmatprep.subr.mxu0 0.0
        %2044 = vmatpush1.msra.mxu0 0.0
        %2045 = vmatprep.subr.mxu0 0.0
        %2046 = vmatpush1.msra.mxu0 0.0
        %2047 = vmatprep.subr.mxu0 0.0
        %2048 = vmatpush1.msra.mxu0 0.0
        %2049 = vmatprep.subr.mxu0 0.0
        %2050 = vmatpush1.msra.mxu0 0.0
        %2051 = vmatprep.subr.mxu0 0.0
        %2052 = vmatpush1.msra.mxu0 %v1711
        %2053 = vmatprep.subr.mxu0 0.0
        %2054 = vmatpush1.msra.mxu0 %v1710
        %2055 = vmatprep.subr.mxu0 0.0
        %2056 = vmatpush1.msra.mxu0 %v1709
        %2057 = vmatprep.subr.mxu0 0.0
        %2058 = vmatpush1.msra.mxu0 %v1708
        %2059 = vmatprep.subr.mxu0 0.0
        %2060 = vmatpush1.msra.mxu0 %v1707
        %2061 = vmatprep.subr.mxu0 0.0
        %2062 = vmatpush1.msra.mxu0 %v1706
        %2063 = vmatprep.subr.mxu0 0.0
        %2064 = vmatpush1.msra.mxu0 %v1705
        %2065 = vmatprep.subr.mxu0 0.0
        %2066 = vmatpush1.msra.mxu0 %v1704
        %2067 = vmatprep.subr.mxu0 0.0
        %2068 = vmatpush2.msra.mxu0 0.0
        %2069 = vmatprep.subr.mxu0 0.0
        %2070 = vmatpush2.msra.mxu0 0.0
        %2071 = vmatprep.subr.mxu0 0.0
        %2072 = vmatpush2.msra.mxu0 0.0
        %2073 = vmatprep.subr.mxu0 0.0
        %2074 = vmatpush2.msra.mxu0 0.0
        %2075 = vmatprep.subr.mxu0 0.0
        %2076 = vmatpush2.msra.mxu0 0.0
        %2077 = vmatprep.subr.mxu0 0.0
        %2078 = vmatpush2.msra.mxu0 0.0
        %2079 = vmatprep.subr.mxu0 0.0
        %2080 = vmatpush2.msra.mxu0 0.0
        %2081 = vmatprep.subr.mxu0 0.0
        %2082 = vmatpush2.msra.mxu0 0.0
        %2083 = vmatprep.subr.mxu0 0.0
        %2084 = vmatpush2.msra.mxu0 0.0
        %2085 = vmatprep.subr.mxu0 0.0
        %2086 = vmatpush2.msra.mxu0 0.0
        %2087 = vmatprep.subr.mxu0 0.0
        %2088 = vmatpush2.msra.mxu0 0.0
        %2089 = vmatprep.subr.mxu0 0.0
        %2090 = vmatpush2.msra.mxu0 0.0
        %2091 = vmatprep.subr.mxu0 0.0
        %2092 = vmatpush2.msra.mxu0 0.0
        %2093 = vmatprep.subr.mxu0 0.0
        %2094 = vmatpush2.msra.mxu0 0.0
        %2095 = vmatprep.subr.mxu0 0.0
        %2096 = vmatpush2.msra.mxu0 0.0
        %2097 = vmatprep.subr.mxu0 0.0
        %2098 = vmatpush2.msra.mxu0 0.0
        %2099 = vmatprep.mubr.f32.mxu0 0.0
        %2100 = vmatmul.mubr.f32.gmra.mxu0 %v2033
        %v2101 = vpop.f32.mrf.mxu0
        %v2102 = vadd.f32 0.0, %v2101
        %v2103 = vpop.f32.mrf.mxu0
        %2104 = vdwg.mxu0
        %v2106 = vsel %vm746, %v2025, 0
        %2108 = vmatprep.subr.mxu0 0.0
        %2109 = vmatpush1.msra.mxu0 0.0
        %2110 = vmatprep.subr.mxu0 0.0
        %2111 = vmatpush1.msra.mxu0 0.0
        %2112 = vmatprep.subr.mxu0 0.0
        %2113 = vmatpush1.msra.mxu0 0.0
        %2114 = vmatprep.subr.mxu0 0.0
        %2115 = vmatpush1.msra.mxu0 0.0
        %2116 = vmatprep.subr.mxu0 0.0
        %2117 = vmatpush1.msra.mxu0 0.0
        %2118 = vmatprep.subr.mxu0 0.0
        %2119 = vmatpush1.msra.mxu0 0.0
        %2120 = vmatprep.subr.mxu0 0.0
        %2121 = vmatpush1.msra.mxu0 0.0
        %2122 = vmatprep.subr.mxu0 0.0
        %2123 = vmatpush1.msra.mxu0 0.0
        %2124 = vmatprep.subr.mxu0 0.0
        %2125 = vmatpush1.msra.mxu0 %v1719
        %2126 = vmatprep.subr.mxu0 0.0
        %2127 = vmatpush1.msra.mxu0 %v1718
        %2128 = vmatprep.subr.mxu0 0.0
        %2129 = vmatpush1.msra.mxu0 %v1717
        %2130 = vmatprep.subr.mxu0 0.0
        %2131 = vmatpush1.msra.mxu0 %v1716
        %2132 = vmatprep.subr.mxu0 0.0
        %2133 = vmatpush1.msra.mxu0 %v1715
        %2134 = vmatprep.subr.mxu0 0.0
        %2135 = vmatpush1.msra.mxu0 %v1714
        %2136 = vmatprep.subr.mxu0 0.0
        %2137 = vmatpush1.msra.mxu0 %v1713
        %2138 = vmatprep.subr.mxu0 0.0
        %2139 = vmatpush1.msra.mxu0 %v1712
        %2140 = vmatprep.subr.mxu0 0.0
        %2141 = vmatpush2.msra.mxu0 0.0
        %2142 = vmatprep.subr.mxu0 0.0
        %2143 = vmatpush2.msra.mxu0 0.0
        %2144 = vmatprep.subr.mxu0 0.0
        %2145 = vmatpush2.msra.mxu0 0.0
        %2146 = vmatprep.subr.mxu0 0.0
        %2147 = vmatpush2.msra.mxu0 0.0
        %2148 = vmatprep.subr.mxu0 0.0
        %2149 = vmatpush2.msra.mxu0 0.0
        %2150 = vmatprep.subr.mxu0 0.0
        %2151 = vmatpush2.msra.mxu0 0.0
        %2152 = vmatprep.subr.mxu0 0.0
        %2153 = vmatpush2.msra.mxu0 0.0
        %2154 = vmatprep.subr.mxu0 0.0
        %2155 = vmatpush2.msra.mxu0 0.0
        %2156 = vmatprep.subr.mxu0 0.0
        %2157 = vmatpush2.msra.mxu0 0.0
        %2158 = vmatprep.subr.mxu0 0.0
        %2159 = vmatpush2.msra.mxu0 0.0
        %2160 = vmatprep.subr.mxu0 0.0
        %2161 = vmatpush2.msra.mxu0 0.0
        %2162 = vmatprep.subr.mxu0 0.0
        %2163 = vmatpush2.msra.mxu0 0.0
        %2164 = vmatprep.subr.mxu0 0.0
        %2165 = vmatpush2.msra.mxu0 0.0
        %2166 = vmatprep.subr.mxu0 0.0
        %2167 = vmatpush2.msra.mxu0 0.0
        %2168 = vmatprep.subr.mxu0 0.0
        %2169 = vmatpush2.msra.mxu0 0.0
        %2170 = vmatprep.subr.mxu0 0.0
        %2171 = vmatpush2.msra.mxu0 0.0
        %2172 = vmatprep.mubr.f32.mxu0 0.0
        %2173 = vmatmul.mubr.f32.gmra.mxu0 %v2106
        %v2174 = vpop.f32.mrf.mxu0
        %v2175 = vadd.f32 0.0, %v2174
        %v2176 = vpop.f32.mrf.mxu0
        %2177 = vdwg.mxu0
        %v2179 = vsel %vm746, %v2026, 0
        %2181 = vmatprep.subr.mxu0 0.0
        %2182 = vmatpush1.msra.mxu0 0.0
        %2183 = vmatprep.subr.mxu0 0.0
        %2184 = vmatpush1.msra.mxu0 0.0
        %2185 = vmatprep.subr.mxu0 0.0
        %2186 = vmatpush1.msra.mxu0 0.0
        %2187 = vmatprep.subr.mxu0 0.0
        %2188 = vmatpush1.msra.mxu0 0.0
        %2189 = vmatprep.subr.mxu0 0.0
        %2190 = vmatpush1.msra.mxu0 0.0
        %2191 = vmatprep.subr.mxu0 0.0
        %2192 = vmatpush1.msra.mxu0 0.0
        %2193 = vmatprep.subr.mxu0 0.0
        %2194 = vmatpush1.msra.mxu0 0.0
        %2195 = vmatprep.subr.mxu0 0.0
        %2196 = vmatpush1.msra.mxu0 0.0
        %2197 = vmatprep.subr.mxu0 0.0
        %2198 = vmatpush1.msra.mxu0 %v1727
        %2199 = vmatprep.subr.mxu0 0.0
        %2200 = vmatpush1.msra.mxu0 %v1726
        %2201 = vmatprep.subr.mxu0 0.0
        %2202 = vmatpush1.msra.mxu0 %v1725
        %2203 = vmatprep.subr.mxu0 0.0
        %2204 = vmatpush1.msra.mxu0 %v1724
        %2205 = vmatprep.subr.mxu0 0.0
        %2206 = vmatpush1.msra.mxu0 %v1723
        %2207 = vmatprep.subr.mxu0 0.0
        %2208 = vmatpush1.msra.mxu0 %v1722
        %2209 = vmatprep.subr.mxu0 0.0
        %2210 = vmatpush1.msra.mxu0 %v1721
        %2211 = vmatprep.subr.mxu0 0.0
        %2212 = vmatpush1.msra.mxu0 %v1720
        %2213 = vmatprep.subr.mxu0 0.0
        %2214 = vmatpush2.msra.mxu0 0.0
        %2215 = vmatprep.subr.mxu0 0.0
        %2216 = vmatpush2.msra.mxu0 0.0
        %2217 = vmatprep.subr.mxu0 0.0
        %2218 = vmatpush2.msra.mxu0 0.0
        %2219 = vmatprep.subr.mxu0 0.0
        %2220 = vmatpush2.msra.mxu0 0.0
        %2221 = vmatprep.subr.mxu0 0.0
        %2222 = vmatpush2.msra.mxu0 0.0
        %2223 = vmatprep.subr.mxu0 0.0
        %2224 = vmatpush2.msra.mxu0 0.0
        %2225 = vmatprep.subr.mxu0 0.0
        %2226 = vmatpush2.msra.mxu0 0.0
        %2227 = vmatprep.subr.mxu0 0.0
        %2228 = vmatpush2.msra.mxu0 0.0
        %2229 = vmatprep.subr.mxu0 0.0
        %2230 = vmatpush2.msra.mxu0 0.0
        %2231 = vmatprep.subr.mxu0 0.0
        %2232 = vmatpush2.msra.mxu0 0.0
        %2233 = vmatprep.subr.mxu0 0.0
        %2234 = vmatpush2.msra.mxu0 0.0
        %2235 = vmatprep.subr.mxu0 0.0
        %2236 = vmatpush2.msra.mxu0 0.0
        %2237 = vmatprep.subr.mxu0 0.0
        %2238 = vmatpush2.msra.mxu0 0.0
        %2239 = vmatprep.subr.mxu0 0.0
        %2240 = vmatpush2.msra.mxu0 0.0
        %2241 = vmatprep.subr.mxu0 0.0
        %2242 = vmatpush2.msra.mxu0 0.0
        %2243 = vmatprep.subr.mxu0 0.0
        %2244 = vmatpush2.msra.mxu0 0.0
        %2245 = vmatprep.mubr.f32.mxu0 0.0
        %2246 = vmatmul.mubr.f32.gmra.mxu0 %v2179
        %v2247 = vpop.f32.mrf.mxu0
        %v2248 = vadd.f32 0.0, %v2247
        %v2249 = vpop.f32.mrf.mxu0
        %2250 = vdwg.mxu0
        %v2252 = vsel %vm746, %v2027, 0
        %2254 = vmatprep.subr.mxu0 0.0
        %2255 = vmatpush1.msra.mxu0 0.0
        %2256 = vmatprep.subr.mxu0 0.0
        %2257 = vmatpush1.msra.mxu0 0.0
        %2258 = vmatprep.subr.mxu0 0.0
        %2259 = vmatpush1.msra.mxu0 0.0
        %2260 = vmatprep.subr.mxu0 0.0
        %2261 = vmatpush1.msra.mxu0 0.0
        %2262 = vmatprep.subr.mxu0 0.0
        %2263 = vmatpush1.msra.mxu0 0.0
        %2264 = vmatprep.subr.mxu0 0.0
        %2265 = vmatpush1.msra.mxu0 0.0
        %2266 = vmatprep.subr.mxu0 0.0
        %2267 = vmatpush1.msra.mxu0 0.0
        %2268 = vmatprep.subr.mxu0 0.0
        %2269 = vmatpush1.msra.mxu0 0.0
        %2270 = vmatprep.subr.mxu0 0.0
        %2271 = vmatpush1.msra.mxu0 %v1735
        %2272 = vmatprep.subr.mxu0 0.0
        %2273 = vmatpush1.msra.mxu0 %v1734
        %2274 = vmatprep.subr.mxu0 0.0
        %2275 = vmatpush1.msra.mxu0 %v1733
        %2276 = vmatprep.subr.mxu0 0.0
        %2277 = vmatpush1.msra.mxu0 %v1732
        %2278 = vmatprep.subr.mxu0 0.0
        %2279 = vmatpush1.msra.mxu0 %v1731
        %2280 = vmatprep.subr.mxu0 0.0
        %2281 = vmatpush1.msra.mxu0 %v1730
        %2282 = vmatprep.subr.mxu0 0.0
        %2283 = vmatpush1.msra.mxu0 %v1729
        %2284 = vmatprep.subr.mxu0 0.0
        %2285 = vmatpush1.msra.mxu0 %v1728
        %2286 = vmatprep.subr.mxu0 0.0
        %2287 = vmatpush2.msra.mxu0 0.0
        %2288 = vmatprep.subr.mxu0 0.0
        %2289 = vmatpush2.msra.mxu0 0.0
        %2290 = vmatprep.subr.mxu0 0.0
        %2291 = vmatpush2.msra.mxu0 0.0
        %2292 = vmatprep.subr.mxu0 0.0
        %2293 = vmatpush2.msra.mxu0 0.0
        %2294 = vmatprep.subr.mxu0 0.0
        %2295 = vmatpush2.msra.mxu0 0.0
        %2296 = vmatprep.subr.mxu0 0.0
        %2297 = vmatpush2.msra.mxu0 0.0
        %2298 = vmatprep.subr.mxu0 0.0
        %2299 = vmatpush2.msra.mxu0 0.0
        %2300 = vmatprep.subr.mxu0 0.0
        %2301 = vmatpush2.msra.mxu0 0.0
        %2302 = vmatprep.subr.mxu0 0.0
        %2303 = vmatpush2.msra.mxu0 0.0
        %2304 = vmatprep.subr.mxu0 0.0
        %2305 = vmatpush2.msra.mxu0 0.0
        %2306 = vmatprep.subr.mxu0 0.0
        %2307 = vmatpush2.msra.mxu0 0.0
        %2308 = vmatprep.subr.mxu0 0.0
        %2309 = vmatpush2.msra.mxu0 0.0
        %2310 = vmatprep.subr.mxu0 0.0
        %2311 = vmatpush2.msra.mxu0 0.0
        %2312 = vmatprep.subr.mxu0 0.0
        %2313 = vmatpush2.msra.mxu0 0.0
        %2314 = vmatprep.subr.mxu0 0.0
        %2315 = vmatpush2.msra.mxu0 0.0
        %2316 = vmatprep.subr.mxu0 0.0
        %2317 = vmatpush2.msra.mxu0 0.0
        %2318 = vmatprep.mubr.f32.mxu0 0.0
        %2319 = vmatmul.mubr.f32.gmra.mxu0 %v2252
        %v2320 = vpop.f32.mrf.mxu0
        %v2321 = vadd.f32 0.0, %v2320
        %v2322 = vpop.f32.mrf.mxu0
        %2323 = vdwg.mxu0
        %v2325 = vsel %vm746, %v2028, 0
        %2327 = vmatprep.subr.mxu0 0.0
        %2328 = vmatpush1.msra.mxu0 0.0
        %2329 = vmatprep.subr.mxu0 0.0
        %2330 = vmatpush1.msra.mxu0 0.0
        %2331 = vmatprep.subr.mxu0 0.0
        %2332 = vmatpush1.msra.mxu0 0.0
        %2333 = vmatprep.subr.mxu0 0.0
        %2334 = vmatpush1.msra.mxu0 0.0
        %2335 = vmatprep.subr.mxu0 0.0
        %2336 = vmatpush1.msra.mxu0 0.0
        %2337 = vmatprep.subr.mxu0 0.0
        %2338 = vmatpush1.msra.mxu0 0.0
        %2339 = vmatprep.subr.mxu0 0.0
        %2340 = vmatpush1.msra.mxu0 0.0
        %2341 = vmatprep.subr.mxu0 0.0
        %2342 = vmatpush1.msra.mxu0 0.0
        %2343 = vmatprep.subr.mxu0 0.0
        %2344 = vmatpush1.msra.mxu0 %v1743
        %2345 = vmatprep.subr.mxu0 0.0
        %2346 = vmatpush1.msra.mxu0 %v1742
        %2347 = vmatprep.subr.mxu0 0.0
        %2348 = vmatpush1.msra.mxu0 %v1741
        %2349 = vmatprep.subr.mxu0 0.0
        %2350 = vmatpush1.msra.mxu0 %v1740
        %2351 = vmatprep.subr.mxu0 0.0
        %2352 = vmatpush1.msra.mxu0 %v1739
        %2353 = vmatprep.subr.mxu0 0.0
        %2354 = vmatpush1.msra.mxu0 %v1738
        %2355 = vmatprep.subr.mxu0 0.0
        %2356 = vmatpush1.msra.mxu0 %v1737
        %2357 = vmatprep.subr.mxu0 0.0
        %2358 = vmatpush1.msra.mxu0 %v1736
        %2359 = vmatprep.subr.mxu0 0.0
        %2360 = vmatpush2.msra.mxu0 0.0
        %2361 = vmatprep.subr.mxu0 0.0
        %2362 = vmatpush2.msra.mxu0 0.0
        %2363 = vmatprep.subr.mxu0 0.0
        %2364 = vmatpush2.msra.mxu0 0.0
        %2365 = vmatprep.subr.mxu0 0.0
        %2366 = vmatpush2.msra.mxu0 0.0
        %2367 = vmatprep.subr.mxu0 0.0
        %2368 = vmatpush2.msra.mxu0 0.0
        %2369 = vmatprep.subr.mxu0 0.0
        %2370 = vmatpush2.msra.mxu0 0.0
        %2371 = vmatprep.subr.mxu0 0.0
        %2372 = vmatpush2.msra.mxu0 0.0
        %2373 = vmatprep.subr.mxu0 0.0
        %2374 = vmatpush2.msra.mxu0 0.0
        %2375 = vmatprep.subr.mxu0 0.0
        %2376 = vmatpush2.msra.mxu0 0.0
        %2377 = vmatprep.subr.mxu0 0.0
        %2378 = vmatpush2.msra.mxu0 0.0
        %2379 = vmatprep.subr.mxu0 0.0
        %2380 = vmatpush2.msra.mxu0 0.0
        %2381 = vmatprep.subr.mxu0 0.0
        %2382 = vmatpush2.msra.mxu0 0.0
        %2383 = vmatprep.subr.mxu0 0.0
        %2384 = vmatpush2.msra.mxu0 0.0
        %2385 = vmatprep.subr.mxu0 0.0
        %2386 = vmatpush2.msra.mxu0 0.0
        %2387 = vmatprep.subr.mxu0 0.0
        %2388 = vmatpush2.msra.mxu0 0.0
        %2389 = vmatprep.subr.mxu0 0.0
        %2390 = vmatpush2.msra.mxu0 0.0
        %2391 = vmatprep.mubr.f32.mxu0 0.0
        %2392 = vmatmul.mubr.f32.gmra.mxu0 %v2325
        %v2393 = vpop.f32.mrf.mxu0
        %v2394 = vadd.f32 0.0, %v2393
        %v2395 = vpop.f32.mrf.mxu0
        %2396 = vdwg.mxu0
        %v2398 = vsel %vm746, %v2029, 0
        %2400 = vmatprep.subr.mxu0 0.0
        %2401 = vmatpush1.msra.mxu0 0.0
        %2402 = vmatprep.subr.mxu0 0.0
        %2403 = vmatpush1.msra.mxu0 0.0
        %2404 = vmatprep.subr.mxu0 0.0
        %2405 = vmatpush1.msra.mxu0 0.0
        %2406 = vmatprep.subr.mxu0 0.0
        %2407 = vmatpush1.msra.mxu0 0.0
        %2408 = vmatprep.subr.mxu0 0.0
        %2409 = vmatpush1.msra.mxu0 0.0
        %2410 = vmatprep.subr.mxu0 0.0
        %2411 = vmatpush1.msra.mxu0 0.0
        %2412 = vmatprep.subr.mxu0 0.0
        %2413 = vmatpush1.msra.mxu0 0.0
        %2414 = vmatprep.subr.mxu0 0.0
        %2415 = vmatpush1.msra.mxu0 0.0
        %2416 = vmatprep.subr.mxu0 0.0
        %2417 = vmatpush1.msra.mxu0 %v1751
        %2418 = vmatprep.subr.mxu0 0.0
        %2419 = vmatpush1.msra.mxu0 %v1750
        %2420 = vmatprep.subr.mxu0 0.0
        %2421 = vmatpush1.msra.mxu0 %v1749
        %2422 = vmatprep.subr.mxu0 0.0
        %2423 = vmatpush1.msra.mxu0 %v1748
        %2424 = vmatprep.subr.mxu0 0.0
        %2425 = vmatpush1.msra.mxu0 %v1747
        %2426 = vmatprep.subr.mxu0 0.0
        %2427 = vmatpush1.msra.mxu0 %v1746
        %2428 = vmatprep.subr.mxu0 0.0
        %2429 = vmatpush1.msra.mxu0 %v1745
        %2430 = vmatprep.subr.mxu0 0.0
        %2431 = vmatpush1.msra.mxu0 %v1744
        %2432 = vmatprep.subr.mxu0 0.0
        %2433 = vmatpush2.msra.mxu0 0.0
        %2434 = vmatprep.subr.mxu0 0.0
        %2435 = vmatpush2.msra.mxu0 0.0
        %2436 = vmatprep.subr.mxu0 0.0
        %2437 = vmatpush2.msra.mxu0 0.0
        %2438 = vmatprep.subr.mxu0 0.0
        %2439 = vmatpush2.msra.mxu0 0.0
        %2440 = vmatprep.subr.mxu0 0.0
        %2441 = vmatpush2.msra.mxu0 0.0
        %2442 = vmatprep.subr.mxu0 0.0
        %2443 = vmatpush2.msra.mxu0 0.0
        %2444 = vmatprep.subr.mxu0 0.0
        %2445 = vmatpush2.msra.mxu0 0.0
        %2446 = vmatprep.subr.mxu0 0.0
        %2447 = vmatpush2.msra.mxu0 0.0
        %2448 = vmatprep.subr.mxu0 0.0
        %2449 = vmatpush2.msra.mxu0 0.0
        %2450 = vmatprep.subr.mxu0 0.0
        %2451 = vmatpush2.msra.mxu0 0.0
        %2452 = vmatprep.subr.mxu0 0.0
        %2453 = vmatpush2.msra.mxu0 0.0
        %2454 = vmatprep.subr.mxu0 0.0
        %2455 = vmatpush2.msra.mxu0 0.0
        %2456 = vmatprep.subr.mxu0 0.0
        %2457 = vmatpush2.msra.mxu0 0.0
        %2458 = vmatprep.subr.mxu0 0.0
        %2459 = vmatpush2.msra.mxu0 0.0
        %2460 = vmatprep.subr.mxu0 0.0
        %2461 = vmatpush2.msra.mxu0 0.0
        %2462 = vmatprep.subr.mxu0 0.0
        %2463 = vmatpush2.msra.mxu0 0.0
        %2464 = vmatprep.mubr.f32.mxu0 0.0
        %2465 = vmatmul.mubr.f32.gmra.mxu0 %v2398
        %v2466 = vpop.f32.mrf.mxu0
        %v2467 = vadd.f32 0.0, %v2466
        %v2468 = vpop.f32.mrf.mxu0
        %2469 = vdwg.mxu0
        %v2471 = vsel %vm746, %v2030, 0
        %2473 = vmatprep.subr.mxu0 0.0
        %2474 = vmatpush1.msra.mxu0 0.0
        %2475 = vmatprep.subr.mxu0 0.0
        %2476 = vmatpush1.msra.mxu0 0.0
        %2477 = vmatprep.subr.mxu0 0.0
        %2478 = vmatpush1.msra.mxu0 0.0
        %2479 = vmatprep.subr.mxu0 0.0
        %2480 = vmatpush1.msra.mxu0 0.0
        %2481 = vmatprep.subr.mxu0 0.0
        %2482 = vmatpush1.msra.mxu0 0.0
        %2483 = vmatprep.subr.mxu0 0.0
        %2484 = vmatpush1.msra.mxu0 0.0
        %2485 = vmatprep.subr.mxu0 0.0
        %2486 = vmatpush1.msra.mxu0 0.0
        %2487 = vmatprep.subr.mxu0 0.0
        %2488 = vmatpush1.msra.mxu0 0.0
        %2489 = vmatprep.subr.mxu0 0.0
        %2490 = vmatpush1.msra.mxu0 %v1759
        %2491 = vmatprep.subr.mxu0 0.0
        %2492 = vmatpush1.msra.mxu0 %v1758
        %2493 = vmatprep.subr.mxu0 0.0
        %2494 = vmatpush1.msra.mxu0 %v1757
        %2495 = vmatprep.subr.mxu0 0.0
        %2496 = vmatpush1.msra.mxu0 %v1756
        %2497 = vmatprep.subr.mxu0 0.0
        %2498 = vmatpush1.msra.mxu0 %v1755
        %2499 = vmatprep.subr.mxu0 0.0
        %2500 = vmatpush1.msra.mxu0 %v1754
        %2501 = vmatprep.subr.mxu0 0.0
        %2502 = vmatpush1.msra.mxu0 %v1753
        %2503 = vmatprep.subr.mxu0 0.0
        %2504 = vmatpush1.msra.mxu0 %v1752
        %2505 = vmatprep.subr.mxu0 0.0
        %2506 = vmatpush2.msra.mxu0 0.0
        %2507 = vmatprep.subr.mxu0 0.0
        %2508 = vmatpush2.msra.mxu0 0.0
        %2509 = vmatprep.subr.mxu0 0.0
        %2510 = vmatpush2.msra.mxu0 0.0
        %2511 = vmatprep.subr.mxu0 0.0
        %2512 = vmatpush2.msra.mxu0 0.0
        %2513 = vmatprep.subr.mxu0 0.0
        %2514 = vmatpush2.msra.mxu0 0.0
        %2515 = vmatprep.subr.mxu0 0.0
        %2516 = vmatpush2.msra.mxu0 0.0
        %2517 = vmatprep.subr.mxu0 0.0
        %2518 = vmatpush2.msra.mxu0 0.0
        %2519 = vmatprep.subr.mxu0 0.0
        %2520 = vmatpush2.msra.mxu0 0.0
        %2521 = vmatprep.subr.mxu0 0.0
        %2522 = vmatpush2.msra.mxu0 0.0
        %2523 = vmatprep.subr.mxu0 0.0
        %2524 = vmatpush2.msra.mxu0 0.0
        %2525 = vmatprep.subr.mxu0 0.0
        %2526 = vmatpush2.msra.mxu0 0.0
        %2527 = vmatprep.subr.mxu0 0.0
        %2528 = vmatpush2.msra.mxu0 0.0
        %2529 = vmatprep.subr.mxu0 0.0
        %2530 = vmatpush2.msra.mxu0 0.0
        %2531 = vmatprep.subr.mxu0 0.0
        %2532 = vmatpush2.msra.mxu0 0.0
        %2533 = vmatprep.subr.mxu0 0.0
        %2534 = vmatpush2.msra.mxu0 0.0
        %2535 = vmatprep.subr.mxu0 0.0
        %2536 = vmatpush2.msra.mxu0 0.0
        %2537 = vmatprep.mubr.f32.mxu0 0.0
        %2538 = vmatmul.mubr.f32.gmra.mxu0 %v2471
        %v2539 = vpop.f32.mrf.mxu0
        %v2540 = vadd.f32 0.0, %v2539
        %v2541 = vpop.f32.mrf.mxu0
        %2542 = vdwg.mxu0
        %v2544 = vsel %vm746, %v2031, 0
        %2546 = vmatprep.subr.mxu0 0.0
        %2547 = vmatpush1.msra.mxu0 0.0
        %2548 = vmatprep.subr.mxu0 0.0
        %2549 = vmatpush1.msra.mxu0 0.0
        %2550 = vmatprep.subr.mxu0 0.0
        %2551 = vmatpush1.msra.mxu0 0.0
        %2552 = vmatprep.subr.mxu0 0.0
        %2553 = vmatpush1.msra.mxu0 0.0
        %2554 = vmatprep.subr.mxu0 0.0
        %2555 = vmatpush1.msra.mxu0 0.0
        %2556 = vmatprep.subr.mxu0 0.0
        %2557 = vmatpush1.msra.mxu0 0.0
        %2558 = vmatprep.subr.mxu0 0.0
        %2559 = vmatpush1.msra.mxu0 0.0
        %2560 = vmatprep.subr.mxu0 0.0
        %2561 = vmatpush1.msra.mxu0 0.0
        %2562 = vmatprep.subr.mxu0 0.0
        %2563 = vmatpush1.msra.mxu0 %v1767
        %2564 = vmatprep.subr.mxu0 0.0
        %2565 = vmatpush1.msra.mxu0 %v1766
        %2566 = vmatprep.subr.mxu0 0.0
        %2567 = vmatpush1.msra.mxu0 %v1765
        %2568 = vmatprep.subr.mxu0 0.0
        %2569 = vmatpush1.msra.mxu0 %v1764
        %2570 = vmatprep.subr.mxu0 0.0
        %2571 = vmatpush1.msra.mxu0 %v1763
        %2572 = vmatprep.subr.mxu0 0.0
        %2573 = vmatpush1.msra.mxu0 %v1762
        %2574 = vmatprep.subr.mxu0 0.0
        %2575 = vmatpush1.msra.mxu0 %v1761
        %2576 = vmatprep.subr.mxu0 0.0
        %2577 = vmatpush1.msra.mxu0 %v1760
        %2578 = vmatprep.subr.mxu0 0.0
        %2579 = vmatpush2.msra.mxu0 0.0
        %2580 = vmatprep.subr.mxu0 0.0
        %2581 = vmatpush2.msra.mxu0 0.0
        %2582 = vmatprep.subr.mxu0 0.0
        %2583 = vmatpush2.msra.mxu0 0.0
        %2584 = vmatprep.subr.mxu0 0.0
        %2585 = vmatpush2.msra.mxu0 0.0
        %2586 = vmatprep.subr.mxu0 0.0
        %2587 = vmatpush2.msra.mxu0 0.0
        %2588 = vmatprep.subr.mxu0 0.0
        %2589 = vmatpush2.msra.mxu0 0.0
        %2590 = vmatprep.subr.mxu0 0.0
        %2591 = vmatpush2.msra.mxu0 0.0
        %2592 = vmatprep.subr.mxu0 0.0
        %2593 = vmatpush2.msra.mxu0 0.0
        %2594 = vmatprep.subr.mxu0 0.0
        %2595 = vmatpush2.msra.mxu0 0.0
        %2596 = vmatprep.subr.mxu0 0.0
        %2597 = vmatpush2.msra.mxu0 0.0
        %2598 = vmatprep.subr.mxu0 0.0
        %2599 = vmatpush2.msra.mxu0 0.0
        %2600 = vmatprep.subr.mxu0 0.0
        %2601 = vmatpush2.msra.mxu0 0.0
        %2602 = vmatprep.subr.mxu0 0.0
        %2603 = vmatpush2.msra.mxu0 0.0
        %2604 = vmatprep.subr.mxu0 0.0
        %2605 = vmatpush2.msra.mxu0 0.0
        %2606 = vmatprep.subr.mxu0 0.0
        %2607 = vmatpush2.msra.mxu0 0.0
        %2608 = vmatprep.subr.mxu0 0.0
        %2609 = vmatpush2.msra.mxu0 0.0
        %2610 = vmatprep.mubr.f32.mxu0 0.0
        %2611 = vmatmul.mubr.f32.gmra.mxu0 %v2544
        %v2612 = vpop.f32.mrf.mxu0
        %v2613 = vadd.f32 0.0, %v2612
        %v2614 = vpop.f32.mrf.mxu0
        %2615 = vdwg.mxu0
        %v2624 = vrot.slane %v2175, 7
        %v2625 = vsel %vm1340, %v2624, %v2102
        %v2626 = vrot.slane %v2248, 6
        %v2627 = vsel %vm1343, %v2626, %v2625
        %v2628 = vrot.slane %v2321, 5
        %v2629 = vsel %vm1346, %v2628, %v2627
        %v2630 = vrot.slane %v2394, 4
        %v2631 = vsel %vm1349, %v2630, %v2629
        %v2632 = vrot.slane %v2467, 3
        %v2633 = vsel %vm1352, %v2632, %v2631
        %v2634 = vrot.slane %v2540, 2
        %v2635 = vsel %vm1355, %v2634, %v2633
        %v2636 = vrot.slane %v2613, 1
        %v2637 = vsel %vm1358, %v2636, %v2635
        %2639 = vrot.lane.b32.xlu0 %v2637, 96
        %v2640 = vpop.permute.xlu0 %2639
        %v2643 = vsel %vm1364, %v1769, 0
        %v2646 = vsel %vm1364, %v1770, 0
        %v2649 = vsel %vm1364, %v1771, 0
        %v2652 = vsel %vm1364, %v1772, 0
        %2654 = vmatprep.subr.mxu0 0.0
        %2655 = vmatpush1.msra.mxu0 0.0
        %2656 = vmatprep.subr.mxu0 0.0
        %2657 = vmatpush1.msra.mxu0 0.0
        %2658 = vmatprep.subr.mxu0 0.0
        %2659 = vmatpush1.msra.mxu0 0.0
        %2660 = vmatprep.subr.mxu0 0.0
        %2661 = vmatpush1.msra.mxu0 0.0
        %2662 = vmatprep.subr.mxu0 0.0
        %2663 = vmatpush1.msra.mxu0 0.0
        %2664 = vmatprep.subr.mxu0 0.0
        %2665 = vmatpush1.msra.mxu0 0.0
        %2666 = vmatprep.subr.mxu0 0.0
        %2667 = vmatpush1.msra.mxu0 0.0
        %2668 = vmatprep.subr.mxu0 0.0
        %2669 = vmatpush1.msra.mxu0 0.0
        %2670 = vmatprep.subr.mxu0 0.0
        %2671 = vmatpush1.msra.mxu0 0.0
        %2672 = vmatprep.subr.mxu0 0.0
        %2673 = vmatpush1.msra.mxu0 0.0
        %2674 = vmatprep.subr.mxu0 0.0
        %2675 = vmatpush1.msra.mxu0 0.0
        %2676 = vmatprep.subr.mxu0 0.0
        %2677 = vmatpush1.msra.mxu0 %v1379
        %2678 = vmatprep.subr.mxu0 0.0
        %2679 = vmatpush1.msra.mxu0 %v1702
        %2680 = vmatprep.subr.mxu0 0.0
        %2681 = vmatpush1.msra.mxu0 %v1701
        %2682 = vmatprep.subr.mxu0 0.0
        %2683 = vmatpush1.msra.mxu0 %v1700
        %2684 = vmatprep.subr.mxu0 0.0
        %2685 = vmatpush1.msra.mxu0 %v1699
        %2686 = vmatprep.subr.mxu0 0.0
        %2687 = vmatpush2.msra.mxu0 0.0
        %2688 = vmatprep.subr.mxu0 0.0
        %2689 = vmatpush2.msra.mxu0 0.0
        %2690 = vmatprep.subr.mxu0 0.0
        %2691 = vmatpush2.msra.mxu0 0.0
        %2692 = vmatprep.subr.mxu0 0.0
        %2693 = vmatpush2.msra.mxu0 0.0
        %2694 = vmatprep.subr.mxu0 0.0
        %2695 = vmatpush2.msra.mxu0 0.0
        %2696 = vmatprep.subr.mxu0 0.0
        %2697 = vmatpush2.msra.mxu0 0.0
        %2698 = vmatprep.subr.mxu0 0.0
        %2699 = vmatpush2.msra.mxu0 0.0
        %2700 = vmatprep.subr.mxu0 0.0
        %2701 = vmatpush2.msra.mxu0 0.0
        %2702 = vmatprep.subr.mxu0 0.0
        %2703 = vmatpush2.msra.mxu0 0.0
        %2704 = vmatprep.subr.mxu0 0.0
        %2705 = vmatpush2.msra.mxu0 0.0
        %2706 = vmatprep.subr.mxu0 0.0
        %2707 = vmatpush2.msra.mxu0 0.0
        %2708 = vmatprep.subr.mxu0 0.0
        %2709 = vmatpush2.msra.mxu0 0.0
        %2710 = vmatprep.subr.mxu0 0.0
        %2711 = vmatpush2.msra.mxu0 0.0
        %2712 = vmatprep.subr.mxu0 0.0
        %2713 = vmatpush2.msra.mxu0 0.0
        %2714 = vmatprep.subr.mxu0 0.0
        %2715 = vmatpush2.msra.mxu0 0.0
        %2716 = vmatprep.subr.mxu0 0.0
        %2717 = vmatpush2.msra.mxu0 0.0
        %2718 = vmatprep.mubr.f32.mxu0 0.0
        %2719 = vmatmul.mubr.f32.gmra.mxu0 %v2643
        %v2720 = vpop.f32.mrf.mxu0
        %v2721 = vadd.f32 0.0, %v2720
        %v2722 = vpop.f32.mrf.mxu0
        %2723 = vmatprep.mubr.f32.mxu0 0.0
        %2724 = vmatmul.mubr.f32.gmra.mxu0 %v2646
        %v2725 = vpop.f32.mrf.mxu0
        %v2726 = vadd.f32 0.0, %v2725
        %v2727 = vpop.f32.mrf.mxu0
        %2728 = vmatprep.mubr.f32.mxu0 0.0
        %2729 = vmatmul.mubr.f32.gmra.mxu0 %v2649
        %v2730 = vpop.f32.mrf.mxu0
        %v2731 = vadd.f32 0.0, %v2730
        %v2732 = vpop.f32.mrf.mxu0
        %2733 = vmatprep.mubr.f32.mxu0 0.0
        %2734 = vmatmul.mubr.f32.gmra.mxu0 %v2652
        %v2735 = vpop.f32.mrf.mxu0
        %v2736 = vadd.f32 0.0, %v2735
        %v2737 = vpop.f32.mrf.mxu0
        %2738 = vdwg.mxu0
        %2739 = vxpose.xlu0.b32.start [1/16] %v2637, 128
        %2740 = vxpose.xlu0.b32.cont [2/16] %v2640, 128
        %2741 = vxpose.xlu0.b32.cont [3/16] 0.0, 128
        %2742 = vxpose.xlu0.b32.cont [4/16] 0.0, 128
        %2743 = vxpose.xlu0.b32.cont [5/16] 0.0, 128
        %2744 = vxpose.xlu0.b32.cont [6/16] 0.0, 128
        %2745 = vxpose.xlu0.b32.cont [7/16] 0.0, 128
        %2746 = vxpose.xlu0.b32.cont [8/16] 0.0, 128
        %2747 = vxpose.xlu0.b32.cont [9/16] 0.0, 128
        %2748 = vxpose.xlu0.b32.cont [10/16] 0.0, 128
        %2749 = vxpose.xlu0.b32.cont [11/16] 0.0, 128
        %2750 = vxpose.xlu0.b32.cont [12/16] 0.0, 128
        %2751 = vxpose.xlu0.b32.cont [13/16] 0.0, 128
        %2752 = vxpose.xlu0.b32.cont [14/16] 0.0, 128
        %2753 = vxpose.xlu0.b32.cont [15/16] 0.0, 128
        %2754 = vxpose.xlu0.b32.end [16/16] 0.0, 128
        %v2755 = vpop.trf.xlu0
        %v2756 = vpop.trf.xlu0
        %v2757 = vpop.trf.xlu0
        %v2758 = vpop.trf.xlu0
        %v2759 = vpop.trf.xlu0
        %v2760 = vpop.trf.xlu0
        %v2761 = vpop.trf.xlu0
        %v2762 = vpop.trf.xlu0
        %v2763 = vpop.trf.xlu0
        %v2764 = vpop.trf.xlu0
        %v2765 = vpop.trf.xlu0
        %v2766 = vpop.trf.xlu0
        %v2767 = vpop.trf.xlu0
        %v2768 = vpop.trf.xlu0
        %v2769 = vpop.trf.xlu0
        %v2770 = vpop.trf.xlu0
        %v2772 = vsel %vm479, %v2755, 0
        %v2775 = vsel %vm479, %v2756, 0
        %v2778 = vsel %vm479, %v2757, 0
        %v2781 = vsel %vm479, %v2758, 0
        %2783 = vmatprep.subr.mxu0 0.0
        %2784 = vmatpush1.msra.mxu0 0.0
        %2785 = vmatprep.subr.mxu0 0.0
        %2786 = vmatpush1.msra.mxu0 0.0
        %2787 = vmatprep.subr.mxu0 0.0
        %2788 = vmatpush1.msra.mxu0 0.0
        %2789 = vmatprep.subr.mxu0 0.0
        %2790 = vmatpush1.msra.mxu0 0.0
        %2791 = vmatprep.subr.mxu0 0.0
        %2792 = vmatpush1.msra.mxu0 0.0
        %2793 = vmatprep.subr.mxu0 0.0
        %2794 = vmatpush1.msra.mxu0 0.0
        %2795 = vmatprep.subr.mxu0 0.0
        %2796 = vmatpush1.msra.mxu0 0.0
        %2797 = vmatprep.subr.mxu0 0.0
        %2798 = vmatpush1.msra.mxu0 0.0
        %2799 = vmatprep.subr.mxu0 0.0
        %2800 = vmatpush1.msra.mxu0 0.0
        %2801 = vmatprep.subr.mxu0 0.0
        %2802 = vmatpush1.msra.mxu0 0.0
        %2803 = vmatprep.subr.mxu0 0.0
        %2804 = vmatpush1.msra.mxu0 0.0
        %2805 = vmatprep.subr.mxu0 0.0
        %2806 = vmatpush1.msra.mxu0 0.0
        %2807 = vmatprep.subr.mxu0 0.0
        %2808 = vmatpush1.msra.mxu0 0.0
        %2809 = vmatprep.subr.mxu0 0.0
        %2810 = vmatpush1.msra.mxu0 0.0
        %2811 = vmatprep.subr.mxu0 0.0
        %2812 = vmatpush1.msra.mxu0 %v303
        %2813 = vmatprep.subr.mxu0 0.0
        %2814 = vmatpush1.msra.mxu0 %v302
        %2815 = vmatprep.subr.mxu0 0.0
        %2816 = vmatpush2.msra.mxu0 0.0
        %2817 = vmatprep.subr.mxu0 0.0
        %2818 = vmatpush2.msra.mxu0 0.0
        %2819 = vmatprep.subr.mxu0 0.0
        %2820 = vmatpush2.msra.mxu0 0.0
        %2821 = vmatprep.subr.mxu0 0.0
        %2822 = vmatpush2.msra.mxu0 0.0
        %2823 = vmatprep.subr.mxu0 0.0
        %2824 = vmatpush2.msra.mxu0 0.0
        %2825 = vmatprep.subr.mxu0 0.0
        %2826 = vmatpush2.msra.mxu0 0.0
        %2827 = vmatprep.subr.mxu0 0.0
        %2828 = vmatpush2.msra.mxu0 0.0
        %2829 = vmatprep.subr.mxu0 0.0
        %2830 = vmatpush2.msra.mxu0 0.0
        %2831 = vmatprep.subr.mxu0 0.0
        %2832 = vmatpush2.msra.mxu0 0.0
        %2833 = vmatprep.subr.mxu0 0.0
        %2834 = vmatpush2.msra.mxu0 0.0
        %2835 = vmatprep.subr.mxu0 0.0
        %2836 = vmatpush2.msra.mxu0 0.0
        %2837 = vmatprep.subr.mxu0 0.0
        %2838 = vmatpush2.msra.mxu0 0.0
        %2839 = vmatprep.subr.mxu0 0.0
        %2840 = vmatpush2.msra.mxu0 0.0
        %2841 = vmatprep.subr.mxu0 0.0
        %2842 = vmatpush2.msra.mxu0 0.0
        %2843 = vmatprep.subr.mxu0 0.0
        %2844 = vmatpush2.msra.mxu0 0.0
        %2845 = vmatprep.subr.mxu0 0.0
        %2846 = vmatpush2.msra.mxu0 0.0
        %2847 = vmatprep.mubr.f32.mxu0 0.0
        %2848 = vmatmul.mubr.f32.gmra.mxu0 %v2772
        %v2849 = vpop.f32.mrf.mxu0
        %v2850 = vadd.f32 %v2721, %v2849
        %v2851 = vpop.f32.mrf.mxu0
        %2852 = vmatprep.mubr.f32.mxu0 0.0
        %2853 = vmatmul.mubr.f32.gmra.mxu0 %v2775
        %v2854 = vpop.f32.mrf.mxu0
        %v2855 = vadd.f32 %v2726, %v2854
        %v2856 = vpop.f32.mrf.mxu0
        %2857 = vmatprep.mubr.f32.mxu0 0.0
        %2858 = vmatmul.mubr.f32.gmra.mxu0 %v2778
        %v2859 = vpop.f32.mrf.mxu0
        %v2860 = vadd.f32 %v2731, %v2859
        %v2861 = vpop.f32.mrf.mxu0
        %2862 = vmatprep.mubr.f32.mxu0 0.0
        %2863 = vmatmul.mubr.f32.gmra.mxu0 %v2781
        %v2864 = vpop.f32.mrf.mxu0
        %v2865 = vadd.f32 %v2736, %v2864
        %v2866 = vpop.f32.mrf.mxu0
        %2867 = vdwg.mxu0
        %v2868 = vmul.f32 %v2850, 0.5
        %v2869 = vmul.f32 %v2855, 0.5
        %v2870 = vmul.f32 %v2860, 0.5
        %v2871 = vmul.f32 %v2865, 0.5
        %v2872 = vmul.f32 %v2850, 0.70710677
        %v2873 = vmul.f32 %v2855, 0.70710677
        %v2874 = vmul.f32 %v2860, 0.70710677
        %v2875 = vmul.f32 %v2865, 0.70710677
        %v2876 = vand.u32 2147483647, %v2872
        %v2877 = vand.u32 2147483647, %v2873
        %v2878 = vand.u32 2147483647, %v2874
        %v2879 = vand.u32 2147483647, %v2875
        %v2880 = vmul.f32 %v2876, 0.3275911
        %v2881 = vmul.f32 %v2877, 0.3275911
        %v2882 = vmul.f32 %v2878, 0.3275911
        %v2883 = vmul.f32 %v2879, 0.3275911
        %v2884 = vadd.f32 %v2880, 1.0
        %v2885 = vadd.f32 %v2881, 1.0
        %v2886 = vadd.f32 %v2882, 1.0
        %v2887 = vadd.f32 %v2883, 1.0
        %v2888 = vrcp.pop %v2884
        %v2889 = vmul.f32 1.0, %v2888
        %v2890 = vrcp.pop %v2885
        %v2891 = vmul.f32 1.0, %v2890
        %v2892 = vrcp.pop %v2886
        %v2893 = vmul.f32 1.0, %v2892
        %v2894 = vrcp.pop %v2887
        %v2895 = vmul.f32 1.0, %v2894
        %v2896 = vmul.f32 %v2889, 1.0614054
        %v2897 = vmul.f32 %v2891, 1.0614054
        %v2898 = vmul.f32 %v2893, 1.0614054
        %v2899 = vmul.f32 %v2895, 1.0614054
        %v2900 = vadd.f32 %v2896, -1.4531521
        %v2901 = vadd.f32 %v2897, -1.4531521
        %v2902 = vadd.f32 %v2898, -1.4531521
        %v2903 = vadd.f32 %v2899, -1.4531521
        %v2904 = vmul.f32 %v2900, %v2889
        %v2905 = vmul.f32 %v2901, %v2891
        %v2906 = vmul.f32 %v2902, %v2893
        %v2907 = vmul.f32 %v2903, %v2895
        %v2908 = vadd.f32 %v2904, 1.4214138
        %v2909 = vadd.f32 %v2905, 1.4214138
        %v2910 = vadd.f32 %v2906, 1.4214138
        %v2911 = vadd.f32 %v2907, 1.4214138
        %v2912 = vmul.f32 %v2908, %v2889
        %v2913 = vmul.f32 %v2909, %v2891
        %v2914 = vmul.f32 %v2910, %v2893
        %v2915 = vmul.f32 %v2911, %v2895
        %v2916 = vadd.f32 %v2912, -0.28449672
        %v2917 = vadd.f32 %v2913, -0.28449672
        %v2918 = vadd.f32 %v2914, -0.28449672
        %v2919 = vadd.f32 %v2915, -0.28449672
        %v2920 = vmul.f32 %v2916, %v2889
        %v2921 = vmul.f32 %v2917, %v2891
        %v2922 = vmul.f32 %v2918, %v2893
        %v2923 = vmul.f32 %v2919, %v2895
        %v2924 = vadd.f32 %v2920, 0.2548296
        %v2925 = vadd.f32 %v2921, 0.2548296
        %v2926 = vadd.f32 %v2922, 0.2548296
        %v2927 = vadd.f32 %v2923, 0.2548296
        %v2928 = vmul.f32 %v2924, %v2889
        %v2929 = vmul.f32 %v2925, %v2891
        %v2930 = vmul.f32 %v2926, %v2893
        %v2931 = vmul.f32 %v2927, %v2895
        %v2932 = vsub.f32 0.0, %v2876
        %v2933 = vsub.f32 0.0, %v2877
        %v2934 = vsub.f32 0.0, %v2878
        %v2935 = vsub.f32 0.0, %v2879
        %v2936 = vmul.f32 %v2932, %v2876
        %v2937 = vmul.f32 %v2933, %v2877
        %v2938 = vmul.f32 %v2934, %v2878
        %v2939 = vmul.f32 %v2935, %v2879
        %v2940 = vmul.f32 %v2936, 1.442695
        %v2941 = vpow.pop %v2940
        %v2942 = vmul.f32 %v2937, 1.442695
        %v2943 = vpow.pop %v2942
        %v2944 = vmul.f32 %v2938, 1.442695
        %v2945 = vpow.pop %v2944
        %v2946 = vmul.f32 %v2939, 1.442695
        %v2947 = vpow.pop %v2946
        %v2948 = vmul.f32 %v2928, %v2941
        %v2949 = vmul.f32 %v2929, %v2943
        %v2950 = vmul.f32 %v2930, %v2945
        %v2951 = vmul.f32 %v2931, %v2947
        %v2952 = vsub.f32 1.0, %v2948
        %v2953 = vsub.f32 1.0, %v2949
        %v2954 = vsub.f32 1.0, %v2950
        %v2955 = vsub.f32 1.0, %v2951
        %vm2956 = vcmp.ge.f32.partialorder %v2872, 0.0
        %vm2957 = vcmp.ge.f32.partialorder %v2873, 0.0
        %vm2958 = vcmp.ge.f32.partialorder %v2874, 0.0
        %vm2959 = vcmp.ge.f32.partialorder %v2875, 0.0
        %v2960 = vsub.f32 0.0, %v2952
        %v2961 = vsub.f32 0.0, %v2953
        %v2962 = vsub.f32 0.0, %v2954
        %v2963 = vsub.f32 0.0, %v2955
        %v2964 = vsel %vm2956, %v2952, %v2960
        %v2965 = vsel %vm2957, %v2953, %v2961
        %v2966 = vsel %vm2958, %v2954, %v2962
        %v2967 = vsel %vm2959, %v2955, %v2963
        %v2968 = vadd.f32 %v2964, 1.0
        %v2969 = vadd.f32 %v2965, 1.0
        %v2970 = vadd.f32 %v2966, 1.0
        %v2971 = vadd.f32 %v2967, 1.0
        %v2972 = vmul.f32 %v2868, %v2968
        %v2973 = vmul.f32 %v2869, %v2969
        %v2974 = vmul.f32 %v2870, %v2970
        %v2975 = vmul.f32 %v2871, %v2971
        %s2976 = scalar_lea.vmem %s2, 1024
        %v2977 = vld [vmem:[%s2976] sm:$0xff]
        %v2978 = vld [vmem:[%s2976 + $0x8] sm:$0xff]
        %v2979 = vld [vmem:[%s2976 + $0x10] sm:$0xff]
        %v2980 = vld [vmem:[%s2976 + $0x18] sm:$0xff]
        %v2981 = vld [vmem:[%s2976 + $0x20] sm:$0xff]
        %v2982 = vld [vmem:[%s2976 + $0x28] sm:$0xff]
        %v2983 = vld [vmem:[%s2976 + $0x30] sm:$0xff]
        %v2984 = vld [vmem:[%s2976 + $0x38] sm:$0xff]
        %v2985 = vld [vmem:[%s2976 + $0x40] sm:$0xff]
        %v2986 = vld [vmem:[%s2976 + $0x48] sm:$0xff]
        %v2987 = vld [vmem:[%s2976 + $0x50] sm:$0xff]
        %v2988 = vld [vmem:[%s2976 + $0x58] sm:$0xff]
        %v2989 = vld [vmem:[%s2976 + $0x60] sm:$0xff]
        %v2990 = vld [vmem:[%s2976 + $0x68] sm:$0xff]
        %v2991 = vld [vmem:[%s2976 + $0x70] sm:$0xff]
        %v2992 = vld [vmem:[%s2976 + $0x78] sm:$0xff]
        %v2993 = vld [vmem:[%s2976 + $0x80] sm:$0xff]
        %v2994 = vld [vmem:[%s2976 + $0x88] sm:$0xff]
        %v2995 = vld [vmem:[%s2976 + $0x90] sm:$0xff]
        %v2996 = vld [vmem:[%s2976 + $0x98] sm:$0xff]
        %v2997 = vld [vmem:[%s2976 + $0xa0] sm:$0xff]
        %v2998 = vld [vmem:[%s2976 + $0xa8] sm:$0xff]
        %v2999 = vld [vmem:[%s2976 + $0xb0] sm:$0xff]
        %v3000 = vld [vmem:[%s2976 + $0xb8] sm:$0xff]
        %v3001 = vld [vmem:[%s2976 + $0xc0] sm:$0xff]
        %v3002 = vld [vmem:[%s2976 + $0xc8] sm:$0xff]
        %v3003 = vld [vmem:[%s2976 + $0xd0] sm:$0xff]
        %v3004 = vld [vmem:[%s2976 + $0xd8] sm:$0xff]
        %v3005 = vld [vmem:[%s2976 + $0xe0] sm:$0xff]
        %v3006 = vld [vmem:[%s2976 + $0xe8] sm:$0xff]
        %v3007 = vld [vmem:[%s2976 + $0xf0] sm:$0xff]
        %v3008 = vld [vmem:[%s2976 + $0xf8] sm:$0xff]
        %v3009 = vld [vmem:[%s2976 + $0x100] sm:$0xff]
        %v3010 = vld [vmem:[%s2976 + $0x108] sm:$0xff]
        %v3011 = vld [vmem:[%s2976 + $0x110] sm:$0xff]
        %v3012 = vld [vmem:[%s2976 + $0x118] sm:$0xff]
        %v3013 = vld [vmem:[%s2976 + $0x120] sm:$0xff]
        %v3014 = vld [vmem:[%s2976 + $0x128] sm:$0xff]
        %v3015 = vld [vmem:[%s2976 + $0x130] sm:$0xff]
        %v3016 = vld [vmem:[%s2976 + $0x138] sm:$0xff]
        %v3017 = vld [vmem:[%s2976 + $0x140] sm:$0xff]
        %v3018 = vld [vmem:[%s2976 + $0x148] sm:$0xff]
        %v3019 = vld [vmem:[%s2976 + $0x150] sm:$0xff]
        %v3020 = vld [vmem:[%s2976 + $0x158] sm:$0xff]
        %v3021 = vld [vmem:[%s2976 + $0x160] sm:$0xff]
        %v3022 = vld [vmem:[%s2976 + $0x168] sm:$0xff]
        %v3023 = vld [vmem:[%s2976 + $0x170] sm:$0xff]
        %v3024 = vld [vmem:[%s2976 + $0x178] sm:$0xff]
        %v3025 = vld [vmem:[%s2976 + $0x180] sm:$0xff]
        %v3026 = vld [vmem:[%s2976 + $0x188] sm:$0xff]
        %v3027 = vld [vmem:[%s2976 + $0x190] sm:$0xff]
        %v3028 = vld [vmem:[%s2976 + $0x198] sm:$0xff]
        %v3029 = vld [vmem:[%s2976 + $0x1a0] sm:$0xff]
        %v3030 = vld [vmem:[%s2976 + $0x1a8] sm:$0xff]
        %v3031 = vld [vmem:[%s2976 + $0x1b0] sm:$0xff]
        %v3032 = vld [vmem:[%s2976 + $0x1b8] sm:$0xff]
        %v3033 = vld [vmem:[%s2976 + $0x1c0] sm:$0xff]
        %v3034 = vld [vmem:[%s2976 + $0x1c8] sm:$0xff]
        %v3035 = vld [vmem:[%s2976 + $0x1d0] sm:$0xff]
        %v3036 = vld [vmem:[%s2976 + $0x1d8] sm:$0xff]
        %v3037 = vld [vmem:[%s2976 + $0x1e0] sm:$0xff]
        %v3038 = vld [vmem:[%s2976 + $0x1e8] sm:$0xff]
        %v3039 = vld [vmem:[%s2976 + $0x1f0] sm:$0xff]
        %v3040 = vld [vmem:[%s2976 + $0x1f8] sm:$0xff]
        %s3041 = scalar_lea.vmem %s3, 64
        %v3042 = vld [vmem:[%s3041] sm:$0xff]
        %v3043 = vld [vmem:[%s3041 + $0x8] sm:$0xff]
        %v3044 = vld [vmem:[%s3041 + $0x10] sm:$0xff]
        %v3045 = vld [vmem:[%s3041 + $0x18] sm:$0xff]
        %v3047 = vsel %vm479, %v2972, 0
        %v3050 = vsel %vm479, %v2973, 0
        %v3053 = vsel %vm479, %v2974, 0
        %v3056 = vsel %vm479, %v2975, 0
        %3058 = vmatprep.subr.mxu0 0.0
        %3059 = vmatpush1.xpose.msra.mxu0 0.0
        %3060 = vmatprep.subr.mxu0 0.0
        %3061 = vmatpush1.xpose.msra.mxu0 0.0
        %3062 = vmatprep.subr.mxu0 0.0
        %3063 = vmatpush1.xpose.msra.mxu0 0.0
        %3064 = vmatprep.subr.mxu0 0.0
        %3065 = vmatpush1.xpose.msra.mxu0 0.0
        %3066 = vmatprep.subr.mxu0 0.0
        %3067 = vmatpush1.xpose.msra.mxu0 0.0
        %3068 = vmatprep.subr.mxu0 0.0
        %3069 = vmatpush1.xpose.msra.mxu0 0.0
        %3070 = vmatprep.subr.mxu0 0.0
        %3071 = vmatpush1.xpose.msra.mxu0 0.0
        %3072 = vmatprep.subr.mxu0 0.0
        %3073 = vmatpush1.xpose.msra.mxu0 0.0
        %3074 = vmatprep.subr.mxu0 0.0
        %3075 = vmatpush1.xpose.msra.mxu0 0.0
        %3076 = vmatprep.subr.mxu0 0.0
        %3077 = vmatpush1.xpose.msra.mxu0 0.0
        %3078 = vmatprep.subr.mxu0 0.0
        %3079 = vmatpush1.xpose.msra.mxu0 0.0
        %3080 = vmatprep.subr.mxu0 0.0
        %3081 = vmatpush1.xpose.msra.mxu0 0.0
        %3082 = vmatprep.subr.mxu0 0.0
        %3083 = vmatpush1.xpose.msra.mxu0 %v3056
        %3084 = vmatprep.subr.mxu0 0.0
        %3085 = vmatpush1.xpose.msra.mxu0 %v3053
        %3086 = vmatprep.subr.mxu0 0.0
        %3087 = vmatpush1.xpose.msra.mxu0 %v3050
        %3088 = vmatprep.subr.mxu0 0.0
        %3089 = vmatpush1.xpose.msra.mxu0 %v3047
        %3090 = vmatprep.subr.mxu0 0.0
        %3091 = vmatpush2.xpose.msra.mxu0 0.0
        %3092 = vmatprep.subr.mxu0 0.0
        %3093 = vmatpush2.xpose.msra.mxu0 0.0
        %3094 = vmatprep.subr.mxu0 0.0
        %3095 = vmatpush2.xpose.msra.mxu0 0.0
        %3096 = vmatprep.subr.mxu0 0.0
        %3097 = vmatpush2.xpose.msra.mxu0 0.0
        %3098 = vmatprep.subr.mxu0 0.0
        %3099 = vmatpush2.xpose.msra.mxu0 0.0
        %3100 = vmatprep.subr.mxu0 0.0
        %3101 = vmatpush2.xpose.msra.mxu0 0.0
        %3102 = vmatprep.subr.mxu0 0.0
        %3103 = vmatpush2.xpose.msra.mxu0 0.0
        %3104 = vmatprep.subr.mxu0 0.0
        %3105 = vmatpush2.xpose.msra.mxu0 0.0
        %3106 = vmatprep.subr.mxu0 0.0
        %3107 = vmatpush2.xpose.msra.mxu0 0.0
        %3108 = vmatprep.subr.mxu0 0.0
        %3109 = vmatpush2.xpose.msra.mxu0 0.0
        %3110 = vmatprep.subr.mxu0 0.0
        %3111 = vmatpush2.xpose.msra.mxu0 0.0
        %3112 = vmatprep.subr.mxu0 0.0
        %3113 = vmatpush2.xpose.msra.mxu0 0.0
        %3114 = vmatprep.subr.mxu0 0.0
        %3115 = vmatpush2.xpose.msra.mxu0 0.0
        %3116 = vmatprep.subr.mxu0 0.0
        %3117 = vmatpush2.xpose.msra.mxu0 0.0
        %3118 = vmatprep.subr.mxu0 0.0
        %3119 = vmatpush2.xpose.msra.mxu0 0.0
        %3120 = vmatprep.subr.mxu0 0.0
        %3121 = vmatpush2.xpose.msra.mxu0 0.0
        %3122 = vmatprep.mubr.f32.mxu0 0.0
        %3123 = vmatmul.mubr.f32.gmra.mxu0 %v481
        %v3124 = vpop.f32.mrf.mxu0
        %v3125 = vadd.f32 0.0, %v3124
        %v3126 = vpop.f32.mrf.mxu0
        %3127 = vmatprep.mubr.f32.mxu0 0.0
        %3128 = vmatmul.mubr.f32.gmra.mxu0 %v484
        %v3129 = vpop.f32.mrf.mxu0
        %v3130 = vadd.f32 0.0, %v3129
        %v3131 = vpop.f32.mrf.mxu0
        %3132 = vdwg.mxu0
        %v3135 = vcombine.high %v3125, %v3125
        %v3137 = vunpack.c.l.s4 1966171168
        %v3138 = vunpack.c.0.s8 %v3137
        %v3139 = vlaneseq
        %v3140 = vshrl.u32 %v3139, 7
        %v3141 = vsub.s32 %v3138, %v3140
        %v3142 = vrot.slane %v3125, %v3141
        %v3144 = vunpack.c.l.s4 1966171168
        %v3145 = vunpack.c.0.s8 %v3144
        %v3146 = vlaneseq
        %v3147 = vshrl.u32 %v3146, 7
        %v3148 = vsub.s32 %v3145, %v3147
        %v3149 = vrot.slane %v3135, %v3148
        %v3150 = vcombine.high %v3142, %v3142
        %v3151 = vcombine.high %v3149, %v3149
        %v3153 = vunpack.c.l.s4 1966171168
        %v3154 = vunpack.c.0.s8 %v3153
        %v3155 = vlaneseq
        %v3156 = vshrl.u32 %v3155, 7
        %v3157 = vsub.s32 %v3154, %v3156
        %v3158 = vrot.slane %v3142, %v3157
        %v3160 = vunpack.c.l.s4 1966171168
        %v3161 = vunpack.c.0.s8 %v3160
        %v3162 = vlaneseq
        %v3163 = vshrl.u32 %v3162, 7
        %v3164 = vsub.s32 %v3161, %v3163
        %v3165 = vrot.slane %v3149, %v3164
        %v3167 = vunpack.c.l.s4 1966171168
        %v3168 = vunpack.c.0.s8 %v3167
        %v3169 = vlaneseq
        %v3170 = vshrl.u32 %v3169, 7
        %v3171 = vsub.s32 %v3168, %v3170
        %v3172 = vrot.slane %v3150, %v3171
        %v3174 = vunpack.c.l.s4 1966171168
        %v3175 = vunpack.c.0.s8 %v3174
        %v3176 = vlaneseq
        %v3177 = vshrl.u32 %v3176, 7
        %v3178 = vsub.s32 %v3175, %v3177
        %v3179 = vrot.slane %v3151, %v3178
        %v3180 = vcombine.high %v3158, %v3158
        %v3181 = vcombine.high %v3165, %v3165
        %v3182 = vcombine.high %v3172, %v3172
        %v3183 = vcombine.high %v3179, %v3179
        %v3184 = vcombine.high %v3130, %v3130
        %v3186 = vunpack.c.l.s4 1966171168
        %v3187 = vunpack.c.0.s8 %v3186
        %v3188 = vlaneseq
        %v3189 = vshrl.u32 %v3188, 7
        %v3190 = vsub.s32 %v3187, %v3189
        %v3191 = vrot.slane %v3130, %v3190
        %v3193 = vunpack.c.l.s4 1966171168
        %v3194 = vunpack.c.0.s8 %v3193
        %v3195 = vlaneseq
        %v3196 = vshrl.u32 %v3195, 7
        %v3197 = vsub.s32 %v3194, %v3196
        %v3198 = vrot.slane %v3184, %v3197
        %v3199 = vcombine.high %v3191, %v3191
        %v3200 = vcombine.high %v3198, %v3198
        %v3202 = vunpack.c.l.s4 1966171168
        %v3203 = vunpack.c.0.s8 %v3202
        %v3204 = vlaneseq
        %v3205 = vshrl.u32 %v3204, 7
        %v3206 = vsub.s32 %v3203, %v3205
        %v3207 = vrot.slane %v3191, %v3206
        %v3209 = vunpack.c.l.s4 1966171168
        %v3210 = vunpack.c.0.s8 %v3209
        %v3211 = vlaneseq
        %v3212 = vshrl.u32 %v3211, 7
        %v3213 = vsub.s32 %v3210, %v3212
        %v3214 = vrot.slane %v3198, %v3213
        %v3216 = vunpack.c.l.s4 1966171168
        %v3217 = vunpack.c.0.s8 %v3216
        %v3218 = vlaneseq
        %v3219 = vshrl.u32 %v3218, 7
        %v3220 = vsub.s32 %v3217, %v3219
        %v3221 = vrot.slane %v3199, %v3220
        %v3223 = vunpack.c.l.s4 1966171168
        %v3224 = vunpack.c.0.s8 %v3223
        %v3225 = vlaneseq
        %v3226 = vshrl.u32 %v3225, 7
        %v3227 = vsub.s32 %v3224, %v3226
        %v3228 = vrot.slane %v3200, %v3227
        %v3229 = vcombine.high %v3207, %v3207
        %v3230 = vcombine.high %v3214, %v3214
        %v3231 = vcombine.high %v3221, %v3221
        %v3232 = vcombine.high %v3228, %v3228
        %v3241 = vlaneseq
        %v3242 = vshrl.u32 %v3241, 7
        %v3243 = vsub.s32 0, %v3242
        %v3244 = vrot.slane %v3207, %v3243
        %v3245 = vlaneseq
        %v3246 = vshrl.u32 %v3245, 7
        %v3247 = vsub.s32 0, %v3246
        %v3248 = vrot.slane %v3221, %v3247
        %v3249 = vlaneseq
        %v3250 = vshrl.u32 %v3249, 7
        %v3251 = vsub.s32 0, %v3250
        %v3252 = vrot.slane %v3229, %v3251
        %v3253 = vlaneseq
        %v3254 = vshrl.u32 %v3253, 7
        %v3255 = vsub.s32 0, %v3254
        %v3256 = vrot.slane %v3231, %v3255
        %v3257 = vlaneseq
        %v3258 = vshrl.u32 %v3257, 7
        %v3259 = vsub.s32 0, %v3258
        %v3260 = vrot.slane %v3214, %v3259
        %v3261 = vlaneseq
        %v3262 = vshrl.u32 %v3261, 7
        %v3263 = vsub.s32 0, %v3262
        %v3264 = vrot.slane %v3228, %v3263
        %v3265 = vlaneseq
        %v3266 = vshrl.u32 %v3265, 7
        %v3267 = vsub.s32 0, %v3266
        %v3268 = vrot.slane %v3230, %v3267
        %v3269 = vlaneseq
        %v3270 = vshrl.u32 %v3269, 7
        %v3271 = vsub.s32 0, %v3270
        %v3272 = vrot.slane %v3232, %v3271
        %3273 = vrot.lane.b32.xlu0 %v3244, 32
        %v3274 = vpop.permute.xlu0 %3273
        %3275 = vrot.lane.b32.xlu0 %v3248, 32
        %v3276 = vpop.permute.xlu0 %3275
        %3277 = vrot.lane.b32.xlu0 %v3252, 32
        %v3278 = vpop.permute.xlu0 %3277
        %3279 = vrot.lane.b32.xlu0 %v3256, 32
        %v3280 = vpop.permute.xlu0 %3279
        %3281 = vrot.lane.b32.xlu0 %v3260, 32
        %v3282 = vpop.permute.xlu0 %3281
        %3283 = vrot.lane.b32.xlu0 %v3264, 32
        %v3284 = vpop.permute.xlu0 %3283
        %3285 = vrot.lane.b32.xlu0 %v3268, 32
        %v3286 = vpop.permute.xlu0 %3285
        %3287 = vrot.lane.b32.xlu0 %v3272, 32
        %v3288 = vpop.permute.xlu0 %3287
        %v3297 = vsel %vm737, %v3158, %v3274
        %v3298 = vsel %vm737, %v3172, %v3276
        %v3299 = vsel %vm737, %v3180, %v3278
        %v3300 = vsel %vm737, %v3182, %v3280
        %v3301 = vsel %vm737, %v3165, %v3282
        %v3302 = vsel %vm737, %v3179, %v3284
        %v3303 = vsel %vm737, %v3181, %v3286
        %v3304 = vsel %vm737, %v3183, %v3288
        %v3306 = vsel %vm746, %v3297, 0
        %3308 = vmatprep.subr.mxu0 0.0
        %3309 = vmatpush1.msra.mxu0 0.0
        %3310 = vmatprep.subr.mxu0 0.0
        %3311 = vmatpush1.msra.mxu0 0.0
        %3312 = vmatprep.subr.mxu0 0.0
        %3313 = vmatpush1.msra.mxu0 0.0
        %3314 = vmatprep.subr.mxu0 0.0
        %3315 = vmatpush1.msra.mxu0 0.0
        %3316 = vmatprep.subr.mxu0 0.0
        %3317 = vmatpush1.msra.mxu0 0.0
        %3318 = vmatprep.subr.mxu0 0.0
        %3319 = vmatpush1.msra.mxu0 0.0
        %3320 = vmatprep.subr.mxu0 0.0
        %3321 = vmatpush1.msra.mxu0 0.0
        %3322 = vmatprep.subr.mxu0 0.0
        %3323 = vmatpush1.msra.mxu0 0.0
        %3324 = vmatprep.subr.mxu0 0.0
        %3325 = vmatpush1.msra.mxu0 %v2984
        %3326 = vmatprep.subr.mxu0 0.0
        %3327 = vmatpush1.msra.mxu0 %v2983
        %3328 = vmatprep.subr.mxu0 0.0
        %3329 = vmatpush1.msra.mxu0 %v2982
        %3330 = vmatprep.subr.mxu0 0.0
        %3331 = vmatpush1.msra.mxu0 %v2981
        %3332 = vmatprep.subr.mxu0 0.0
        %3333 = vmatpush1.msra.mxu0 %v2980
        %3334 = vmatprep.subr.mxu0 0.0
        %3335 = vmatpush1.msra.mxu0 %v2979
        %3336 = vmatprep.subr.mxu0 0.0
        %3337 = vmatpush1.msra.mxu0 %v2978
        %3338 = vmatprep.subr.mxu0 0.0
        %3339 = vmatpush1.msra.mxu0 %v2977
        %3340 = vmatprep.subr.mxu0 0.0
        %3341 = vmatpush2.msra.mxu0 0.0
        %3342 = vmatprep.subr.mxu0 0.0
        %3343 = vmatpush2.msra.mxu0 0.0
        %3344 = vmatprep.subr.mxu0 0.0
        %3345 = vmatpush2.msra.mxu0 0.0
        %3346 = vmatprep.subr.mxu0 0.0
        %3347 = vmatpush2.msra.mxu0 0.0
        %3348 = vmatprep.subr.mxu0 0.0
        %3349 = vmatpush2.msra.mxu0 0.0
        %3350 = vmatprep.subr.mxu0 0.0
        %3351 = vmatpush2.msra.mxu0 0.0
        %3352 = vmatprep.subr.mxu0 0.0
        %3353 = vmatpush2.msra.mxu0 0.0
        %3354 = vmatprep.subr.mxu0 0.0
        %3355 = vmatpush2.msra.mxu0 0.0
        %3356 = vmatprep.subr.mxu0 0.0
        %3357 = vmatpush2.msra.mxu0 0.0
        %3358 = vmatprep.subr.mxu0 0.0
        %3359 = vmatpush2.msra.mxu0 0.0
        %3360 = vmatprep.subr.mxu0 0.0
        %3361 = vmatpush2.msra.mxu0 0.0
        %3362 = vmatprep.subr.mxu0 0.0
        %3363 = vmatpush2.msra.mxu0 0.0
        %3364 = vmatprep.subr.mxu0 0.0
        %3365 = vmatpush2.msra.mxu0 0.0
        %3366 = vmatprep.subr.mxu0 0.0
        %3367 = vmatpush2.msra.mxu0 0.0
        %3368 = vmatprep.subr.mxu0 0.0
        %3369 = vmatpush2.msra.mxu0 0.0
        %3370 = vmatprep.subr.mxu0 0.0
        %3371 = vmatpush2.msra.mxu0 0.0
        %3372 = vmatprep.mubr.f32.mxu0 0.0
        %3373 = vmatmul.mubr.f32.gmra.mxu0 %v3306
        %v3374 = vpop.f32.mrf.mxu0
        %v3375 = vadd.f32 0.0, %v3374
        %v3376 = vpop.f32.mrf.mxu0
        %3377 = vdwg.mxu0
        %v3379 = vsel %vm746, %v3298, 0
        %3381 = vmatprep.subr.mxu0 0.0
        %3382 = vmatpush1.msra.mxu0 0.0
        %3383 = vmatprep.subr.mxu0 0.0
        %3384 = vmatpush1.msra.mxu0 0.0
        %3385 = vmatprep.subr.mxu0 0.0
        %3386 = vmatpush1.msra.mxu0 0.0
        %3387 = vmatprep.subr.mxu0 0.0
        %3388 = vmatpush1.msra.mxu0 0.0
        %3389 = vmatprep.subr.mxu0 0.0
        %3390 = vmatpush1.msra.mxu0 0.0
        %3391 = vmatprep.subr.mxu0 0.0
        %3392 = vmatpush1.msra.mxu0 0.0
        %3393 = vmatprep.subr.mxu0 0.0
        %3394 = vmatpush1.msra.mxu0 0.0
        %3395 = vmatprep.subr.mxu0 0.0
        %3396 = vmatpush1.msra.mxu0 0.0
        %3397 = vmatprep.subr.mxu0 0.0
        %3398 = vmatpush1.msra.mxu0 %v2992
        %3399 = vmatprep.subr.mxu0 0.0
        %3400 = vmatpush1.msra.mxu0 %v2991
        %3401 = vmatprep.subr.mxu0 0.0
        %3402 = vmatpush1.msra.mxu0 %v2990
        %3403 = vmatprep.subr.mxu0 0.0
        %3404 = vmatpush1.msra.mxu0 %v2989
        %3405 = vmatprep.subr.mxu0 0.0
        %3406 = vmatpush1.msra.mxu0 %v2988
        %3407 = vmatprep.subr.mxu0 0.0
        %3408 = vmatpush1.msra.mxu0 %v2987
        %3409 = vmatprep.subr.mxu0 0.0
        %3410 = vmatpush1.msra.mxu0 %v2986
        %3411 = vmatprep.subr.mxu0 0.0
        %3412 = vmatpush1.msra.mxu0 %v2985
        %3413 = vmatprep.subr.mxu0 0.0
        %3414 = vmatpush2.msra.mxu0 0.0
        %3415 = vmatprep.subr.mxu0 0.0
        %3416 = vmatpush2.msra.mxu0 0.0
        %3417 = vmatprep.subr.mxu0 0.0
        %3418 = vmatpush2.msra.mxu0 0.0
        %3419 = vmatprep.subr.mxu0 0.0
        %3420 = vmatpush2.msra.mxu0 0.0
        %3421 = vmatprep.subr.mxu0 0.0
        %3422 = vmatpush2.msra.mxu0 0.0
        %3423 = vmatprep.subr.mxu0 0.0
        %3424 = vmatpush2.msra.mxu0 0.0
        %3425 = vmatprep.subr.mxu0 0.0
        %3426 = vmatpush2.msra.mxu0 0.0
        %3427 = vmatprep.subr.mxu0 0.0
        %3428 = vmatpush2.msra.mxu0 0.0
        %3429 = vmatprep.subr.mxu0 0.0
        %3430 = vmatpush2.msra.mxu0 0.0
        %3431 = vmatprep.subr.mxu0 0.0
        %3432 = vmatpush2.msra.mxu0 0.0
        %3433 = vmatprep.subr.mxu0 0.0
        %3434 = vmatpush2.msra.mxu0 0.0
        %3435 = vmatprep.subr.mxu0 0.0
        %3436 = vmatpush2.msra.mxu0 0.0
        %3437 = vmatprep.subr.mxu0 0.0
        %3438 = vmatpush2.msra.mxu0 0.0
        %3439 = vmatprep.subr.mxu0 0.0
        %3440 = vmatpush2.msra.mxu0 0.0
        %3441 = vmatprep.subr.mxu0 0.0
        %3442 = vmatpush2.msra.mxu0 0.0
        %3443 = vmatprep.subr.mxu0 0.0
        %3444 = vmatpush2.msra.mxu0 0.0
        %3445 = vmatprep.mubr.f32.mxu0 0.0
        %3446 = vmatmul.mubr.f32.gmra.mxu0 %v3379
        %v3447 = vpop.f32.mrf.mxu0
        %v3448 = vadd.f32 0.0, %v3447
        %v3449 = vpop.f32.mrf.mxu0
        %3450 = vdwg.mxu0
        %v3452 = vsel %vm746, %v3299, 0
        %3454 = vmatprep.subr.mxu0 0.0
        %3455 = vmatpush1.msra.mxu0 0.0
        %3456 = vmatprep.subr.mxu0 0.0
        %3457 = vmatpush1.msra.mxu0 0.0
        %3458 = vmatprep.subr.mxu0 0.0
        %3459 = vmatpush1.msra.mxu0 0.0
        %3460 = vmatprep.subr.mxu0 0.0
        %3461 = vmatpush1.msra.mxu0 0.0
        %3462 = vmatprep.subr.mxu0 0.0
        %3463 = vmatpush1.msra.mxu0 0.0
        %3464 = vmatprep.subr.mxu0 0.0
        %3465 = vmatpush1.msra.mxu0 0.0
        %3466 = vmatprep.subr.mxu0 0.0
        %3467 = vmatpush1.msra.mxu0 0.0
        %3468 = vmatprep.subr.mxu0 0.0
        %3469 = vmatpush1.msra.mxu0 0.0
        %3470 = vmatprep.subr.mxu0 0.0
        %3471 = vmatpush1.msra.mxu0 %v3000
        %3472 = vmatprep.subr.mxu0 0.0
        %3473 = vmatpush1.msra.mxu0 %v2999
        %3474 = vmatprep.subr.mxu0 0.0
        %3475 = vmatpush1.msra.mxu0 %v2998
        %3476 = vmatprep.subr.mxu0 0.0
        %3477 = vmatpush1.msra.mxu0 %v2997
        %3478 = vmatprep.subr.mxu0 0.0
        %3479 = vmatpush1.msra.mxu0 %v2996
        %3480 = vmatprep.subr.mxu0 0.0
        %3481 = vmatpush1.msra.mxu0 %v2995
        %3482 = vmatprep.subr.mxu0 0.0
        %3483 = vmatpush1.msra.mxu0 %v2994
        %3484 = vmatprep.subr.mxu0 0.0
        %3485 = vmatpush1.msra.mxu0 %v2993
        %3486 = vmatprep.subr.mxu0 0.0
        %3487 = vmatpush2.msra.mxu0 0.0
        %3488 = vmatprep.subr.mxu0 0.0
        %3489 = vmatpush2.msra.mxu0 0.0
        %3490 = vmatprep.subr.mxu0 0.0
        %3491 = vmatpush2.msra.mxu0 0.0
        %3492 = vmatprep.subr.mxu0 0.0
        %3493 = vmatpush2.msra.mxu0 0.0
        %3494 = vmatprep.subr.mxu0 0.0
        %3495 = vmatpush2.msra.mxu0 0.0
        %3496 = vmatprep.subr.mxu0 0.0
        %3497 = vmatpush2.msra.mxu0 0.0
        %3498 = vmatprep.subr.mxu0 0.0
        %3499 = vmatpush2.msra.mxu0 0.0
        %3500 = vmatprep.subr.mxu0 0.0
        %3501 = vmatpush2.msra.mxu0 0.0
        %3502 = vmatprep.subr.mxu0 0.0
        %3503 = vmatpush2.msra.mxu0 0.0
        %3504 = vmatprep.subr.mxu0 0.0
        %3505 = vmatpush2.msra.mxu0 0.0
        %3506 = vmatprep.subr.mxu0 0.0
        %3507 = vmatpush2.msra.mxu0 0.0
        %3508 = vmatprep.subr.mxu0 0.0
        %3509 = vmatpush2.msra.mxu0 0.0
        %3510 = vmatprep.subr.mxu0 0.0
        %3511 = vmatpush2.msra.mxu0 0.0
        %3512 = vmatprep.subr.mxu0 0.0
        %3513 = vmatpush2.msra.mxu0 0.0
        %3514 = vmatprep.subr.mxu0 0.0
        %3515 = vmatpush2.msra.mxu0 0.0
        %3516 = vmatprep.subr.mxu0 0.0
        %3517 = vmatpush2.msra.mxu0 0.0
        %3518 = vmatprep.mubr.f32.mxu0 0.0
        %3519 = vmatmul.mubr.f32.gmra.mxu0 %v3452
        %v3520 = vpop.f32.mrf.mxu0
        %v3521 = vadd.f32 0.0, %v3520
        %v3522 = vpop.f32.mrf.mxu0
        %3523 = vdwg.mxu0
        %v3525 = vsel %vm746, %v3300, 0
        %3527 = vmatprep.subr.mxu0 0.0
        %3528 = vmatpush1.msra.mxu0 0.0
        %3529 = vmatprep.subr.mxu0 0.0
        %3530 = vmatpush1.msra.mxu0 0.0
        %3531 = vmatprep.subr.mxu0 0.0
        %3532 = vmatpush1.msra.mxu0 0.0
        %3533 = vmatprep.subr.mxu0 0.0
        %3534 = vmatpush1.msra.mxu0 0.0
        %3535 = vmatprep.subr.mxu0 0.0
        %3536 = vmatpush1.msra.mxu0 0.0
        %3537 = vmatprep.subr.mxu0 0.0
        %3538 = vmatpush1.msra.mxu0 0.0
        %3539 = vmatprep.subr.mxu0 0.0
        %3540 = vmatpush1.msra.mxu0 0.0
        %3541 = vmatprep.subr.mxu0 0.0
        %3542 = vmatpush1.msra.mxu0 0.0
        %3543 = vmatprep.subr.mxu0 0.0
        %3544 = vmatpush1.msra.mxu0 %v3008
        %3545 = vmatprep.subr.mxu0 0.0
        %3546 = vmatpush1.msra.mxu0 %v3007
        %3547 = vmatprep.subr.mxu0 0.0
        %3548 = vmatpush1.msra.mxu0 %v3006
        %3549 = vmatprep.subr.mxu0 0.0
        %3550 = vmatpush1.msra.mxu0 %v3005
        %3551 = vmatprep.subr.mxu0 0.0
        %3552 = vmatpush1.msra.mxu0 %v3004
        %3553 = vmatprep.subr.mxu0 0.0
        %3554 = vmatpush1.msra.mxu0 %v3003
        %3555 = vmatprep.subr.mxu0 0.0
        %3556 = vmatpush1.msra.mxu0 %v3002
        %3557 = vmatprep.subr.mxu0 0.0
        %3558 = vmatpush1.msra.mxu0 %v3001
        %3559 = vmatprep.subr.mxu0 0.0
        %3560 = vmatpush2.msra.mxu0 0.0
        %3561 = vmatprep.subr.mxu0 0.0
        %3562 = vmatpush2.msra.mxu0 0.0
        %3563 = vmatprep.subr.mxu0 0.0
        %3564 = vmatpush2.msra.mxu0 0.0
        %3565 = vmatprep.subr.mxu0 0.0
        %3566 = vmatpush2.msra.mxu0 0.0
        %3567 = vmatprep.subr.mxu0 0.0
        %3568 = vmatpush2.msra.mxu0 0.0
        %3569 = vmatprep.subr.mxu0 0.0
        %3570 = vmatpush2.msra.mxu0 0.0
        %3571 = vmatprep.subr.mxu0 0.0
        %3572 = vmatpush2.msra.mxu0 0.0
        %3573 = vmatprep.subr.mxu0 0.0
        %3574 = vmatpush2.msra.mxu0 0.0
        %3575 = vmatprep.subr.mxu0 0.0
        %3576 = vmatpush2.msra.mxu0 0.0
        %3577 = vmatprep.subr.mxu0 0.0
        %3578 = vmatpush2.msra.mxu0 0.0
        %3579 = vmatprep.subr.mxu0 0.0
        %3580 = vmatpush2.msra.mxu0 0.0
        %3581 = vmatprep.subr.mxu0 0.0
        %3582 = vmatpush2.msra.mxu0 0.0
        %3583 = vmatprep.subr.mxu0 0.0
        %3584 = vmatpush2.msra.mxu0 0.0
        %3585 = vmatprep.subr.mxu0 0.0
        %3586 = vmatpush2.msra.mxu0 0.0
        %3587 = vmatprep.subr.mxu0 0.0
        %3588 = vmatpush2.msra.mxu0 0.0
        %3589 = vmatprep.subr.mxu0 0.0
        %3590 = vmatpush2.msra.mxu0 0.0
        %3591 = vmatprep.mubr.f32.mxu0 0.0
        %3592 = vmatmul.mubr.f32.gmra.mxu0 %v3525
        %v3593 = vpop.f32.mrf.mxu0
        %v3594 = vadd.f32 0.0, %v3593
        %v3595 = vpop.f32.mrf.mxu0
        %3596 = vdwg.mxu0
        %v3598 = vsel %vm746, %v3301, 0
        %3600 = vmatprep.subr.mxu0 0.0
        %3601 = vmatpush1.msra.mxu0 0.0
        %3602 = vmatprep.subr.mxu0 0.0
        %3603 = vmatpush1.msra.mxu0 0.0
        %3604 = vmatprep.subr.mxu0 0.0
        %3605 = vmatpush1.msra.mxu0 0.0
        %3606 = vmatprep.subr.mxu0 0.0
        %3607 = vmatpush1.msra.mxu0 0.0
        %3608 = vmatprep.subr.mxu0 0.0
        %3609 = vmatpush1.msra.mxu0 0.0
        %3610 = vmatprep.subr.mxu0 0.0
        %3611 = vmatpush1.msra.mxu0 0.0
        %3612 = vmatprep.subr.mxu0 0.0
        %3613 = vmatpush1.msra.mxu0 0.0
        %3614 = vmatprep.subr.mxu0 0.0
        %3615 = vmatpush1.msra.mxu0 0.0
        %3616 = vmatprep.subr.mxu0 0.0
        %3617 = vmatpush1.msra.mxu0 %v3016
        %3618 = vmatprep.subr.mxu0 0.0
        %3619 = vmatpush1.msra.mxu0 %v3015
        %3620 = vmatprep.subr.mxu0 0.0
        %3621 = vmatpush1.msra.mxu0 %v3014
        %3622 = vmatprep.subr.mxu0 0.0
        %3623 = vmatpush1.msra.mxu0 %v3013
        %3624 = vmatprep.subr.mxu0 0.0
        %3625 = vmatpush1.msra.mxu0 %v3012
        %3626 = vmatprep.subr.mxu0 0.0
        %3627 = vmatpush1.msra.mxu0 %v3011
        %3628 = vmatprep.subr.mxu0 0.0
        %3629 = vmatpush1.msra.mxu0 %v3010
        %3630 = vmatprep.subr.mxu0 0.0
        %3631 = vmatpush1.msra.mxu0 %v3009
        %3632 = vmatprep.subr.mxu0 0.0
        %3633 = vmatpush2.msra.mxu0 0.0
        %3634 = vmatprep.subr.mxu0 0.0
        %3635 = vmatpush2.msra.mxu0 0.0
        %3636 = vmatprep.subr.mxu0 0.0
        %3637 = vmatpush2.msra.mxu0 0.0
        %3638 = vmatprep.subr.mxu0 0.0
        %3639 = vmatpush2.msra.mxu0 0.0
        %3640 = vmatprep.subr.mxu0 0.0
        %3641 = vmatpush2.msra.mxu0 0.0
        %3642 = vmatprep.subr.mxu0 0.0
        %3643 = vmatpush2.msra.mxu0 0.0
        %3644 = vmatprep.subr.mxu0 0.0
        %3645 = vmatpush2.msra.mxu0 0.0
        %3646 = vmatprep.subr.mxu0 0.0
        %3647 = vmatpush2.msra.mxu0 0.0
        %3648 = vmatprep.subr.mxu0 0.0
        %3649 = vmatpush2.msra.mxu0 0.0
        %3650 = vmatprep.subr.mxu0 0.0
        %3651 = vmatpush2.msra.mxu0 0.0
        %3652 = vmatprep.subr.mxu0 0.0
        %3653 = vmatpush2.msra.mxu0 0.0
        %3654 = vmatprep.subr.mxu0 0.0
        %3655 = vmatpush2.msra.mxu0 0.0
        %3656 = vmatprep.subr.mxu0 0.0
        %3657 = vmatpush2.msra.mxu0 0.0
        %3658 = vmatprep.subr.mxu0 0.0
        %3659 = vmatpush2.msra.mxu0 0.0
        %3660 = vmatprep.subr.mxu0 0.0
        %3661 = vmatpush2.msra.mxu0 0.0
        %3662 = vmatprep.subr.mxu0 0.0
        %3663 = vmatpush2.msra.mxu0 0.0
        %3664 = vmatprep.mubr.f32.mxu0 0.0
        %3665 = vmatmul.mubr.f32.gmra.mxu0 %v3598
        %v3666 = vpop.f32.mrf.mxu0
        %v3667 = vadd.f32 0.0, %v3666
        %v3668 = vpop.f32.mrf.mxu0
        %3669 = vdwg.mxu0
        %v3671 = vsel %vm746, %v3302, 0
        %3673 = vmatprep.subr.mxu0 0.0
        %3674 = vmatpush1.msra.mxu0 0.0
        %3675 = vmatprep.subr.mxu0 0.0
        %3676 = vmatpush1.msra.mxu0 0.0
        %3677 = vmatprep.subr.mxu0 0.0
        %3678 = vmatpush1.msra.mxu0 0.0
        %3679 = vmatprep.subr.mxu0 0.0
        %3680 = vmatpush1.msra.mxu0 0.0
        %3681 = vmatprep.subr.mxu0 0.0
        %3682 = vmatpush1.msra.mxu0 0.0
        %3683 = vmatprep.subr.mxu0 0.0
        %3684 = vmatpush1.msra.mxu0 0.0
        %3685 = vmatprep.subr.mxu0 0.0
        %3686 = vmatpush1.msra.mxu0 0.0
        %3687 = vmatprep.subr.mxu0 0.0
        %3688 = vmatpush1.msra.mxu0 0.0
        %3689 = vmatprep.subr.mxu0 0.0
        %3690 = vmatpush1.msra.mxu0 %v3024
        %3691 = vmatprep.subr.mxu0 0.0
        %3692 = vmatpush1.msra.mxu0 %v3023
        %3693 = vmatprep.subr.mxu0 0.0
        %3694 = vmatpush1.msra.mxu0 %v3022
        %3695 = vmatprep.subr.mxu0 0.0
        %3696 = vmatpush1.msra.mxu0 %v3021
        %3697 = vmatprep.subr.mxu0 0.0
        %3698 = vmatpush1.msra.mxu0 %v3020
        %3699 = vmatprep.subr.mxu0 0.0
        %3700 = vmatpush1.msra.mxu0 %v3019
        %3701 = vmatprep.subr.mxu0 0.0
        %3702 = vmatpush1.msra.mxu0 %v3018
        %3703 = vmatprep.subr.mxu0 0.0
        %3704 = vmatpush1.msra.mxu0 %v3017
        %3705 = vmatprep.subr.mxu0 0.0
        %3706 = vmatpush2.msra.mxu0 0.0
        %3707 = vmatprep.subr.mxu0 0.0
        %3708 = vmatpush2.msra.mxu0 0.0
        %3709 = vmatprep.subr.mxu0 0.0
        %3710 = vmatpush2.msra.mxu0 0.0
        %3711 = vmatprep.subr.mxu0 0.0
        %3712 = vmatpush2.msra.mxu0 0.0
        %3713 = vmatprep.subr.mxu0 0.0
        %3714 = vmatpush2.msra.mxu0 0.0
        %3715 = vmatprep.subr.mxu0 0.0
        %3716 = vmatpush2.msra.mxu0 0.0
        %3717 = vmatprep.subr.mxu0 0.0
        %3718 = vmatpush2.msra.mxu0 0.0
        %3719 = vmatprep.subr.mxu0 0.0
        %3720 = vmatpush2.msra.mxu0 0.0
        %3721 = vmatprep.subr.mxu0 0.0
        %3722 = vmatpush2.msra.mxu0 0.0
        %3723 = vmatprep.subr.mxu0 0.0
        %3724 = vmatpush2.msra.mxu0 0.0
        %3725 = vmatprep.subr.mxu0 0.0
        %3726 = vmatpush2.msra.mxu0 0.0
        %3727 = vmatprep.subr.mxu0 0.0
        %3728 = vmatpush2.msra.mxu0 0.0
        %3729 = vmatprep.subr.mxu0 0.0
        %3730 = vmatpush2.msra.mxu0 0.0
        %3731 = vmatprep.subr.mxu0 0.0
        %3732 = vmatpush2.msra.mxu0 0.0
        %3733 = vmatprep.subr.mxu0 0.0
        %3734 = vmatpush2.msra.mxu0 0.0
        %3735 = vmatprep.subr.mxu0 0.0
        %3736 = vmatpush2.msra.mxu0 0.0
        %3737 = vmatprep.mubr.f32.mxu0 0.0
        %3738 = vmatmul.mubr.f32.gmra.mxu0 %v3671
        %v3739 = vpop.f32.mrf.mxu0
        %v3740 = vadd.f32 0.0, %v3739
        %v3741 = vpop.f32.mrf.mxu0
        %3742 = vdwg.mxu0
        %v3744 = vsel %vm746, %v3303, 0
        %3746 = vmatprep.subr.mxu0 0.0
        %3747 = vmatpush1.msra.mxu0 0.0
        %3748 = vmatprep.subr.mxu0 0.0
        %3749 = vmatpush1.msra.mxu0 0.0
        %3750 = vmatprep.subr.mxu0 0.0
        %3751 = vmatpush1.msra.mxu0 0.0
        %3752 = vmatprep.subr.mxu0 0.0
        %3753 = vmatpush1.msra.mxu0 0.0
        %3754 = vmatprep.subr.mxu0 0.0
        %3755 = vmatpush1.msra.mxu0 0.0
        %3756 = vmatprep.subr.mxu0 0.0
        %3757 = vmatpush1.msra.mxu0 0.0
        %3758 = vmatprep.subr.mxu0 0.0
        %3759 = vmatpush1.msra.mxu0 0.0
        %3760 = vmatprep.subr.mxu0 0.0
        %3761 = vmatpush1.msra.mxu0 0.0
        %3762 = vmatprep.subr.mxu0 0.0
        %3763 = vmatpush1.msra.mxu0 %v3032
        %3764 = vmatprep.subr.mxu0 0.0
        %3765 = vmatpush1.msra.mxu0 %v3031
        %3766 = vmatprep.subr.mxu0 0.0
        %3767 = vmatpush1.msra.mxu0 %v3030
        %3768 = vmatprep.subr.mxu0 0.0
        %3769 = vmatpush1.msra.mxu0 %v3029
        %3770 = vmatprep.subr.mxu0 0.0
        %3771 = vmatpush1.msra.mxu0 %v3028
        %3772 = vmatprep.subr.mxu0 0.0
        %3773 = vmatpush1.msra.mxu0 %v3027
        %3774 = vmatprep.subr.mxu0 0.0
        %3775 = vmatpush1.msra.mxu0 %v3026
        %3776 = vmatprep.subr.mxu0 0.0
        %3777 = vmatpush1.msra.mxu0 %v3025
        %3778 = vmatprep.subr.mxu0 0.0
        %3779 = vmatpush2.msra.mxu0 0.0
        %3780 = vmatprep.subr.mxu0 0.0
        %3781 = vmatpush2.msra.mxu0 0.0
        %3782 = vmatprep.subr.mxu0 0.0
        %3783 = vmatpush2.msra.mxu0 0.0
        %3784 = vmatprep.subr.mxu0 0.0
        %3785 = vmatpush2.msra.mxu0 0.0
        %3786 = vmatprep.subr.mxu0 0.0
        %3787 = vmatpush2.msra.mxu0 0.0
        %3788 = vmatprep.subr.mxu0 0.0
        %3789 = vmatpush2.msra.mxu0 0.0
        %3790 = vmatprep.subr.mxu0 0.0
        %3791 = vmatpush2.msra.mxu0 0.0
        %3792 = vmatprep.subr.mxu0 0.0
        %3793 = vmatpush2.msra.mxu0 0.0
        %3794 = vmatprep.subr.mxu0 0.0
        %3795 = vmatpush2.msra.mxu0 0.0
        %3796 = vmatprep.subr.mxu0 0.0
        %3797 = vmatpush2.msra.mxu0 0.0
        %3798 = vmatprep.subr.mxu0 0.0
        %3799 = vmatpush2.msra.mxu0 0.0
        %3800 = vmatprep.subr.mxu0 0.0
        %3801 = vmatpush2.msra.mxu0 0.0
        %3802 = vmatprep.subr.mxu0 0.0
        %3803 = vmatpush2.msra.mxu0 0.0
        %3804 = vmatprep.subr.mxu0 0.0
        %3805 = vmatpush2.msra.mxu0 0.0
        %3806 = vmatprep.subr.mxu0 0.0
        %3807 = vmatpush2.msra.mxu0 0.0
        %3808 = vmatprep.subr.mxu0 0.0
        %3809 = vmatpush2.msra.mxu0 0.0
        %3810 = vmatprep.mubr.f32.mxu0 0.0
        %3811 = vmatmul.mubr.f32.gmra.mxu0 %v3744
        %v3812 = vpop.f32.mrf.mxu0
        %v3813 = vadd.f32 0.0, %v3812
        %v3814 = vpop.f32.mrf.mxu0
        %3815 = vdwg.mxu0
        %v3817 = vsel %vm746, %v3304, 0
        %3819 = vmatprep.subr.mxu0 0.0
        %3820 = vmatpush1.msra.mxu0 0.0
        %3821 = vmatprep.subr.mxu0 0.0
        %3822 = vmatpush1.msra.mxu0 0.0
        %3823 = vmatprep.subr.mxu0 0.0
        %3824 = vmatpush1.msra.mxu0 0.0
        %3825 = vmatprep.subr.mxu0 0.0
        %3826 = vmatpush1.msra.mxu0 0.0
        %3827 = vmatprep.subr.mxu0 0.0
        %3828 = vmatpush1.msra.mxu0 0.0
        %3829 = vmatprep.subr.mxu0 0.0
        %3830 = vmatpush1.msra.mxu0 0.0
        %3831 = vmatprep.subr.mxu0 0.0
        %3832 = vmatpush1.msra.mxu0 0.0
        %3833 = vmatprep.subr.mxu0 0.0
        %3834 = vmatpush1.msra.mxu0 0.0
        %3835 = vmatprep.subr.mxu0 0.0
        %3836 = vmatpush1.msra.mxu0 %v3040
        %3837 = vmatprep.subr.mxu0 0.0
        %3838 = vmatpush1.msra.mxu0 %v3039
        %3839 = vmatprep.subr.mxu0 0.0
        %3840 = vmatpush1.msra.mxu0 %v3038
        %3841 = vmatprep.subr.mxu0 0.0
        %3842 = vmatpush1.msra.mxu0 %v3037
        %3843 = vmatprep.subr.mxu0 0.0
        %3844 = vmatpush1.msra.mxu0 %v3036
        %3845 = vmatprep.subr.mxu0 0.0
        %3846 = vmatpush1.msra.mxu0 %v3035
        %3847 = vmatprep.subr.mxu0 0.0
        %3848 = vmatpush1.msra.mxu0 %v3034
        %3849 = vmatprep.subr.mxu0 0.0
        %3850 = vmatpush1.msra.mxu0 %v3033
        %3851 = vmatprep.subr.mxu0 0.0
        %3852 = vmatpush2.msra.mxu0 0.0
        %3853 = vmatprep.subr.mxu0 0.0
        %3854 = vmatpush2.msra.mxu0 0.0
        %3855 = vmatprep.subr.mxu0 0.0
        %3856 = vmatpush2.msra.mxu0 0.0
        %3857 = vmatprep.subr.mxu0 0.0
        %3858 = vmatpush2.msra.mxu0 0.0
        %3859 = vmatprep.subr.mxu0 0.0
        %3860 = vmatpush2.msra.mxu0 0.0
        %3861 = vmatprep.subr.mxu0 0.0
        %3862 = vmatpush2.msra.mxu0 0.0
        %3863 = vmatprep.subr.mxu0 0.0
        %3864 = vmatpush2.msra.mxu0 0.0
        %3865 = vmatprep.subr.mxu0 0.0
        %3866 = vmatpush2.msra.mxu0 0.0
        %3867 = vmatprep.subr.mxu0 0.0
        %3868 = vmatpush2.msra.mxu0 0.0
        %3869 = vmatprep.subr.mxu0 0.0
        %3870 = vmatpush2.msra.mxu0 0.0
        %3871 = vmatprep.subr.mxu0 0.0
        %3872 = vmatpush2.msra.mxu0 0.0
        %3873 = vmatprep.subr.mxu0 0.0
        %3874 = vmatpush2.msra.mxu0 0.0
        %3875 = vmatprep.subr.mxu0 0.0
        %3876 = vmatpush2.msra.mxu0 0.0
        %3877 = vmatprep.subr.mxu0 0.0
        %3878 = vmatpush2.msra.mxu0 0.0
        %3879 = vmatprep.subr.mxu0 0.0
        %3880 = vmatpush2.msra.mxu0 0.0
        %3881 = vmatprep.subr.mxu0 0.0
        %3882 = vmatpush2.msra.mxu0 0.0
        %3883 = vmatprep.mubr.f32.mxu0 0.0
        %3884 = vmatmul.mubr.f32.gmra.mxu0 %v3817
        %v3885 = vpop.f32.mrf.mxu0
        %v3886 = vadd.f32 0.0, %v3885
        %v3887 = vpop.f32.mrf.mxu0
        %3888 = vdwg.mxu0
        %v3897 = vrot.slane %v3448, 7
        %v3898 = vsel %vm1340, %v3897, %v3375
        %v3899 = vrot.slane %v3521, 6
        %v3900 = vsel %vm1343, %v3899, %v3898
        %v3901 = vrot.slane %v3594, 5
        %v3902 = vsel %vm1346, %v3901, %v3900
        %v3903 = vrot.slane %v3667, 4
        %v3904 = vsel %vm1349, %v3903, %v3902
        %v3905 = vrot.slane %v3740, 3
        %v3906 = vsel %vm1352, %v3905, %v3904
        %v3907 = vrot.slane %v3813, 2
        %v3908 = vsel %vm1355, %v3907, %v3906
        %v3909 = vrot.slane %v3886, 1
        %v3910 = vsel %vm1358, %v3909, %v3908
        %3912 = vrot.lane.b32.xlu0 %v3910, 96
        %v3913 = vpop.permute.xlu0 %3912
        %v3916 = vsel %vm1364, %v3042, 0
        %v3919 = vsel %vm1364, %v3043, 0
        %v3922 = vsel %vm1364, %v3044, 0
        %v3925 = vsel %vm1364, %v3045, 0
        %3927 = vmatprep.subr.mxu0 0.0
        %3928 = vmatpush1.msra.mxu0 0.0
        %3929 = vmatprep.subr.mxu0 0.0
        %3930 = vmatpush1.msra.mxu0 0.0
        %3931 = vmatprep.subr.mxu0 0.0
        %3932 = vmatpush1.msra.mxu0 0.0
        %3933 = vmatprep.subr.mxu0 0.0
        %3934 = vmatpush1.msra.mxu0 0.0
        %3935 = vmatprep.subr.mxu0 0.0
        %3936 = vmatpush1.msra.mxu0 0.0
        %3937 = vmatprep.subr.mxu0 0.0
        %3938 = vmatpush1.msra.mxu0 0.0
        %3939 = vmatprep.subr.mxu0 0.0
        %3940 = vmatpush1.msra.mxu0 0.0
        %3941 = vmatprep.subr.mxu0 0.0
        %3942 = vmatpush1.msra.mxu0 0.0
        %3943 = vmatprep.subr.mxu0 0.0
        %3944 = vmatpush1.msra.mxu0 0.0
        %3945 = vmatprep.subr.mxu0 0.0
        %3946 = vmatpush1.msra.mxu0 0.0
        %3947 = vmatprep.subr.mxu0 0.0
        %3948 = vmatpush1.msra.mxu0 0.0
        %3949 = vmatprep.subr.mxu0 0.0
        %3950 = vmatpush1.msra.mxu0 %v1379
        %3951 = vmatprep.subr.mxu0 0.0
        %3952 = vmatpush1.msra.mxu0 %v2975
        %3953 = vmatprep.subr.mxu0 0.0
        %3954 = vmatpush1.msra.mxu0 %v2974
        %3955 = vmatprep.subr.mxu0 0.0
        %3956 = vmatpush1.msra.mxu0 %v2973
        %3957 = vmatprep.subr.mxu0 0.0
        %3958 = vmatpush1.msra.mxu0 %v2972
        %3959 = vmatprep.subr.mxu0 0.0
        %3960 = vmatpush2.msra.mxu0 0.0
        %3961 = vmatprep.subr.mxu0 0.0
        %3962 = vmatpush2.msra.mxu0 0.0
        %3963 = vmatprep.subr.mxu0 0.0
        %3964 = vmatpush2.msra.mxu0 0.0
        %3965 = vmatprep.subr.mxu0 0.0
        %3966 = vmatpush2.msra.mxu0 0.0
        %3967 = vmatprep.subr.mxu0 0.0
        %3968 = vmatpush2.msra.mxu0 0.0
        %3969 = vmatprep.subr.mxu0 0.0
        %3970 = vmatpush2.msra.mxu0 0.0
        %3971 = vmatprep.subr.mxu0 0.0
        %3972 = vmatpush2.msra.mxu0 0.0
        %3973 = vmatprep.subr.mxu0 0.0
        %3974 = vmatpush2.msra.mxu0 0.0
        %3975 = vmatprep.subr.mxu0 0.0
        %3976 = vmatpush2.msra.mxu0 0.0
        %3977 = vmatprep.subr.mxu0 0.0
        %3978 = vmatpush2.msra.mxu0 0.0
        %3979 = vmatprep.subr.mxu0 0.0
        %3980 = vmatpush2.msra.mxu0 0.0
        %3981 = vmatprep.subr.mxu0 0.0
        %3982 = vmatpush2.msra.mxu0 0.0
        %3983 = vmatprep.subr.mxu0 0.0
        %3984 = vmatpush2.msra.mxu0 0.0
        %3985 = vmatprep.subr.mxu0 0.0
        %3986 = vmatpush2.msra.mxu0 0.0
        %3987 = vmatprep.subr.mxu0 0.0
        %3988 = vmatpush2.msra.mxu0 0.0
        %3989 = vmatprep.subr.mxu0 0.0
        %3990 = vmatpush2.msra.mxu0 0.0
        %3991 = vmatprep.mubr.f32.mxu0 0.0
        %3992 = vmatmul.mubr.f32.gmra.mxu0 %v3916
        %v3993 = vpop.f32.mrf.mxu0
        %v3994 = vadd.f32 0.0, %v3993
        %v3995 = vpop.f32.mrf.mxu0
        %3996 = vmatprep.mubr.f32.mxu0 0.0
        %3997 = vmatmul.mubr.f32.gmra.mxu0 %v3919
        %v3998 = vpop.f32.mrf.mxu0
        %v3999 = vadd.f32 0.0, %v3998
        %v4000 = vpop.f32.mrf.mxu0
        %4001 = vmatprep.mubr.f32.mxu0 0.0
        %4002 = vmatmul.mubr.f32.gmra.mxu0 %v3922
        %v4003 = vpop.f32.mrf.mxu0
        %v4004 = vadd.f32 0.0, %v4003
        %v4005 = vpop.f32.mrf.mxu0
        %4006 = vmatprep.mubr.f32.mxu0 0.0
        %4007 = vmatmul.mubr.f32.gmra.mxu0 %v3925
        %v4008 = vpop.f32.mrf.mxu0
        %v4009 = vadd.f32 0.0, %v4008
        %v4010 = vpop.f32.mrf.mxu0
        %4011 = vdwg.mxu0
        %4012 = vxpose.xlu0.b32.start [1/16] %v3910, 128
        %4013 = vxpose.xlu0.b32.cont [2/16] %v3913, 128
        %4014 = vxpose.xlu0.b32.cont [3/16] 0.0, 128
        %4015 = vxpose.xlu0.b32.cont [4/16] 0.0, 128
        %4016 = vxpose.xlu0.b32.cont [5/16] 0.0, 128
        %4017 = vxpose.xlu0.b32.cont [6/16] 0.0, 128
        %4018 = vxpose.xlu0.b32.cont [7/16] 0.0, 128
        %4019 = vxpose.xlu0.b32.cont [8/16] 0.0, 128
        %4020 = vxpose.xlu0.b32.cont [9/16] 0.0, 128
        %4021 = vxpose.xlu0.b32.cont [10/16] 0.0, 128
        %4022 = vxpose.xlu0.b32.cont [11/16] 0.0, 128
        %4023 = vxpose.xlu0.b32.cont [12/16] 0.0, 128
        %4024 = vxpose.xlu0.b32.cont [13/16] 0.0, 128
        %4025 = vxpose.xlu0.b32.cont [14/16] 0.0, 128
        %4026 = vxpose.xlu0.b32.cont [15/16] 0.0, 128
        %4027 = vxpose.xlu0.b32.end [16/16] 0.0, 128
        %v4028 = vpop.trf.xlu0
        %v4029 = vpop.trf.xlu0
        %v4030 = vpop.trf.xlu0
        %v4031 = vpop.trf.xlu0
        %v4032 = vpop.trf.xlu0
        %v4033 = vpop.trf.xlu0
        %v4034 = vpop.trf.xlu0
        %v4035 = vpop.trf.xlu0
        %v4036 = vpop.trf.xlu0
        %v4037 = vpop.trf.xlu0
        %v4038 = vpop.trf.xlu0
        %v4039 = vpop.trf.xlu0
        %v4040 = vpop.trf.xlu0
        %v4041 = vpop.trf.xlu0
        %v4042 = vpop.trf.xlu0
        %v4043 = vpop.trf.xlu0
        %v4045 = vsel %vm479, %v4028, 0
        %v4048 = vsel %vm479, %v4029, 0
        %v4051 = vsel %vm479, %v4030, 0
        %v4054 = vsel %vm479, %v4031, 0
        %4056 = vmatprep.subr.mxu0 0.0
        %4057 = vmatpush1.msra.mxu0 0.0
        %4058 = vmatprep.subr.mxu0 0.0
        %4059 = vmatpush1.msra.mxu0 0.0
        %4060 = vmatprep.subr.mxu0 0.0
        %4061 = vmatpush1.msra.mxu0 0.0
        %4062 = vmatprep.subr.mxu0 0.0
        %4063 = vmatpush1.msra.mxu0 0.0
        %4064 = vmatprep.subr.mxu0 0.0
        %4065 = vmatpush1.msra.mxu0 0.0
        %4066 = vmatprep.subr.mxu0 0.0
        %4067 = vmatpush1.msra.mxu0 0.0
        %4068 = vmatprep.subr.mxu0 0.0
        %4069 = vmatpush1.msra.mxu0 0.0
        %4070 = vmatprep.subr.mxu0 0.0
        %4071 = vmatpush1.msra.mxu0 0.0
        %4072 = vmatprep.subr.mxu0 0.0
        %4073 = vmatpush1.msra.mxu0 0.0
        %4074 = vmatprep.subr.mxu0 0.0
        %4075 = vmatpush1.msra.mxu0 0.0
        %4076 = vmatprep.subr.mxu0 0.0
        %4077 = vmatpush1.msra.mxu0 0.0
        %4078 = vmatprep.subr.mxu0 0.0
        %4079 = vmatpush1.msra.mxu0 0.0
        %4080 = vmatprep.subr.mxu0 0.0
        %4081 = vmatpush1.msra.mxu0 0.0
        %4082 = vmatprep.subr.mxu0 0.0
        %4083 = vmatpush1.msra.mxu0 0.0
        %4084 = vmatprep.subr.mxu0 0.0
        %4085 = vmatpush1.msra.mxu0 %v303
        %4086 = vmatprep.subr.mxu0 0.0
        %4087 = vmatpush1.msra.mxu0 %v302
        %4088 = vmatprep.subr.mxu0 0.0
        %4089 = vmatpush2.msra.mxu0 0.0
        %4090 = vmatprep.subr.mxu0 0.0
        %4091 = vmatpush2.msra.mxu0 0.0
        %4092 = vmatprep.subr.mxu0 0.0
        %4093 = vmatpush2.msra.mxu0 0.0
        %4094 = vmatprep.subr.mxu0 0.0
        %4095 = vmatpush2.msra.mxu0 0.0
        %4096 = vmatprep.subr.mxu0 0.0
        %4097 = vmatpush2.msra.mxu0 0.0
        %4098 = vmatprep.subr.mxu0 0.0
        %4099 = vmatpush2.msra.mxu0 0.0
        %4100 = vmatprep.subr.mxu0 0.0
        %4101 = vmatpush2.msra.mxu0 0.0
        %4102 = vmatprep.subr.mxu0 0.0
        %4103 = vmatpush2.msra.mxu0 0.0
        %4104 = vmatprep.subr.mxu0 0.0
        %4105 = vmatpush2.msra.mxu0 0.0
        %4106 = vmatprep.subr.mxu0 0.0
        %4107 = vmatpush2.msra.mxu0 0.0
        %4108 = vmatprep.subr.mxu0 0.0
        %4109 = vmatpush2.msra.mxu0 0.0
        %4110 = vmatprep.subr.mxu0 0.0
        %4111 = vmatpush2.msra.mxu0 0.0
        %4112 = vmatprep.subr.mxu0 0.0
        %4113 = vmatpush2.msra.mxu0 0.0
        %4114 = vmatprep.subr.mxu0 0.0
        %4115 = vmatpush2.msra.mxu0 0.0
        %4116 = vmatprep.subr.mxu0 0.0
        %4117 = vmatpush2.msra.mxu0 0.0
        %4118 = vmatprep.subr.mxu0 0.0
        %4119 = vmatpush2.msra.mxu0 0.0
        %4120 = vmatprep.mubr.f32.mxu0 0.0
        %4121 = vmatmul.mubr.f32.gmra.mxu0 %v4045
        %v4122 = vpop.f32.mrf.mxu0
        %v4123 = vadd.f32 %v3994, %v4122
        %v4124 = vpop.f32.mrf.mxu0
        %4125 = vmatprep.mubr.f32.mxu0 0.0
        %4126 = vmatmul.mubr.f32.gmra.mxu0 %v4048
        %v4127 = vpop.f32.mrf.mxu0
        %v4128 = vadd.f32 %v3999, %v4127
        %v4129 = vpop.f32.mrf.mxu0
        %4130 = vmatprep.mubr.f32.mxu0 0.0
        %4131 = vmatmul.mubr.f32.gmra.mxu0 %v4051
        %v4132 = vpop.f32.mrf.mxu0
        %v4133 = vadd.f32 %v4004, %v4132
        %v4134 = vpop.f32.mrf.mxu0
        %4135 = vmatprep.mubr.f32.mxu0 0.0
        %4136 = vmatmul.mubr.f32.gmra.mxu0 %v4054
        %v4137 = vpop.f32.mrf.mxu0
        %v4138 = vadd.f32 %v4009, %v4137
        %v4139 = vpop.f32.mrf.mxu0
        %4140 = vdwg.mxu0
        %v4141 = vmul.f32 %v4123, 0.5
        %v4142 = vmul.f32 %v4128, 0.5
        %v4143 = vmul.f32 %v4133, 0.5
        %v4144 = vmul.f32 %v4138, 0.5
        %v4145 = vmul.f32 %v4123, 0.70710677
        %v4146 = vmul.f32 %v4128, 0.70710677
        %v4147 = vmul.f32 %v4133, 0.70710677
        %v4148 = vmul.f32 %v4138, 0.70710677
        %v4149 = vand.u32 2147483647, %v4145
        %v4150 = vand.u32 2147483647, %v4146
        %v4151 = vand.u32 2147483647, %v4147
        %v4152 = vand.u32 2147483647, %v4148
        %v4153 = vmul.f32 %v4149, 0.3275911
        %v4154 = vmul.f32 %v4150, 0.3275911
        %v4155 = vmul.f32 %v4151, 0.3275911
        %v4156 = vmul.f32 %v4152, 0.3275911
        %v4157 = vadd.f32 %v4153, 1.0
        %v4158 = vadd.f32 %v4154, 1.0
        %v4159 = vadd.f32 %v4155, 1.0
        %v4160 = vadd.f32 %v4156, 1.0
        %v4161 = vrcp.pop %v4157
        %v4162 = vmul.f32 1.0, %v4161
        %v4163 = vrcp.pop %v4158
        %v4164 = vmul.f32 1.0, %v4163
        %v4165 = vrcp.pop %v4159
        %v4166 = vmul.f32 1.0, %v4165
        %v4167 = vrcp.pop %v4160
        %v4168 = vmul.f32 1.0, %v4167
        %v4169 = vmul.f32 %v4162, 1.0614054
        %v4170 = vmul.f32 %v4164, 1.0614054
        %v4171 = vmul.f32 %v4166, 1.0614054
        %v4172 = vmul.f32 %v4168, 1.0614054
        %v4173 = vadd.f32 %v4169, -1.4531521
        %v4174 = vadd.f32 %v4170, -1.4531521
        %v4175 = vadd.f32 %v4171, -1.4531521
        %v4176 = vadd.f32 %v4172, -1.4531521
        %v4177 = vmul.f32 %v4173, %v4162
        %v4178 = vmul.f32 %v4174, %v4164
        %v4179 = vmul.f32 %v4175, %v4166
        %v4180 = vmul.f32 %v4176, %v4168
        %v4181 = vadd.f32 %v4177, 1.4214138
        %v4182 = vadd.f32 %v4178, 1.4214138
        %v4183 = vadd.f32 %v4179, 1.4214138
        %v4184 = vadd.f32 %v4180, 1.4214138
        %v4185 = vmul.f32 %v4181, %v4162
        %v4186 = vmul.f32 %v4182, %v4164
        %v4187 = vmul.f32 %v4183, %v4166
        %v4188 = vmul.f32 %v4184, %v4168
        %v4189 = vadd.f32 %v4185, -0.28449672
        %v4190 = vadd.f32 %v4186, -0.28449672
        %v4191 = vadd.f32 %v4187, -0.28449672
        %v4192 = vadd.f32 %v4188, -0.28449672
        %v4193 = vmul.f32 %v4189, %v4162
        %v4194 = vmul.f32 %v4190, %v4164
        %v4195 = vmul.f32 %v4191, %v4166
        %v4196 = vmul.f32 %v4192, %v4168
        %v4197 = vadd.f32 %v4193, 0.2548296
        %v4198 = vadd.f32 %v4194, 0.2548296
        %v4199 = vadd.f32 %v4195, 0.2548296
        %v4200 = vadd.f32 %v4196, 0.2548296
        %v4201 = vmul.f32 %v4197, %v4162
        %v4202 = vmul.f32 %v4198, %v4164
        %v4203 = vmul.f32 %v4199, %v4166
        %v4204 = vmul.f32 %v4200, %v4168
        %v4205 = vsub.f32 0.0, %v4149
        %v4206 = vsub.f32 0.0, %v4150
        %v4207 = vsub.f32 0.0, %v4151
        %v4208 = vsub.f32 0.0, %v4152
        %v4209 = vmul.f32 %v4205, %v4149
        %v4210 = vmul.f32 %v4206, %v4150
        %v4211 = vmul.f32 %v4207, %v4151
        %v4212 = vmul.f32 %v4208, %v4152
        %v4213 = vmul.f32 %v4209, 1.442695
        %v4214 = vpow.pop %v4213
        %v4215 = vmul.f32 %v4210, 1.442695
        %v4216 = vpow.pop %v4215
        %v4217 = vmul.f32 %v4211, 1.442695
        %v4218 = vpow.pop %v4217
        %v4219 = vmul.f32 %v4212, 1.442695
        %v4220 = vpow.pop %v4219
        %v4221 = vmul.f32 %v4201, %v4214
        %v4222 = vmul.f32 %v4202, %v4216
        %v4223 = vmul.f32 %v4203, %v4218
        %v4224 = vmul.f32 %v4204, %v4220
        %v4225 = vsub.f32 1.0, %v4221
        %v4226 = vsub.f32 1.0, %v4222
        %v4227 = vsub.f32 1.0, %v4223
        %v4228 = vsub.f32 1.0, %v4224
        %vm4229 = vcmp.ge.f32.partialorder %v4145, 0.0
        %vm4230 = vcmp.ge.f32.partialorder %v4146, 0.0
        %vm4231 = vcmp.ge.f32.partialorder %v4147, 0.0
        %vm4232 = vcmp.ge.f32.partialorder %v4148, 0.0
        %v4233 = vsub.f32 0.0, %v4225
        %v4234 = vsub.f32 0.0, %v4226
        %v4235 = vsub.f32 0.0, %v4227
        %v4236 = vsub.f32 0.0, %v4228
        %v4237 = vsel %vm4229, %v4225, %v4233
        %v4238 = vsel %vm4230, %v4226, %v4234
        %v4239 = vsel %vm4231, %v4227, %v4235
        %v4240 = vsel %vm4232, %v4228, %v4236
        %v4241 = vadd.f32 %v4237, 1.0
        %v4242 = vadd.f32 %v4238, 1.0
        %v4243 = vadd.f32 %v4239, 1.0
        %v4244 = vadd.f32 %v4240, 1.0
        %v4245 = vmul.f32 %v4141, %v4241
        %v4246 = vmul.f32 %v4142, %v4242
        %v4247 = vmul.f32 %v4143, %v4243
        %v4248 = vmul.f32 %v4144, %v4244
        %s4249 = scalar_lea.vmem %s2, 1536
        %v4250 = vld [vmem:[%s4249] sm:$0xff]
        %v4251 = vld [vmem:[%s4249 + $0x8] sm:$0xff]
        %v4252 = vld [vmem:[%s4249 + $0x10] sm:$0xff]
        %v4253 = vld [vmem:[%s4249 + $0x18] sm:$0xff]
        %v4254 = vld [vmem:[%s4249 + $0x20] sm:$0xff]
        %v4255 = vld [vmem:[%s4249 + $0x28] sm:$0xff]
        %v4256 = vld [vmem:[%s4249 + $0x30] sm:$0xff]
        %v4257 = vld [vmem:[%s4249 + $0x38] sm:$0xff]
        %v4258 = vld [vmem:[%s4249 + $0x40] sm:$0xff]
        %v4259 = vld [vmem:[%s4249 + $0x48] sm:$0xff]
        %v4260 = vld [vmem:[%s4249 + $0x50] sm:$0xff]
        %v4261 = vld [vmem:[%s4249 + $0x58] sm:$0xff]
        %v4262 = vld [vmem:[%s4249 + $0x60] sm:$0xff]
        %v4263 = vld [vmem:[%s4249 + $0x68] sm:$0xff]
        %v4264 = vld [vmem:[%s4249 + $0x70] sm:$0xff]
        %v4265 = vld [vmem:[%s4249 + $0x78] sm:$0xff]
        %v4266 = vld [vmem:[%s4249 + $0x80] sm:$0xff]
        %v4267 = vld [vmem:[%s4249 + $0x88] sm:$0xff]
        %v4268 = vld [vmem:[%s4249 + $0x90] sm:$0xff]
        %v4269 = vld [vmem:[%s4249 + $0x98] sm:$0xff]
        %v4270 = vld [vmem:[%s4249 + $0xa0] sm:$0xff]
        %v4271 = vld [vmem:[%s4249 + $0xa8] sm:$0xff]
        %v4272 = vld [vmem:[%s4249 + $0xb0] sm:$0xff]
        %v4273 = vld [vmem:[%s4249 + $0xb8] sm:$0xff]
        %v4274 = vld [vmem:[%s4249 + $0xc0] sm:$0xff]
        %v4275 = vld [vmem:[%s4249 + $0xc8] sm:$0xff]
        %v4276 = vld [vmem:[%s4249 + $0xd0] sm:$0xff]
        %v4277 = vld [vmem:[%s4249 + $0xd8] sm:$0xff]
        %v4278 = vld [vmem:[%s4249 + $0xe0] sm:$0xff]
        %v4279 = vld [vmem:[%s4249 + $0xe8] sm:$0xff]
        %v4280 = vld [vmem:[%s4249 + $0xf0] sm:$0xff]
        %v4281 = vld [vmem:[%s4249 + $0xf8] sm:$0xff]
        %v4282 = vld [vmem:[%s4249 + $0x100] sm:$0xff]
        %v4283 = vld [vmem:[%s4249 + $0x108] sm:$0xff]
        %v4284 = vld [vmem:[%s4249 + $0x110] sm:$0xff]
        %v4285 = vld [vmem:[%s4249 + $0x118] sm:$0xff]
        %v4286 = vld [vmem:[%s4249 + $0x120] sm:$0xff]
        %v4287 = vld [vmem:[%s4249 + $0x128] sm:$0xff]
        %v4288 = vld [vmem:[%s4249 + $0x130] sm:$0xff]
        %v4289 = vld [vmem:[%s4249 + $0x138] sm:$0xff]
        %v4290 = vld [vmem:[%s4249 + $0x140] sm:$0xff]
        %v4291 = vld [vmem:[%s4249 + $0x148] sm:$0xff]
        %v4292 = vld [vmem:[%s4249 + $0x150] sm:$0xff]
        %v4293 = vld [vmem:[%s4249 + $0x158] sm:$0xff]
        %v4294 = vld [vmem:[%s4249 + $0x160] sm:$0xff]
        %v4295 = vld [vmem:[%s4249 + $0x168] sm:$0xff]
        %v4296 = vld [vmem:[%s4249 + $0x170] sm:$0xff]
        %v4297 = vld [vmem:[%s4249 + $0x178] sm:$0xff]
        %v4298 = vld [vmem:[%s4249 + $0x180] sm:$0xff]
        %v4299 = vld [vmem:[%s4249 + $0x188] sm:$0xff]
        %v4300 = vld [vmem:[%s4249 + $0x190] sm:$0xff]
        %v4301 = vld [vmem:[%s4249 + $0x198] sm:$0xff]
        %v4302 = vld [vmem:[%s4249 + $0x1a0] sm:$0xff]
        %v4303 = vld [vmem:[%s4249 + $0x1a8] sm:$0xff]
        %v4304 = vld [vmem:[%s4249 + $0x1b0] sm:$0xff]
        %v4305 = vld [vmem:[%s4249 + $0x1b8] sm:$0xff]
        %v4306 = vld [vmem:[%s4249 + $0x1c0] sm:$0xff]
        %v4307 = vld [vmem:[%s4249 + $0x1c8] sm:$0xff]
        %v4308 = vld [vmem:[%s4249 + $0x1d0] sm:$0xff]
        %v4309 = vld [vmem:[%s4249 + $0x1d8] sm:$0xff]
        %v4310 = vld [vmem:[%s4249 + $0x1e0] sm:$0xff]
        %v4311 = vld [vmem:[%s4249 + $0x1e8] sm:$0xff]
        %v4312 = vld [vmem:[%s4249 + $0x1f0] sm:$0xff]
        %v4313 = vld [vmem:[%s4249 + $0x1f8] sm:$0xff]
        %s4314 = scalar_lea.vmem %s3, 96
        %v4315 = vld [vmem:[%s4314] sm:$0xff]
        %v4316 = vld [vmem:[%s4314 + $0x8] sm:$0xff]
        %v4317 = vld [vmem:[%s4314 + $0x10] sm:$0xff]
        %v4318 = vld [vmem:[%s4314 + $0x18] sm:$0xff]
        %v4320 = vsel %vm479, %v4245, 0
        %v4323 = vsel %vm479, %v4246, 0
        %v4326 = vsel %vm479, %v4247, 0
        %v4329 = vsel %vm479, %v4248, 0
        %4331 = vmatprep.subr.mxu0 0.0
        %4332 = vmatpush1.xpose.msra.mxu0 0.0
        %4333 = vmatprep.subr.mxu0 0.0
        %4334 = vmatpush1.xpose.msra.mxu0 0.0
        %4335 = vmatprep.subr.mxu0 0.0
        %4336 = vmatpush1.xpose.msra.mxu0 0.0
        %4337 = vmatprep.subr.mxu0 0.0
        %4338 = vmatpush1.xpose.msra.mxu0 0.0
        %4339 = vmatprep.subr.mxu0 0.0
        %4340 = vmatpush1.xpose.msra.mxu0 0.0
        %4341 = vmatprep.subr.mxu0 0.0
        %4342 = vmatpush1.xpose.msra.mxu0 0.0
        %4343 = vmatprep.subr.mxu0 0.0
        %4344 = vmatpush1.xpose.msra.mxu0 0.0
        %4345 = vmatprep.subr.mxu0 0.0
        %4346 = vmatpush1.xpose.msra.mxu0 0.0
        %4347 = vmatprep.subr.mxu0 0.0
        %4348 = vmatpush1.xpose.msra.mxu0 0.0
        %4349 = vmatprep.subr.mxu0 0.0
        %4350 = vmatpush1.xpose.msra.mxu0 0.0
        %4351 = vmatprep.subr.mxu0 0.0
        %4352 = vmatpush1.xpose.msra.mxu0 0.0
        %4353 = vmatprep.subr.mxu0 0.0
        %4354 = vmatpush1.xpose.msra.mxu0 0.0
        %4355 = vmatprep.subr.mxu0 0.0
        %4356 = vmatpush1.xpose.msra.mxu0 %v4329
        %4357 = vmatprep.subr.mxu0 0.0
        %4358 = vmatpush1.xpose.msra.mxu0 %v4326
        %4359 = vmatprep.subr.mxu0 0.0
        %4360 = vmatpush1.xpose.msra.mxu0 %v4323
        %4361 = vmatprep.subr.mxu0 0.0
        %4362 = vmatpush1.xpose.msra.mxu0 %v4320
        %4363 = vmatprep.subr.mxu0 0.0
        %4364 = vmatpush2.xpose.msra.mxu0 0.0
        %4365 = vmatprep.subr.mxu0 0.0
        %4366 = vmatpush2.xpose.msra.mxu0 0.0
        %4367 = vmatprep.subr.mxu0 0.0
        %4368 = vmatpush2.xpose.msra.mxu0 0.0
        %4369 = vmatprep.subr.mxu0 0.0
        %4370 = vmatpush2.xpose.msra.mxu0 0.0
        %4371 = vmatprep.subr.mxu0 0.0
        %4372 = vmatpush2.xpose.msra.mxu0 0.0
        %4373 = vmatprep.subr.mxu0 0.0
        %4374 = vmatpush2.xpose.msra.mxu0 0.0
        %4375 = vmatprep.subr.mxu0 0.0
        %4376 = vmatpush2.xpose.msra.mxu0 0.0
        %4377 = vmatprep.subr.mxu0 0.0
        %4378 = vmatpush2.xpose.msra.mxu0 0.0
        %4379 = vmatprep.subr.mxu0 0.0
        %4380 = vmatpush2.xpose.msra.mxu0 0.0
        %4381 = vmatprep.subr.mxu0 0.0
        %4382 = vmatpush2.xpose.msra.mxu0 0.0
        %4383 = vmatprep.subr.mxu0 0.0
        %4384 = vmatpush2.xpose.msra.mxu0 0.0
        %4385 = vmatprep.subr.mxu0 0.0
        %4386 = vmatpush2.xpose.msra.mxu0 0.0
        %4387 = vmatprep.subr.mxu0 0.0
        %4388 = vmatpush2.xpose.msra.mxu0 0.0
        %4389 = vmatprep.subr.mxu0 0.0
        %4390 = vmatpush2.xpose.msra.mxu0 0.0
        %4391 = vmatprep.subr.mxu0 0.0
        %4392 = vmatpush2.xpose.msra.mxu0 0.0
        %4393 = vmatprep.subr.mxu0 0.0
        %4394 = vmatpush2.xpose.msra.mxu0 0.0
        %4395 = vmatprep.mubr.f32.mxu0 0.0
        %4396 = vmatmul.mubr.f32.gmra.mxu0 %v481
        %v4397 = vpop.f32.mrf.mxu0
        %v4398 = vadd.f32 0.0, %v4397
        %v4399 = vpop.f32.mrf.mxu0
        %4400 = vmatprep.mubr.f32.mxu0 0.0
        %4401 = vmatmul.mubr.f32.gmra.mxu0 %v484
        %v4402 = vpop.f32.mrf.mxu0
        %v4403 = vadd.f32 0.0, %v4402
        %v4404 = vpop.f32.mrf.mxu0
        %4405 = vdwg.mxu0
        %v4408 = vcombine.high %v4398, %v4398
        %v4410 = vunpack.c.l.s4 1966171168
        %v4411 = vunpack.c.0.s8 %v4410
        %v4412 = vlaneseq
        %v4413 = vshrl.u32 %v4412, 7
        %v4414 = vsub.s32 %v4411, %v4413
        %v4415 = vrot.slane %v4398, %v4414
        %v4417 = vunpack.c.l.s4 1966171168
        %v4418 = vunpack.c.0.s8 %v4417
        %v4419 = vlaneseq
        %v4420 = vshrl.u32 %v4419, 7
        %v4421 = vsub.s32 %v4418, %v4420
        %v4422 = vrot.slane %v4408, %v4421
        %v4423 = vcombine.high %v4415, %v4415
        %v4424 = vcombine.high %v4422, %v4422
        %v4426 = vunpack.c.l.s4 1966171168
        %v4427 = vunpack.c.0.s8 %v4426
        %v4428 = vlaneseq
        %v4429 = vshrl.u32 %v4428, 7
        %v4430 = vsub.s32 %v4427, %v4429
        %v4431 = vrot.slane %v4415, %v4430
        %v4433 = vunpack.c.l.s4 1966171168
        %v4434 = vunpack.c.0.s8 %v4433
        %v4435 = vlaneseq
        %v4436 = vshrl.u32 %v4435, 7
        %v4437 = vsub.s32 %v4434, %v4436
        %v4438 = vrot.slane %v4422, %v4437
        %v4440 = vunpack.c.l.s4 1966171168
        %v4441 = vunpack.c.0.s8 %v4440
        %v4442 = vlaneseq
        %v4443 = vshrl.u32 %v4442, 7
        %v4444 = vsub.s32 %v4441, %v4443
        %v4445 = vrot.slane %v4423, %v4444
        %v4447 = vunpack.c.l.s4 1966171168
        %v4448 = vunpack.c.0.s8 %v4447
        %v4449 = vlaneseq
        %v4450 = vshrl.u32 %v4449, 7
        %v4451 = vsub.s32 %v4448, %v4450
        %v4452 = vrot.slane %v4424, %v4451
        %v4453 = vcombine.high %v4431, %v4431
        %v4454 = vcombine.high %v4438, %v4438
        %v4455 = vcombine.high %v4445, %v4445
        %v4456 = vcombine.high %v4452, %v4452
        %v4457 = vcombine.high %v4403, %v4403
        %v4459 = vunpack.c.l.s4 1966171168
        %v4460 = vunpack.c.0.s8 %v4459
        %v4461 = vlaneseq
        %v4462 = vshrl.u32 %v4461, 7
        %v4463 = vsub.s32 %v4460, %v4462
        %v4464 = vrot.slane %v4403, %v4463
        %v4466 = vunpack.c.l.s4 1966171168
        %v4467 = vunpack.c.0.s8 %v4466
        %v4468 = vlaneseq
        %v4469 = vshrl.u32 %v4468, 7
        %v4470 = vsub.s32 %v4467, %v4469
        %v4471 = vrot.slane %v4457, %v4470
        %v4472 = vcombine.high %v4464, %v4464
        %v4473 = vcombine.high %v4471, %v4471
        %v4475 = vunpack.c.l.s4 1966171168
        %v4476 = vunpack.c.0.s8 %v4475
        %v4477 = vlaneseq
        %v4478 = vshrl.u32 %v4477, 7
        %v4479 = vsub.s32 %v4476, %v4478
        %v4480 = vrot.slane %v4464, %v4479
        %v4482 = vunpack.c.l.s4 1966171168
        %v4483 = vunpack.c.0.s8 %v4482
        %v4484 = vlaneseq
        %v4485 = vshrl.u32 %v4484, 7
        %v4486 = vsub.s32 %v4483, %v4485
        %v4487 = vrot.slane %v4471, %v4486
        %v4489 = vunpack.c.l.s4 1966171168
        %v4490 = vunpack.c.0.s8 %v4489
        %v4491 = vlaneseq
        %v4492 = vshrl.u32 %v4491, 7
        %v4493 = vsub.s32 %v4490, %v4492
        %v4494 = vrot.slane %v4472, %v4493
        %v4496 = vunpack.c.l.s4 1966171168
        %v4497 = vunpack.c.0.s8 %v4496
        %v4498 = vlaneseq
        %v4499 = vshrl.u32 %v4498, 7
        %v4500 = vsub.s32 %v4497, %v4499
        %v4501 = vrot.slane %v4473, %v4500
        %v4502 = vcombine.high %v4480, %v4480
        %v4503 = vcombine.high %v4487, %v4487
        %v4504 = vcombine.high %v4494, %v4494
        %v4505 = vcombine.high %v4501, %v4501
        %v4514 = vlaneseq
        %v4515 = vshrl.u32 %v4514, 7
        %v4516 = vsub.s32 0, %v4515
        %v4517 = vrot.slane %v4480, %v4516
        %v4518 = vlaneseq
        %v4519 = vshrl.u32 %v4518, 7
        %v4520 = vsub.s32 0, %v4519
        %v4521 = vrot.slane %v4494, %v4520
        %v4522 = vlaneseq
        %v4523 = vshrl.u32 %v4522, 7
        %v4524 = vsub.s32 0, %v4523
        %v4525 = vrot.slane %v4502, %v4524
        %v4526 = vlaneseq
        %v4527 = vshrl.u32 %v4526, 7
        %v4528 = vsub.s32 0, %v4527
        %v4529 = vrot.slane %v4504, %v4528
        %v4530 = vlaneseq
        %v4531 = vshrl.u32 %v4530, 7
        %v4532 = vsub.s32 0, %v4531
        %v4533 = vrot.slane %v4487, %v4532
        %v4534 = vlaneseq
        %v4535 = vshrl.u32 %v4534, 7
        %v4536 = vsub.s32 0, %v4535
        %v4537 = vrot.slane %v4501, %v4536
        %v4538 = vlaneseq
        %v4539 = vshrl.u32 %v4538, 7
        %v4540 = vsub.s32 0, %v4539
        %v4541 = vrot.slane %v4503, %v4540
        %v4542 = vlaneseq
        %v4543 = vshrl.u32 %v4542, 7
        %v4544 = vsub.s32 0, %v4543
        %v4545 = vrot.slane %v4505, %v4544
        %4546 = vrot.lane.b32.xlu0 %v4517, 32
        %v4547 = vpop.permute.xlu0 %4546
        %4548 = vrot.lane.b32.xlu0 %v4521, 32
        %v4549 = vpop.permute.xlu0 %4548
        %4550 = vrot.lane.b32.xlu0 %v4525, 32
        %v4551 = vpop.permute.xlu0 %4550
        %4552 = vrot.lane.b32.xlu0 %v4529, 32
        %v4553 = vpop.permute.xlu0 %4552
        %4554 = vrot.lane.b32.xlu0 %v4533, 32
        %v4555 = vpop.permute.xlu0 %4554
        %4556 = vrot.lane.b32.xlu0 %v4537, 32
        %v4557 = vpop.permute.xlu0 %4556
        %4558 = vrot.lane.b32.xlu0 %v4541, 32
        %v4559 = vpop.permute.xlu0 %4558
        %4560 = vrot.lane.b32.xlu0 %v4545, 32
        %v4561 = vpop.permute.xlu0 %4560
        %v4570 = vsel %vm737, %v4431, %v4547
        %v4571 = vsel %vm737, %v4445, %v4549
        %v4572 = vsel %vm737, %v4453, %v4551
        %v4573 = vsel %vm737, %v4455, %v4553
        %v4574 = vsel %vm737, %v4438, %v4555
        %v4575 = vsel %vm737, %v4452, %v4557
        %v4576 = vsel %vm737, %v4454, %v4559
        %v4577 = vsel %vm737, %v4456, %v4561
        %v4579 = vsel %vm746, %v4570, 0
        %4581 = vmatprep.subr.mxu0 0.0
        %4582 = vmatpush1.msra.mxu0 0.0
        %4583 = vmatprep.subr.mxu0 0.0
        %4584 = vmatpush1.msra.mxu0 0.0
        %4585 = vmatprep.subr.mxu0 0.0
        %4586 = vmatpush1.msra.mxu0 0.0
        %4587 = vmatprep.subr.mxu0 0.0
        %4588 = vmatpush1.msra.mxu0 0.0
        %4589 = vmatprep.subr.mxu0 0.0
        %4590 = vmatpush1.msra.mxu0 0.0
        %4591 = vmatprep.subr.mxu0 0.0
        %4592 = vmatpush1.msra.mxu0 0.0
        %4593 = vmatprep.subr.mxu0 0.0
        %4594 = vmatpush1.msra.mxu0 0.0
        %4595 = vmatprep.subr.mxu0 0.0
        %4596 = vmatpush1.msra.mxu0 0.0
        %4597 = vmatprep.subr.mxu0 0.0
        %4598 = vmatpush1.msra.mxu0 %v4257
        %4599 = vmatprep.subr.mxu0 0.0
        %4600 = vmatpush1.msra.mxu0 %v4256
        %4601 = vmatprep.subr.mxu0 0.0
        %4602 = vmatpush1.msra.mxu0 %v4255
        %4603 = vmatprep.subr.mxu0 0.0
        %4604 = vmatpush1.msra.mxu0 %v4254
        %4605 = vmatprep.subr.mxu0 0.0
        %4606 = vmatpush1.msra.mxu0 %v4253
        %4607 = vmatprep.subr.mxu0 0.0
        %4608 = vmatpush1.msra.mxu0 %v4252
        %4609 = vmatprep.subr.mxu0 0.0
        %4610 = vmatpush1.msra.mxu0 %v4251
        %4611 = vmatprep.subr.mxu0 0.0
        %4612 = vmatpush1.msra.mxu0 %v4250
        %4613 = vmatprep.subr.mxu0 0.0
        %4614 = vmatpush2.msra.mxu0 0.0
        %4615 = vmatprep.subr.mxu0 0.0
        %4616 = vmatpush2.msra.mxu0 0.0
        %4617 = vmatprep.subr.mxu0 0.0
        %4618 = vmatpush2.msra.mxu0 0.0
        %4619 = vmatprep.subr.mxu0 0.0
        %4620 = vmatpush2.msra.mxu0 0.0
        %4621 = vmatprep.subr.mxu0 0.0
        %4622 = vmatpush2.msra.mxu0 0.0
        %4623 = vmatprep.subr.mxu0 0.0
        %4624 = vmatpush2.msra.mxu0 0.0
        %4625 = vmatprep.subr.mxu0 0.0
        %4626 = vmatpush2.msra.mxu0 0.0
        %4627 = vmatprep.subr.mxu0 0.0
        %4628 = vmatpush2.msra.mxu0 0.0
        %4629 = vmatprep.subr.mxu0 0.0
        %4630 = vmatpush2.msra.mxu0 0.0
        %4631 = vmatprep.subr.mxu0 0.0
        %4632 = vmatpush2.msra.mxu0 0.0
        %4633 = vmatprep.subr.mxu0 0.0
        %4634 = vmatpush2.msra.mxu0 0.0
        %4635 = vmatprep.subr.mxu0 0.0
        %4636 = vmatpush2.msra.mxu0 0.0
        %4637 = vmatprep.subr.mxu0 0.0
        %4638 = vmatpush2.msra.mxu0 0.0
        %4639 = vmatprep.subr.mxu0 0.0
        %4640 = vmatpush2.msra.mxu0 0.0
        %4641 = vmatprep.subr.mxu0 0.0
        %4642 = vmatpush2.msra.mxu0 0.0
        %4643 = vmatprep.subr.mxu0 0.0
        %4644 = vmatpush2.msra.mxu0 0.0
        %4645 = vmatprep.mubr.f32.mxu0 0.0
        %4646 = vmatmul.mubr.f32.gmra.mxu0 %v4579
        %v4647 = vpop.f32.mrf.mxu0
        %v4648 = vadd.f32 0.0, %v4647
        %v4649 = vpop.f32.mrf.mxu0
        %4650 = vdwg.mxu0
        %v4652 = vsel %vm746, %v4571, 0
        %4654 = vmatprep.subr.mxu0 0.0
        %4655 = vmatpush1.msra.mxu0 0.0
        %4656 = vmatprep.subr.mxu0 0.0
        %4657 = vmatpush1.msra.mxu0 0.0
        %4658 = vmatprep.subr.mxu0 0.0
        %4659 = vmatpush1.msra.mxu0 0.0
        %4660 = vmatprep.subr.mxu0 0.0
        %4661 = vmatpush1.msra.mxu0 0.0
        %4662 = vmatprep.subr.mxu0 0.0
        %4663 = vmatpush1.msra.mxu0 0.0
        %4664 = vmatprep.subr.mxu0 0.0
        %4665 = vmatpush1.msra.mxu0 0.0
        %4666 = vmatprep.subr.mxu0 0.0
        %4667 = vmatpush1.msra.mxu0 0.0
        %4668 = vmatprep.subr.mxu0 0.0
        %4669 = vmatpush1.msra.mxu0 0.0
        %4670 = vmatprep.subr.mxu0 0.0
        %4671 = vmatpush1.msra.mxu0 %v4265
        %4672 = vmatprep.subr.mxu0 0.0
        %4673 = vmatpush1.msra.mxu0 %v4264
        %4674 = vmatprep.subr.mxu0 0.0
        %4675 = vmatpush1.msra.mxu0 %v4263
        %4676 = vmatprep.subr.mxu0 0.0
        %4677 = vmatpush1.msra.mxu0 %v4262
        %4678 = vmatprep.subr.mxu0 0.0
        %4679 = vmatpush1.msra.mxu0 %v4261
        %4680 = vmatprep.subr.mxu0 0.0
        %4681 = vmatpush1.msra.mxu0 %v4260
        %4682 = vmatprep.subr.mxu0 0.0
        %4683 = vmatpush1.msra.mxu0 %v4259
        %4684 = vmatprep.subr.mxu0 0.0
        %4685 = vmatpush1.msra.mxu0 %v4258
        %4686 = vmatprep.subr.mxu0 0.0
        %4687 = vmatpush2.msra.mxu0 0.0
        %4688 = vmatprep.subr.mxu0 0.0
        %4689 = vmatpush2.msra.mxu0 0.0
        %4690 = vmatprep.subr.mxu0 0.0
        %4691 = vmatpush2.msra.mxu0 0.0
        %4692 = vmatprep.subr.mxu0 0.0
        %4693 = vmatpush2.msra.mxu0 0.0
        %4694 = vmatprep.subr.mxu0 0.0
        %4695 = vmatpush2.msra.mxu0 0.0
        %4696 = vmatprep.subr.mxu0 0.0
        %4697 = vmatpush2.msra.mxu0 0.0
        %4698 = vmatprep.subr.mxu0 0.0
        %4699 = vmatpush2.msra.mxu0 0.0
        %4700 = vmatprep.subr.mxu0 0.0
        %4701 = vmatpush2.msra.mxu0 0.0
        %4702 = vmatprep.subr.mxu0 0.0
        %4703 = vmatpush2.msra.mxu0 0.0
        %4704 = vmatprep.subr.mxu0 0.0
        %4705 = vmatpush2.msra.mxu0 0.0
        %4706 = vmatprep.subr.mxu0 0.0
        %4707 = vmatpush2.msra.mxu0 0.0
        %4708 = vmatprep.subr.mxu0 0.0
        %4709 = vmatpush2.msra.mxu0 0.0
        %4710 = vmatprep.subr.mxu0 0.0
        %4711 = vmatpush2.msra.mxu0 0.0
        %4712 = vmatprep.subr.mxu0 0.0
        %4713 = vmatpush2.msra.mxu0 0.0
        %4714 = vmatprep.subr.mxu0 0.0
        %4715 = vmatpush2.msra.mxu0 0.0
        %4716 = vmatprep.subr.mxu0 0.0
        %4717 = vmatpush2.msra.mxu0 0.0
        %4718 = vmatprep.mubr.f32.mxu0 0.0
        %4719 = vmatmul.mubr.f32.gmra.mxu0 %v4652
        %v4720 = vpop.f32.mrf.mxu0
        %v4721 = vadd.f32 0.0, %v4720
        %v4722 = vpop.f32.mrf.mxu0
        %4723 = vdwg.mxu0
        %v4725 = vsel %vm746, %v4572, 0
        %4727 = vmatprep.subr.mxu0 0.0
        %4728 = vmatpush1.msra.mxu0 0.0
        %4729 = vmatprep.subr.mxu0 0.0
        %4730 = vmatpush1.msra.mxu0 0.0
        %4731 = vmatprep.subr.mxu0 0.0
        %4732 = vmatpush1.msra.mxu0 0.0
        %4733 = vmatprep.subr.mxu0 0.0
        %4734 = vmatpush1.msra.mxu0 0.0
        %4735 = vmatprep.subr.mxu0 0.0
        %4736 = vmatpush1.msra.mxu0 0.0
        %4737 = vmatprep.subr.mxu0 0.0
        %4738 = vmatpush1.msra.mxu0 0.0
        %4739 = vmatprep.subr.mxu0 0.0
        %4740 = vmatpush1.msra.mxu0 0.0
        %4741 = vmatprep.subr.mxu0 0.0
        %4742 = vmatpush1.msra.mxu0 0.0
        %4743 = vmatprep.subr.mxu0 0.0
        %4744 = vmatpush1.msra.mxu0 %v4273
        %4745 = vmatprep.subr.mxu0 0.0
        %4746 = vmatpush1.msra.mxu0 %v4272
        %4747 = vmatprep.subr.mxu0 0.0
        %4748 = vmatpush1.msra.mxu0 %v4271
        %4749 = vmatprep.subr.mxu0 0.0
        %4750 = vmatpush1.msra.mxu0 %v4270
        %4751 = vmatprep.subr.mxu0 0.0
        %4752 = vmatpush1.msra.mxu0 %v4269
        %4753 = vmatprep.subr.mxu0 0.0
        %4754 = vmatpush1.msra.mxu0 %v4268
        %4755 = vmatprep.subr.mxu0 0.0
        %4756 = vmatpush1.msra.mxu0 %v4267
        %4757 = vmatprep.subr.mxu0 0.0
        %4758 = vmatpush1.msra.mxu0 %v4266
        %4759 = vmatprep.subr.mxu0 0.0
        %4760 = vmatpush2.msra.mxu0 0.0
        %4761 = vmatprep.subr.mxu0 0.0
        %4762 = vmatpush2.msra.mxu0 0.0
        %4763 = vmatprep.subr.mxu0 0.0
        %4764 = vmatpush2.msra.mxu0 0.0
        %4765 = vmatprep.subr.mxu0 0.0
        %4766 = vmatpush2.msra.mxu0 0.0
        %4767 = vmatprep.subr.mxu0 0.0
        %4768 = vmatpush2.msra.mxu0 0.0
        %4769 = vmatprep.subr.mxu0 0.0
        %4770 = vmatpush2.msra.mxu0 0.0
        %4771 = vmatprep.subr.mxu0 0.0
        %4772 = vmatpush2.msra.mxu0 0.0
        %4773 = vmatprep.subr.mxu0 0.0
        %4774 = vmatpush2.msra.mxu0 0.0
        %4775 = vmatprep.subr.mxu0 0.0
        %4776 = vmatpush2.msra.mxu0 0.0
        %4777 = vmatprep.subr.mxu0 0.0
        %4778 = vmatpush2.msra.mxu0 0.0
        %4779 = vmatprep.subr.mxu0 0.0
        %4780 = vmatpush2.msra.mxu0 0.0
        %4781 = vmatprep.subr.mxu0 0.0
        %4782 = vmatpush2.msra.mxu0 0.0
        %4783 = vmatprep.subr.mxu0 0.0
        %4784 = vmatpush2.msra.mxu0 0.0
        %4785 = vmatprep.subr.mxu0 0.0
        %4786 = vmatpush2.msra.mxu0 0.0
        %4787 = vmatprep.subr.mxu0 0.0
        %4788 = vmatpush2.msra.mxu0 0.0
        %4789 = vmatprep.subr.mxu0 0.0
        %4790 = vmatpush2.msra.mxu0 0.0
        %4791 = vmatprep.mubr.f32.mxu0 0.0
        %4792 = vmatmul.mubr.f32.gmra.mxu0 %v4725
        %v4793 = vpop.f32.mrf.mxu0
        %v4794 = vadd.f32 0.0, %v4793
        %v4795 = vpop.f32.mrf.mxu0
        %4796 = vdwg.mxu0
        %v4798 = vsel %vm746, %v4573, 0
        %4800 = vmatprep.subr.mxu0 0.0
        %4801 = vmatpush1.msra.mxu0 0.0
        %4802 = vmatprep.subr.mxu0 0.0
        %4803 = vmatpush1.msra.mxu0 0.0
        %4804 = vmatprep.subr.mxu0 0.0
        %4805 = vmatpush1.msra.mxu0 0.0
        %4806 = vmatprep.subr.mxu0 0.0
        %4807 = vmatpush1.msra.mxu0 0.0
        %4808 = vmatprep.subr.mxu0 0.0
        %4809 = vmatpush1.msra.mxu0 0.0
        %4810 = vmatprep.subr.mxu0 0.0
        %4811 = vmatpush1.msra.mxu0 0.0
        %4812 = vmatprep.subr.mxu0 0.0
        %4813 = vmatpush1.msra.mxu0 0.0
        %4814 = vmatprep.subr.mxu0 0.0
        %4815 = vmatpush1.msra.mxu0 0.0
        %4816 = vmatprep.subr.mxu0 0.0
        %4817 = vmatpush1.msra.mxu0 %v4281
        %4818 = vmatprep.subr.mxu0 0.0
        %4819 = vmatpush1.msra.mxu0 %v4280
        %4820 = vmatprep.subr.mxu0 0.0
        %4821 = vmatpush1.msra.mxu0 %v4279
        %4822 = vmatprep.subr.mxu0 0.0
        %4823 = vmatpush1.msra.mxu0 %v4278
        %4824 = vmatprep.subr.mxu0 0.0
        %4825 = vmatpush1.msra.mxu0 %v4277
        %4826 = vmatprep.subr.mxu0 0.0
        %4827 = vmatpush1.msra.mxu0 %v4276
        %4828 = vmatprep.subr.mxu0 0.0
        %4829 = vmatpush1.msra.mxu0 %v4275
        %4830 = vmatprep.subr.mxu0 0.0
        %4831 = vmatpush1.msra.mxu0 %v4274
        %4832 = vmatprep.subr.mxu0 0.0
        %4833 = vmatpush2.msra.mxu0 0.0
        %4834 = vmatprep.subr.mxu0 0.0
        %4835 = vmatpush2.msra.mxu0 0.0
        %4836 = vmatprep.subr.mxu0 0.0
        %4837 = vmatpush2.msra.mxu0 0.0
        %4838 = vmatprep.subr.mxu0 0.0
        %4839 = vmatpush2.msra.mxu0 0.0
        %4840 = vmatprep.subr.mxu0 0.0
        %4841 = vmatpush2.msra.mxu0 0.0
        %4842 = vmatprep.subr.mxu0 0.0
        %4843 = vmatpush2.msra.mxu0 0.0
        %4844 = vmatprep.subr.mxu0 0.0
        %4845 = vmatpush2.msra.mxu0 0.0
        %4846 = vmatprep.subr.mxu0 0.0
        %4847 = vmatpush2.msra.mxu0 0.0
        %4848 = vmatprep.subr.mxu0 0.0
        %4849 = vmatpush2.msra.mxu0 0.0
        %4850 = vmatprep.subr.mxu0 0.0
        %4851 = vmatpush2.msra.mxu0 0.0
        %4852 = vmatprep.subr.mxu0 0.0
        %4853 = vmatpush2.msra.mxu0 0.0
        %4854 = vmatprep.subr.mxu0 0.0
        %4855 = vmatpush2.msra.mxu0 0.0
        %4856 = vmatprep.subr.mxu0 0.0
        %4857 = vmatpush2.msra.mxu0 0.0
        %4858 = vmatprep.subr.mxu0 0.0
        %4859 = vmatpush2.msra.mxu0 0.0
        %4860 = vmatprep.subr.mxu0 0.0
        %4861 = vmatpush2.msra.mxu0 0.0
        %4862 = vmatprep.subr.mxu0 0.0
        %4863 = vmatpush2.msra.mxu0 0.0
        %4864 = vmatprep.mubr.f32.mxu0 0.0
        %4865 = vmatmul.mubr.f32.gmra.mxu0 %v4798
        %v4866 = vpop.f32.mrf.mxu0
        %v4867 = vadd.f32 0.0, %v4866
        %v4868 = vpop.f32.mrf.mxu0
        %4869 = vdwg.mxu0
        %v4871 = vsel %vm746, %v4574, 0
        %4873 = vmatprep.subr.mxu0 0.0
        %4874 = vmatpush1.msra.mxu0 0.0
        %4875 = vmatprep.subr.mxu0 0.0
        %4876 = vmatpush1.msra.mxu0 0.0
        %4877 = vmatprep.subr.mxu0 0.0
        %4878 = vmatpush1.msra.mxu0 0.0
        %4879 = vmatprep.subr.mxu0 0.0
        %4880 = vmatpush1.msra.mxu0 0.0
        %4881 = vmatprep.subr.mxu0 0.0
        %4882 = vmatpush1.msra.mxu0 0.0
        %4883 = vmatprep.subr.mxu0 0.0
        %4884 = vmatpush1.msra.mxu0 0.0
        %4885 = vmatprep.subr.mxu0 0.0
        %4886 = vmatpush1.msra.mxu0 0.0
        %4887 = vmatprep.subr.mxu0 0.0
        %4888 = vmatpush1.msra.mxu0 0.0
        %4889 = vmatprep.subr.mxu0 0.0
        %4890 = vmatpush1.msra.mxu0 %v4289
        %4891 = vmatprep.subr.mxu0 0.0
        %4892 = vmatpush1.msra.mxu0 %v4288
        %4893 = vmatprep.subr.mxu0 0.0
        %4894 = vmatpush1.msra.mxu0 %v4287
        %4895 = vmatprep.subr.mxu0 0.0
        %4896 = vmatpush1.msra.mxu0 %v4286
        %4897 = vmatprep.subr.mxu0 0.0
        %4898 = vmatpush1.msra.mxu0 %v4285
        %4899 = vmatprep.subr.mxu0 0.0
        %4900 = vmatpush1.msra.mxu0 %v4284
        %4901 = vmatprep.subr.mxu0 0.0
        %4902 = vmatpush1.msra.mxu0 %v4283
        %4903 = vmatprep.subr.mxu0 0.0
        %4904 = vmatpush1.msra.mxu0 %v4282
        %4905 = vmatprep.subr.mxu0 0.0
        %4906 = vmatpush2.msra.mxu0 0.0
        %4907 = vmatprep.subr.mxu0 0.0
        %4908 = vmatpush2.msra.mxu0 0.0
        %4909 = vmatprep.subr.mxu0 0.0
        %4910 = vmatpush2.msra.mxu0 0.0
        %4911 = vmatprep.subr.mxu0 0.0
        %4912 = vmatpush2.msra.mxu0 0.0
        %4913 = vmatprep.subr.mxu0 0.0
        %4914 = vmatpush2.msra.mxu0 0.0
        %4915 = vmatprep.subr.mxu0 0.0
        %4916 = vmatpush2.msra.mxu0 0.0
        %4917 = vmatprep.subr.mxu0 0.0
        %4918 = vmatpush2.msra.mxu0 0.0
        %4919 = vmatprep.subr.mxu0 0.0
        %4920 = vmatpush2.msra.mxu0 0.0
        %4921 = vmatprep.subr.mxu0 0.0
        %4922 = vmatpush2.msra.mxu0 0.0
        %4923 = vmatprep.subr.mxu0 0.0
        %4924 = vmatpush2.msra.mxu0 0.0
        %4925 = vmatprep.subr.mxu0 0.0
        %4926 = vmatpush2.msra.mxu0 0.0
        %4927 = vmatprep.subr.mxu0 0.0
        %4928 = vmatpush2.msra.mxu0 0.0
        %4929 = vmatprep.subr.mxu0 0.0
        %4930 = vmatpush2.msra.mxu0 0.0
        %4931 = vmatprep.subr.mxu0 0.0
        %4932 = vmatpush2.msra.mxu0 0.0
        %4933 = vmatprep.subr.mxu0 0.0
        %4934 = vmatpush2.msra.mxu0 0.0
        %4935 = vmatprep.subr.mxu0 0.0
        %4936 = vmatpush2.msra.mxu0 0.0
        %4937 = vmatprep.mubr.f32.mxu0 0.0
        %4938 = vmatmul.mubr.f32.gmra.mxu0 %v4871
        %v4939 = vpop.f32.mrf.mxu0
        %v4940 = vadd.f32 0.0, %v4939
        %v4941 = vpop.f32.mrf.mxu0
        %4942 = vdwg.mxu0
        %v4944 = vsel %vm746, %v4575, 0
        %4946 = vmatprep.subr.mxu0 0.0
        %4947 = vmatpush1.msra.mxu0 0.0
        %4948 = vmatprep.subr.mxu0 0.0
        %4949 = vmatpush1.msra.mxu0 0.0
        %4950 = vmatprep.subr.mxu0 0.0
        %4951 = vmatpush1.msra.mxu0 0.0
        %4952 = vmatprep.subr.mxu0 0.0
        %4953 = vmatpush1.msra.mxu0 0.0
        %4954 = vmatprep.subr.mxu0 0.0
        %4955 = vmatpush1.msra.mxu0 0.0
        %4956 = vmatprep.subr.mxu0 0.0
        %4957 = vmatpush1.msra.mxu0 0.0
        %4958 = vmatprep.subr.mxu0 0.0
        %4959 = vmatpush1.msra.mxu0 0.0
        %4960 = vmatprep.subr.mxu0 0.0
        %4961 = vmatpush1.msra.mxu0 0.0
        %4962 = vmatprep.subr.mxu0 0.0
        %4963 = vmatpush1.msra.mxu0 %v4297
        %4964 = vmatprep.subr.mxu0 0.0
        %4965 = vmatpush1.msra.mxu0 %v4296
        %4966 = vmatprep.subr.mxu0 0.0
        %4967 = vmatpush1.msra.mxu0 %v4295
        %4968 = vmatprep.subr.mxu0 0.0
        %4969 = vmatpush1.msra.mxu0 %v4294
        %4970 = vmatprep.subr.mxu0 0.0
        %4971 = vmatpush1.msra.mxu0 %v4293
        %4972 = vmatprep.subr.mxu0 0.0
        %4973 = vmatpush1.msra.mxu0 %v4292
        %4974 = vmatprep.subr.mxu0 0.0
        %4975 = vmatpush1.msra.mxu0 %v4291
        %4976 = vmatprep.subr.mxu0 0.0
        %4977 = vmatpush1.msra.mxu0 %v4290
        %4978 = vmatprep.subr.mxu0 0.0
        %4979 = vmatpush2.msra.mxu0 0.0
        %4980 = vmatprep.subr.mxu0 0.0
        %4981 = vmatpush2.msra.mxu0 0.0
        %4982 = vmatprep.subr.mxu0 0.0
        %4983 = vmatpush2.msra.mxu0 0.0
        %4984 = vmatprep.subr.mxu0 0.0
        %4985 = vmatpush2.msra.mxu0 0.0
        %4986 = vmatprep.subr.mxu0 0.0
        %4987 = vmatpush2.msra.mxu0 0.0
        %4988 = vmatprep.subr.mxu0 0.0
        %4989 = vmatpush2.msra.mxu0 0.0
        %4990 = vmatprep.subr.mxu0 0.0
        %4991 = vmatpush2.msra.mxu0 0.0
        %4992 = vmatprep.subr.mxu0 0.0
        %4993 = vmatpush2.msra.mxu0 0.0
        %4994 = vmatprep.subr.mxu0 0.0
        %4995 = vmatpush2.msra.mxu0 0.0
        %4996 = vmatprep.subr.mxu0 0.0
        %4997 = vmatpush2.msra.mxu0 0.0
        %4998 = vmatprep.subr.mxu0 0.0
        %4999 = vmatpush2.msra.mxu0 0.0
        %5000 = vmatprep.subr.mxu0 0.0
        %5001 = vmatpush2.msra.mxu0 0.0
        %5002 = vmatprep.subr.mxu0 0.0
        %5003 = vmatpush2.msra.mxu0 0.0
        %5004 = vmatprep.subr.mxu0 0.0
        %5005 = vmatpush2.msra.mxu0 0.0
        %5006 = vmatprep.subr.mxu0 0.0
        %5007 = vmatpush2.msra.mxu0 0.0
        %5008 = vmatprep.subr.mxu0 0.0
        %5009 = vmatpush2.msra.mxu0 0.0
        %5010 = vmatprep.mubr.f32.mxu0 0.0
        %5011 = vmatmul.mubr.f32.gmra.mxu0 %v4944
        %v5012 = vpop.f32.mrf.mxu0
        %v5013 = vadd.f32 0.0, %v5012
        %v5014 = vpop.f32.mrf.mxu0
        %5015 = vdwg.mxu0
        %v5017 = vsel %vm746, %v4576, 0
        %5019 = vmatprep.subr.mxu0 0.0
        %5020 = vmatpush1.msra.mxu0 0.0
        %5021 = vmatprep.subr.mxu0 0.0
        %5022 = vmatpush1.msra.mxu0 0.0
        %5023 = vmatprep.subr.mxu0 0.0
        %5024 = vmatpush1.msra.mxu0 0.0
        %5025 = vmatprep.subr.mxu0 0.0
        %5026 = vmatpush1.msra.mxu0 0.0
        %5027 = vmatprep.subr.mxu0 0.0
        %5028 = vmatpush1.msra.mxu0 0.0
        %5029 = vmatprep.subr.mxu0 0.0
        %5030 = vmatpush1.msra.mxu0 0.0
        %5031 = vmatprep.subr.mxu0 0.0
        %5032 = vmatpush1.msra.mxu0 0.0
        %5033 = vmatprep.subr.mxu0 0.0
        %5034 = vmatpush1.msra.mxu0 0.0
        %5035 = vmatprep.subr.mxu0 0.0
        %5036 = vmatpush1.msra.mxu0 %v4305
        %5037 = vmatprep.subr.mxu0 0.0
        %5038 = vmatpush1.msra.mxu0 %v4304
        %5039 = vmatprep.subr.mxu0 0.0
        %5040 = vmatpush1.msra.mxu0 %v4303
        %5041 = vmatprep.subr.mxu0 0.0
        %5042 = vmatpush1.msra.mxu0 %v4302
        %5043 = vmatprep.subr.mxu0 0.0
        %5044 = vmatpush1.msra.mxu0 %v4301
        %5045 = vmatprep.subr.mxu0 0.0
        %5046 = vmatpush1.msra.mxu0 %v4300
        %5047 = vmatprep.subr.mxu0 0.0
        %5048 = vmatpush1.msra.mxu0 %v4299
        %5049 = vmatprep.subr.mxu0 0.0
        %5050 = vmatpush1.msra.mxu0 %v4298
        %5051 = vmatprep.subr.mxu0 0.0
        %5052 = vmatpush2.msra.mxu0 0.0
        %5053 = vmatprep.subr.mxu0 0.0
        %5054 = vmatpush2.msra.mxu0 0.0
        %5055 = vmatprep.subr.mxu0 0.0
        %5056 = vmatpush2.msra.mxu0 0.0
        %5057 = vmatprep.subr.mxu0 0.0
        %5058 = vmatpush2.msra.mxu0 0.0
        %5059 = vmatprep.subr.mxu0 0.0
        %5060 = vmatpush2.msra.mxu0 0.0
        %5061 = vmatprep.subr.mxu0 0.0
        %5062 = vmatpush2.msra.mxu0 0.0
        %5063 = vmatprep.subr.mxu0 0.0
        %5064 = vmatpush2.msra.mxu0 0.0
        %5065 = vmatprep.subr.mxu0 0.0
        %5066 = vmatpush2.msra.mxu0 0.0
        %5067 = vmatprep.subr.mxu0 0.0
        %5068 = vmatpush2.msra.mxu0 0.0
        %5069 = vmatprep.subr.mxu0 0.0
        %5070 = vmatpush2.msra.mxu0 0.0
        %5071 = vmatprep.subr.mxu0 0.0
        %5072 = vmatpush2.msra.mxu0 0.0
        %5073 = vmatprep.subr.mxu0 0.0
        %5074 = vmatpush2.msra.mxu0 0.0
        %5075 = vmatprep.subr.mxu0 0.0
        %5076 = vmatpush2.msra.mxu0 0.0
        %5077 = vmatprep.subr.mxu0 0.0
        %5078 = vmatpush2.msra.mxu0 0.0
        %5079 = vmatprep.subr.mxu0 0.0
        %5080 = vmatpush2.msra.mxu0 0.0
        %5081 = vmatprep.subr.mxu0 0.0
        %5082 = vmatpush2.msra.mxu0 0.0
        %5083 = vmatprep.mubr.f32.mxu0 0.0
        %5084 = vmatmul.mubr.f32.gmra.mxu0 %v5017
        %v5085 = vpop.f32.mrf.mxu0
        %v5086 = vadd.f32 0.0, %v5085
        %v5087 = vpop.f32.mrf.mxu0
        %5088 = vdwg.mxu0
        %v5090 = vsel %vm746, %v4577, 0
        %5092 = vmatprep.subr.mxu0 0.0
        %5093 = vmatpush1.msra.mxu0 0.0
        %5094 = vmatprep.subr.mxu0 0.0
        %5095 = vmatpush1.msra.mxu0 0.0
        %5096 = vmatprep.subr.mxu0 0.0
        %5097 = vmatpush1.msra.mxu0 0.0
        %5098 = vmatprep.subr.mxu0 0.0
        %5099 = vmatpush1.msra.mxu0 0.0
        %5100 = vmatprep.subr.mxu0 0.0
        %5101 = vmatpush1.msra.mxu0 0.0
        %5102 = vmatprep.subr.mxu0 0.0
        %5103 = vmatpush1.msra.mxu0 0.0
        %5104 = vmatprep.subr.mxu0 0.0
        %5105 = vmatpush1.msra.mxu0 0.0
        %5106 = vmatprep.subr.mxu0 0.0
        %5107 = vmatpush1.msra.mxu0 0.0
        %5108 = vmatprep.subr.mxu0 0.0
        %5109 = vmatpush1.msra.mxu0 %v4313
        %5110 = vmatprep.subr.mxu0 0.0
        %5111 = vmatpush1.msra.mxu0 %v4312
        %5112 = vmatprep.subr.mxu0 0.0
        %5113 = vmatpush1.msra.mxu0 %v4311
        %5114 = vmatprep.subr.mxu0 0.0
        %5115 = vmatpush1.msra.mxu0 %v4310
        %5116 = vmatprep.subr.mxu0 0.0
        %5117 = vmatpush1.msra.mxu0 %v4309
        %5118 = vmatprep.subr.mxu0 0.0
        %5119 = vmatpush1.msra.mxu0 %v4308
        %5120 = vmatprep.subr.mxu0 0.0
        %5121 = vmatpush1.msra.mxu0 %v4307
        %5122 = vmatprep.subr.mxu0 0.0
        %5123 = vmatpush1.msra.mxu0 %v4306
        %5124 = vmatprep.subr.mxu0 0.0
        %5125 = vmatpush2.msra.mxu0 0.0
        %5126 = vmatprep.subr.mxu0 0.0
        %5127 = vmatpush2.msra.mxu0 0.0
        %5128 = vmatprep.subr.mxu0 0.0
        %5129 = vmatpush2.msra.mxu0 0.0
        %5130 = vmatprep.subr.mxu0 0.0
        %5131 = vmatpush2.msra.mxu0 0.0
        %5132 = vmatprep.subr.mxu0 0.0
        %5133 = vmatpush2.msra.mxu0 0.0
        %5134 = vmatprep.subr.mxu0 0.0
        %5135 = vmatpush2.msra.mxu0 0.0
        %5136 = vmatprep.subr.mxu0 0.0
        %5137 = vmatpush2.msra.mxu0 0.0
        %5138 = vmatprep.subr.mxu0 0.0
        %5139 = vmatpush2.msra.mxu0 0.0
        %5140 = vmatprep.subr.mxu0 0.0
        %5141 = vmatpush2.msra.mxu0 0.0
        %5142 = vmatprep.subr.mxu0 0.0
        %5143 = vmatpush2.msra.mxu0 0.0
        %5144 = vmatprep.subr.mxu0 0.0
        %5145 = vmatpush2.msra.mxu0 0.0
        %5146 = vmatprep.subr.mxu0 0.0
        %5147 = vmatpush2.msra.mxu0 0.0
        %5148 = vmatprep.subr.mxu0 0.0
        %5149 = vmatpush2.msra.mxu0 0.0
        %5150 = vmatprep.subr.mxu0 0.0
        %5151 = vmatpush2.msra.mxu0 0.0
        %5152 = vmatprep.subr.mxu0 0.0
        %5153 = vmatpush2.msra.mxu0 0.0
        %5154 = vmatprep.subr.mxu0 0.0
        %5155 = vmatpush2.msra.mxu0 0.0
        %5156 = vmatprep.mubr.f32.mxu0 0.0
        %5157 = vmatmul.mubr.f32.gmra.mxu0 %v5090
        %v5158 = vpop.f32.mrf.mxu0
        %v5159 = vadd.f32 0.0, %v5158
        %v5160 = vpop.f32.mrf.mxu0
        %5161 = vdwg.mxu0
        %v5170 = vrot.slane %v4721, 7
        %v5171 = vsel %vm1340, %v5170, %v4648
        %v5172 = vrot.slane %v4794, 6
        %v5173 = vsel %vm1343, %v5172, %v5171
        %v5174 = vrot.slane %v4867, 5
        %v5175 = vsel %vm1346, %v5174, %v5173
        %v5176 = vrot.slane %v4940, 4
        %v5177 = vsel %vm1349, %v5176, %v5175
        %v5178 = vrot.slane %v5013, 3
        %v5179 = vsel %vm1352, %v5178, %v5177
        %v5180 = vrot.slane %v5086, 2
        %v5181 = vsel %vm1355, %v5180, %v5179
        %v5182 = vrot.slane %v5159, 1
        %v5183 = vsel %vm1358, %v5182, %v5181
        %5185 = vrot.lane.b32.xlu0 %v5183, 96
        %v5186 = vpop.permute.xlu0 %5185
        %v5189 = vsel %vm1364, %v4315, 0
        %v5192 = vsel %vm1364, %v4316, 0
        %v5195 = vsel %vm1364, %v4317, 0
        %v5198 = vsel %vm1364, %v4318, 0
        %5200 = vmatprep.subr.mxu0 0.0
        %5201 = vmatpush1.msra.mxu0 0.0
        %5202 = vmatprep.subr.mxu0 0.0
        %5203 = vmatpush1.msra.mxu0 0.0
        %5204 = vmatprep.subr.mxu0 0.0
        %5205 = vmatpush1.msra.mxu0 0.0
        %5206 = vmatprep.subr.mxu0 0.0
        %5207 = vmatpush1.msra.mxu0 0.0
        %5208 = vmatprep.subr.mxu0 0.0
        %5209 = vmatpush1.msra.mxu0 0.0
        %5210 = vmatprep.subr.mxu0 0.0
        %5211 = vmatpush1.msra.mxu0 0.0
        %5212 = vmatprep.subr.mxu0 0.0
        %5213 = vmatpush1.msra.mxu0 0.0
        %5214 = vmatprep.subr.mxu0 0.0
        %5215 = vmatpush1.msra.mxu0 0.0
        %5216 = vmatprep.subr.mxu0 0.0
        %5217 = vmatpush1.msra.mxu0 0.0
        %5218 = vmatprep.subr.mxu0 0.0
        %5219 = vmatpush1.msra.mxu0 0.0
        %5220 = vmatprep.subr.mxu0 0.0
        %5221 = vmatpush1.msra.mxu0 0.0
        %5222 = vmatprep.subr.mxu0 0.0
        %5223 = vmatpush1.msra.mxu0 %v1379
        %5224 = vmatprep.subr.mxu0 0.0
        %5225 = vmatpush1.msra.mxu0 %v4248
        %5226 = vmatprep.subr.mxu0 0.0
        %5227 = vmatpush1.msra.mxu0 %v4247
        %5228 = vmatprep.subr.mxu0 0.0
        %5229 = vmatpush1.msra.mxu0 %v4246
        %5230 = vmatprep.subr.mxu0 0.0
        %5231 = vmatpush1.msra.mxu0 %v4245
        %5232 = vmatprep.subr.mxu0 0.0
        %5233 = vmatpush2.msra.mxu0 0.0
        %5234 = vmatprep.subr.mxu0 0.0
        %5235 = vmatpush2.msra.mxu0 0.0
        %5236 = vmatprep.subr.mxu0 0.0
        %5237 = vmatpush2.msra.mxu0 0.0
        %5238 = vmatprep.subr.mxu0 0.0
        %5239 = vmatpush2.msra.mxu0 0.0
        %5240 = vmatprep.subr.mxu0 0.0
        %5241 = vmatpush2.msra.mxu0 0.0
        %5242 = vmatprep.subr.mxu0 0.0
        %5243 = vmatpush2.msra.mxu0 0.0
        %5244 = vmatprep.subr.mxu0 0.0
        %5245 = vmatpush2.msra.mxu0 0.0
        %5246 = vmatprep.subr.mxu0 0.0
        %5247 = vmatpush2.msra.mxu0 0.0
        %5248 = vmatprep.subr.mxu0 0.0
        %5249 = vmatpush2.msra.mxu0 0.0
        %5250 = vmatprep.subr.mxu0 0.0
        %5251 = vmatpush2.msra.mxu0 0.0
        %5252 = vmatprep.subr.mxu0 0.0
        %5253 = vmatpush2.msra.mxu0 0.0
        %5254 = vmatprep.subr.mxu0 0.0
        %5255 = vmatpush2.msra.mxu0 0.0
        %5256 = vmatprep.subr.mxu0 0.0
        %5257 = vmatpush2.msra.mxu0 0.0
        %5258 = vmatprep.subr.mxu0 0.0
        %5259 = vmatpush2.msra.mxu0 0.0
        %5260 = vmatprep.subr.mxu0 0.0
        %5261 = vmatpush2.msra.mxu0 0.0
        %5262 = vmatprep.subr.mxu0 0.0
        %5263 = vmatpush2.msra.mxu0 0.0
        %5264 = vmatprep.mubr.f32.mxu0 0.0
        %5265 = vmatmul.mubr.f32.gmra.mxu0 %v5189
        %v5266 = vpop.f32.mrf.mxu0
        %v5267 = vadd.f32 0.0, %v5266
        %v5268 = vpop.f32.mrf.mxu0
        %5269 = vmatprep.mubr.f32.mxu0 0.0
        %5270 = vmatmul.mubr.f32.gmra.mxu0 %v5192
        %v5271 = vpop.f32.mrf.mxu0
        %v5272 = vadd.f32 0.0, %v5271
        %v5273 = vpop.f32.mrf.mxu0
        %5274 = vmatprep.mubr.f32.mxu0 0.0
        %5275 = vmatmul.mubr.f32.gmra.mxu0 %v5195
        %v5276 = vpop.f32.mrf.mxu0
        %v5277 = vadd.f32 0.0, %v5276
        %v5278 = vpop.f32.mrf.mxu0
        %5279 = vmatprep.mubr.f32.mxu0 0.0
        %5280 = vmatmul.mubr.f32.gmra.mxu0 %v5198
        %v5281 = vpop.f32.mrf.mxu0
        %v5282 = vadd.f32 0.0, %v5281
        %v5283 = vpop.f32.mrf.mxu0
        %5284 = vdwg.mxu0
        %5285 = vxpose.xlu0.b32.start [1/16] %v5183, 128
        %5286 = vxpose.xlu0.b32.cont [2/16] %v5186, 128
        %5287 = vxpose.xlu0.b32.cont [3/16] 0.0, 128
        %5288 = vxpose.xlu0.b32.cont [4/16] 0.0, 128
        %5289 = vxpose.xlu0.b32.cont [5/16] 0.0, 128
        %5290 = vxpose.xlu0.b32.cont [6/16] 0.0, 128
        %5291 = vxpose.xlu0.b32.cont [7/16] 0.0, 128
        %5292 = vxpose.xlu0.b32.cont [8/16] 0.0, 128
        %5293 = vxpose.xlu0.b32.cont [9/16] 0.0, 128
        %5294 = vxpose.xlu0.b32.cont [10/16] 0.0, 128
        %5295 = vxpose.xlu0.b32.cont [11/16] 0.0, 128
        %5296 = vxpose.xlu0.b32.cont [12/16] 0.0, 128
        %5297 = vxpose.xlu0.b32.cont [13/16] 0.0, 128
        %5298 = vxpose.xlu0.b32.cont [14/16] 0.0, 128
        %5299 = vxpose.xlu0.b32.cont [15/16] 0.0, 128
        %5300 = vxpose.xlu0.b32.end [16/16] 0.0, 128
        %v5301 = vpop.trf.xlu0
        %v5302 = vpop.trf.xlu0
        %v5303 = vpop.trf.xlu0
        %v5304 = vpop.trf.xlu0
        %v5305 = vpop.trf.xlu0
        %v5306 = vpop.trf.xlu0
        %v5307 = vpop.trf.xlu0
        %v5308 = vpop.trf.xlu0
        %v5309 = vpop.trf.xlu0
        %v5310 = vpop.trf.xlu0
        %v5311 = vpop.trf.xlu0
        %v5312 = vpop.trf.xlu0
        %v5313 = vpop.trf.xlu0
        %v5314 = vpop.trf.xlu0
        %v5315 = vpop.trf.xlu0
        %v5316 = vpop.trf.xlu0
        %v5318 = vsel %vm479, %v5301, 0
        %v5321 = vsel %vm479, %v5302, 0
        %v5324 = vsel %vm479, %v5303, 0
        %v5327 = vsel %vm479, %v5304, 0
        %5329 = vmatprep.subr.mxu0 0.0
        %5330 = vmatpush1.msra.mxu0 0.0
        %5331 = vmatprep.subr.mxu0 0.0
        %5332 = vmatpush1.msra.mxu0 0.0
        %5333 = vmatprep.subr.mxu0 0.0
        %5334 = vmatpush1.msra.mxu0 0.0
        %5335 = vmatprep.subr.mxu0 0.0
        %5336 = vmatpush1.msra.mxu0 0.0
        %5337 = vmatprep.subr.mxu0 0.0
        %5338 = vmatpush1.msra.mxu0 0.0
        %5339 = vmatprep.subr.mxu0 0.0
        %5340 = vmatpush1.msra.mxu0 0.0
        %5341 = vmatprep.subr.mxu0 0.0
        %5342 = vmatpush1.msra.mxu0 0.0
        %5343 = vmatprep.subr.mxu0 0.0
        %5344 = vmatpush1.msra.mxu0 0.0
        %5345 = vmatprep.subr.mxu0 0.0
        %5346 = vmatpush1.msra.mxu0 0.0
        %5347 = vmatprep.subr.mxu0 0.0
        %5348 = vmatpush1.msra.mxu0 0.0
        %5349 = vmatprep.subr.mxu0 0.0
        %5350 = vmatpush1.msra.mxu0 0.0
        %5351 = vmatprep.subr.mxu0 0.0
        %5352 = vmatpush1.msra.mxu0 0.0
        %5353 = vmatprep.subr.mxu0 0.0
        %5354 = vmatpush1.msra.mxu0 0.0
        %5355 = vmatprep.subr.mxu0 0.0
        %5356 = vmatpush1.msra.mxu0 0.0
        %5357 = vmatprep.subr.mxu0 0.0
        %5358 = vmatpush1.msra.mxu0 %v303
        %5359 = vmatprep.subr.mxu0 0.0
        %5360 = vmatpush1.msra.mxu0 %v302
        %5361 = vmatprep.subr.mxu0 0.0
        %5362 = vmatpush2.msra.mxu0 0.0
        %5363 = vmatprep.subr.mxu0 0.0
        %5364 = vmatpush2.msra.mxu0 0.0
        %5365 = vmatprep.subr.mxu0 0.0
        %5366 = vmatpush2.msra.mxu0 0.0
        %5367 = vmatprep.subr.mxu0 0.0
        %5368 = vmatpush2.msra.mxu0 0.0
        %5369 = vmatprep.subr.mxu0 0.0
        %5370 = vmatpush2.msra.mxu0 0.0
        %5371 = vmatprep.subr.mxu0 0.0
        %5372 = vmatpush2.msra.mxu0 0.0
        %5373 = vmatprep.subr.mxu0 0.0
        %5374 = vmatpush2.msra.mxu0 0.0
        %5375 = vmatprep.subr.mxu0 0.0
        %5376 = vmatpush2.msra.mxu0 0.0
        %5377 = vmatprep.subr.mxu0 0.0
        %5378 = vmatpush2.msra.mxu0 0.0
        %5379 = vmatprep.subr.mxu0 0.0
        %5380 = vmatpush2.msra.mxu0 0.0
        %5381 = vmatprep.subr.mxu0 0.0
        %5382 = vmatpush2.msra.mxu0 0.0
        %5383 = vmatprep.subr.mxu0 0.0
        %5384 = vmatpush2.msra.mxu0 0.0
        %5385 = vmatprep.subr.mxu0 0.0
        %5386 = vmatpush2.msra.mxu0 0.0
        %5387 = vmatprep.subr.mxu0 0.0
        %5388 = vmatpush2.msra.mxu0 0.0
        %5389 = vmatprep.subr.mxu0 0.0
        %5390 = vmatpush2.msra.mxu0 0.0
        %5391 = vmatprep.subr.mxu0 0.0
        %5392 = vmatpush2.msra.mxu0 0.0
        %5393 = vmatprep.mubr.f32.mxu0 0.0
        %5394 = vmatmul.mubr.f32.gmra.mxu0 %v5318
        %v5395 = vpop.f32.mrf.mxu0
        %v5396 = vadd.f32 %v5267, %v5395
        %v5397 = vpop.f32.mrf.mxu0
        %5398 = vmatprep.mubr.f32.mxu0 0.0
        %5399 = vmatmul.mubr.f32.gmra.mxu0 %v5321
        %v5400 = vpop.f32.mrf.mxu0
        %v5401 = vadd.f32 %v5272, %v5400
        %v5402 = vpop.f32.mrf.mxu0
        %5403 = vmatprep.mubr.f32.mxu0 0.0
        %5404 = vmatmul.mubr.f32.gmra.mxu0 %v5324
        %v5405 = vpop.f32.mrf.mxu0
        %v5406 = vadd.f32 %v5277, %v5405
        %v5407 = vpop.f32.mrf.mxu0
        %5408 = vmatprep.mubr.f32.mxu0 0.0
        %5409 = vmatmul.mubr.f32.gmra.mxu0 %v5327
        %v5410 = vpop.f32.mrf.mxu0
        %v5411 = vadd.f32 %v5282, %v5410
        %v5412 = vpop.f32.mrf.mxu0
        %5413 = vdwg.mxu0
        %v5414 = vld [vmem:[%s6] sm:$0xff]
        %v5415 = vld [vmem:[%s6 + $0x8] sm:$0xff]
        %v5416 = vld [vmem:[%s6 + $0x10] sm:$0xff]
        %v5417 = vld [vmem:[%s6 + $0x18] sm:$0xff]
        %v5418 = vld [vmem:[%s6 + $0x20] sm:$0xff]
        %v5419 = vld [vmem:[%s6 + $0x28] sm:$0xff]
        %v5420 = vld [vmem:[%s6 + $0x30] sm:$0xff]
        %v5421 = vld [vmem:[%s6 + $0x38] sm:$0xff]
        %v5422 = vld [vmem:[%s6 + $0x40] sm:$0xff]
        %v5423 = vld [vmem:[%s6 + $0x48] sm:$0xff]
        %v5424 = vld [vmem:[%s6 + $0x50] sm:$0xff]
        %v5425 = vld [vmem:[%s6 + $0x58] sm:$0xff]
        %v5426 = vld [vmem:[%s6 + $0x60] sm:$0xff]
        %v5427 = vld [vmem:[%s6 + $0x68] sm:$0xff]
        %v5428 = vld [vmem:[%s6 + $0x70] sm:$0xff]
        %v5429 = vld [vmem:[%s6 + $0x78] sm:$0xff]
        %v5431 = vsel %vm1364, %v5414, 0
        %v5434 = vsel %vm1364, %v5415, 0
        %v5437 = vsel %vm1364, %v5416, 0
        %v5440 = vsel %vm1364, %v5417, 0
        %v5443 = vsel %vm1364, %v5418, 0
        %v5446 = vsel %vm1364, %v5419, 0
        %v5449 = vsel %vm1364, %v5420, 0
        %v5452 = vsel %vm1364, %v5421, 0
        %v5455 = vsel %vm1364, %v5422, 0
        %v5458 = vsel %vm1364, %v5423, 0
        %v5461 = vsel %vm1364, %v5424, 0
        %v5464 = vsel %vm1364, %v5425, 0
        %v5467 = vsel %vm1364, %v5426, 0
        %v5470 = vsel %vm1364, %v5427, 0
        %v5473 = vsel %vm1364, %v5428, 0
        %v5476 = vsel %vm1364, %v5429, 0
        %5478 = vmatprep.subr.mxu0 0.0
        %5479 = vmatpush1.msra.mxu0 0.0
        %5480 = vmatprep.subr.mxu0 0.0
        %5481 = vmatpush1.msra.mxu0 0.0
        %5482 = vmatprep.subr.mxu0 0.0
        %5483 = vmatpush1.msra.mxu0 0.0
        %5484 = vmatprep.subr.mxu0 0.0
        %5485 = vmatpush1.msra.mxu0 0.0
        %5486 = vmatprep.subr.mxu0 0.0
        %5487 = vmatpush1.msra.mxu0 0.0
        %5488 = vmatprep.subr.mxu0 0.0
        %5489 = vmatpush1.msra.mxu0 0.0
        %5490 = vmatprep.subr.mxu0 0.0
        %5491 = vmatpush1.msra.mxu0 0.0
        %5492 = vmatprep.subr.mxu0 0.0
        %5493 = vmatpush1.msra.mxu0 0.0
        %5494 = vmatprep.subr.mxu0 0.0
        %5495 = vmatpush1.msra.mxu0 0.0
        %5496 = vmatprep.subr.mxu0 0.0
        %5497 = vmatpush1.msra.mxu0 0.0
        %5498 = vmatprep.subr.mxu0 0.0
        %5499 = vmatpush1.msra.mxu0 0.0
        %5500 = vmatprep.subr.mxu0 0.0
        %5501 = vmatpush1.msra.mxu0 %v1379
        %5502 = vmatprep.subr.mxu0 0.0
        %5503 = vmatpush1.msra.mxu0 %v5411
        %5504 = vmatprep.subr.mxu0 0.0
        %5505 = vmatpush1.msra.mxu0 %v5406
        %5506 = vmatprep.subr.mxu0 0.0
        %5507 = vmatpush1.msra.mxu0 %v5401
        %5508 = vmatprep.subr.mxu0 0.0
        %5509 = vmatpush1.msra.mxu0 %v5396
        %5510 = vmatprep.subr.mxu0 0.0
        %5511 = vmatpush2.msra.mxu0 0.0
        %5512 = vmatprep.subr.mxu0 0.0
        %5513 = vmatpush2.msra.mxu0 0.0
        %5514 = vmatprep.subr.mxu0 0.0
        %5515 = vmatpush2.msra.mxu0 0.0
        %5516 = vmatprep.subr.mxu0 0.0
        %5517 = vmatpush2.msra.mxu0 0.0
        %5518 = vmatprep.subr.mxu0 0.0
        %5519 = vmatpush2.msra.mxu0 0.0
        %5520 = vmatprep.subr.mxu0 0.0
        %5521 = vmatpush2.msra.mxu0 0.0
        %5522 = vmatprep.subr.mxu0 0.0
        %5523 = vmatpush2.msra.mxu0 0.0
        %5524 = vmatprep.subr.mxu0 0.0
        %5525 = vmatpush2.msra.mxu0 0.0
        %5526 = vmatprep.subr.mxu0 0.0
        %5527 = vmatpush2.msra.mxu0 0.0
        %5528 = vmatprep.subr.mxu0 0.0
        %5529 = vmatpush2.msra.mxu0 0.0
        %5530 = vmatprep.subr.mxu0 0.0
        %5531 = vmatpush2.msra.mxu0 0.0
        %5532 = vmatprep.subr.mxu0 0.0
        %5533 = vmatpush2.msra.mxu0 0.0
        %5534 = vmatprep.subr.mxu0 0.0
        %5535 = vmatpush2.msra.mxu0 0.0
        %5536 = vmatprep.subr.mxu0 0.0
        %5537 = vmatpush2.msra.mxu0 0.0
        %5538 = vmatprep.subr.mxu0 0.0
        %5539 = vmatpush2.msra.mxu0 0.0
        %5540 = vmatprep.subr.mxu0 0.0
        %5541 = vmatpush2.msra.mxu0 0.0
        %5542 = vmatprep.mubr.f32.mxu0 0.0
        %5543 = vmatmul.mubr.f32.gmra.mxu0 %v5431
        %v5544 = vpop.f32.mrf.mxu0
        %v5545 = vadd.f32 0.0, %v5544
        %v5546 = vpop.f32.mrf.mxu0
        %5547 = vmatprep.mubr.f32.mxu0 0.0
        %5548 = vmatmul.mubr.f32.gmra.mxu0 %v5434
        %v5549 = vpop.f32.mrf.mxu0
        %v5550 = vadd.f32 0.0, %v5549
        %v5551 = vpop.f32.mrf.mxu0
        %5552 = vmatprep.mubr.f32.mxu0 0.0
        %5553 = vmatmul.mubr.f32.gmra.mxu0 %v5437
        %v5554 = vpop.f32.mrf.mxu0
        %v5555 = vadd.f32 0.0, %v5554
        %v5556 = vpop.f32.mrf.mxu0
        %5557 = vmatprep.mubr.f32.mxu0 0.0
        %5558 = vmatmul.mubr.f32.gmra.mxu0 %v5440
        %v5559 = vpop.f32.mrf.mxu0
        %v5560 = vadd.f32 0.0, %v5559
        %v5561 = vpop.f32.mrf.mxu0
        %5562 = vmatprep.mubr.f32.mxu0 0.0
        %5563 = vmatmul.mubr.f32.gmra.mxu0 %v5443
        %v5564 = vpop.f32.mrf.mxu0
        %v5565 = vadd.f32 0.0, %v5564
        %v5566 = vpop.f32.mrf.mxu0
        %5567 = vmatprep.mubr.f32.mxu0 0.0
        %5568 = vmatmul.mubr.f32.gmra.mxu0 %v5446
        %v5569 = vpop.f32.mrf.mxu0
        %v5570 = vadd.f32 0.0, %v5569
        %v5571 = vpop.f32.mrf.mxu0
        %5572 = vmatprep.mubr.f32.mxu0 0.0
        %5573 = vmatmul.mubr.f32.gmra.mxu0 %v5449
        %v5574 = vpop.f32.mrf.mxu0
        %v5575 = vadd.f32 0.0, %v5574
        %v5576 = vpop.f32.mrf.mxu0
        %5577 = vmatprep.mubr.f32.mxu0 0.0
        %5578 = vmatmul.mubr.f32.gmra.mxu0 %v5452
        %v5579 = vpop.f32.mrf.mxu0
        %v5580 = vadd.f32 0.0, %v5579
        %v5581 = vpop.f32.mrf.mxu0
        %5582 = vmatprep.mubr.f32.mxu0 0.0
        %5583 = vmatmul.mubr.f32.gmra.mxu0 %v5455
        %v5584 = vpop.f32.mrf.mxu0
        %v5585 = vadd.f32 0.0, %v5584
        %v5586 = vpop.f32.mrf.mxu0
        %5587 = vmatprep.mubr.f32.mxu0 0.0
        %5588 = vmatmul.mubr.f32.gmra.mxu0 %v5458
        %v5589 = vpop.f32.mrf.mxu0
        %v5590 = vadd.f32 0.0, %v5589
        %v5591 = vpop.f32.mrf.mxu0
        %5592 = vmatprep.mubr.f32.mxu0 0.0
        %5593 = vmatmul.mubr.f32.gmra.mxu0 %v5461
        %v5594 = vpop.f32.mrf.mxu0
        %v5595 = vadd.f32 0.0, %v5594
        %v5596 = vpop.f32.mrf.mxu0
        %5597 = vmatprep.mubr.f32.mxu0 0.0
        %5598 = vmatmul.mubr.f32.gmra.mxu0 %v5464
        %v5599 = vpop.f32.mrf.mxu0
        %v5600 = vadd.f32 0.0, %v5599
        %v5601 = vpop.f32.mrf.mxu0
        %5602 = vmatprep.mubr.f32.mxu0 0.0
        %5603 = vmatmul.mubr.f32.gmra.mxu0 %v5467
        %v5604 = vpop.f32.mrf.mxu0
        %v5605 = vadd.f32 0.0, %v5604
        %v5606 = vpop.f32.mrf.mxu0
        %5607 = vmatprep.mubr.f32.mxu0 0.0
        %5608 = vmatmul.mubr.f32.gmra.mxu0 %v5470
        %v5609 = vpop.f32.mrf.mxu0
        %v5610 = vadd.f32 0.0, %v5609
        %v5611 = vpop.f32.mrf.mxu0
        %5612 = vmatprep.mubr.f32.mxu0 0.0
        %5613 = vmatmul.mubr.f32.gmra.mxu0 %v5473
        %v5614 = vpop.f32.mrf.mxu0
        %v5615 = vadd.f32 0.0, %v5614
        %v5616 = vpop.f32.mrf.mxu0
        %5617 = vmatprep.mubr.f32.mxu0 0.0
        %5618 = vmatmul.mubr.f32.gmra.mxu0 %v5476
        %v5619 = vpop.f32.mrf.mxu0
        %v5620 = vadd.f32 0.0, %v5619
        %v5621 = vpop.f32.mrf.mxu0
        %5622 = vdwg.mxu0
        %v5623 = vmul.f32 %v5545, 0.5
        %v5624 = vmul.f32 %v5550, 0.5
        %v5625 = vmul.f32 %v5555, 0.5
        %v5626 = vmul.f32 %v5560, 0.5
        %v5627 = vmul.f32 %v5565, 0.5
        %v5628 = vmul.f32 %v5570, 0.5
        %v5629 = vmul.f32 %v5575, 0.5
        %v5630 = vmul.f32 %v5580, 0.5
        %v5631 = vmul.f32 %v5585, 0.5
        %v5632 = vmul.f32 %v5590, 0.5
        %v5633 = vmul.f32 %v5595, 0.5
        %v5634 = vmul.f32 %v5600, 0.5
        %v5635 = vmul.f32 %v5605, 0.5
        %v5636 = vmul.f32 %v5610, 0.5
        %v5637 = vmul.f32 %v5615, 0.5
        %v5638 = vmul.f32 %v5620, 0.5
        %v5639 = vmul.f32 %v5545, 0.70710677
        %v5640 = vmul.f32 %v5550, 0.70710677
        %v5641 = vmul.f32 %v5555, 0.70710677
        %v5642 = vmul.f32 %v5560, 0.70710677
        %v5643 = vmul.f32 %v5565, 0.70710677
        %v5644 = vmul.f32 %v5570, 0.70710677
        %v5645 = vmul.f32 %v5575, 0.70710677
        %v5646 = vmul.f32 %v5580, 0.70710677
        %v5647 = vmul.f32 %v5585, 0.70710677
        %v5648 = vmul.f32 %v5590, 0.70710677
        %v5649 = vmul.f32 %v5595, 0.70710677
        %v5650 = vmul.f32 %v5600, 0.70710677
        %v5651 = vmul.f32 %v5605, 0.70710677
        %v5652 = vmul.f32 %v5610, 0.70710677
        %v5653 = vmul.f32 %v5615, 0.70710677
        %v5654 = vmul.f32 %v5620, 0.70710677
        %v5655 = vand.u32 2147483647, %v5639
        %v5656 = vand.u32 2147483647, %v5640
        %v5657 = vand.u32 2147483647, %v5641
        %v5658 = vand.u32 2147483647, %v5642
        %v5659 = vand.u32 2147483647, %v5643
        %v5660 = vand.u32 2147483647, %v5644
        %v5661 = vand.u32 2147483647, %v5645
        %v5662 = vand.u32 2147483647, %v5646
        %v5663 = vand.u32 2147483647, %v5647
        %v5664 = vand.u32 2147483647, %v5648
        %v5665 = vand.u32 2147483647, %v5649
        %v5666 = vand.u32 2147483647, %v5650
        %v5667 = vand.u32 2147483647, %v5651
        %v5668 = vand.u32 2147483647, %v5652
        %v5669 = vand.u32 2147483647, %v5653
        %v5670 = vand.u32 2147483647, %v5654
        %v5671 = vmul.f32 %v5655, 0.3275911
        %v5672 = vmul.f32 %v5656, 0.3275911
        %v5673 = vmul.f32 %v5657, 0.3275911
        %v5674 = vmul.f32 %v5658, 0.3275911
        %v5675 = vmul.f32 %v5659, 0.3275911
        %v5676 = vmul.f32 %v5660, 0.3275911
        %v5677 = vmul.f32 %v5661, 0.3275911
        %v5678 = vmul.f32 %v5662, 0.3275911
        %v5679 = vmul.f32 %v5663, 0.3275911
        %v5680 = vmul.f32 %v5664, 0.3275911
        %v5681 = vmul.f32 %v5665, 0.3275911
        %v5682 = vmul.f32 %v5666, 0.3275911
        %v5683 = vmul.f32 %v5667, 0.3275911
        %v5684 = vmul.f32 %v5668, 0.3275911
        %v5685 = vmul.f32 %v5669, 0.3275911
        %v5686 = vmul.f32 %v5670, 0.3275911
        %v5687 = vadd.f32 %v5671, 1.0
        %v5688 = vadd.f32 %v5672, 1.0
        %v5689 = vadd.f32 %v5673, 1.0
        %v5690 = vadd.f32 %v5674, 1.0
        %v5691 = vadd.f32 %v5675, 1.0
        %v5692 = vadd.f32 %v5676, 1.0
        %v5693 = vadd.f32 %v5677, 1.0
        %v5694 = vadd.f32 %v5678, 1.0
        %v5695 = vadd.f32 %v5679, 1.0
        %v5696 = vadd.f32 %v5680, 1.0
        %v5697 = vadd.f32 %v5681, 1.0
        %v5698 = vadd.f32 %v5682, 1.0
        %v5699 = vadd.f32 %v5683, 1.0
        %v5700 = vadd.f32 %v5684, 1.0
        %v5701 = vadd.f32 %v5685, 1.0
        %v5702 = vadd.f32 %v5686, 1.0
        %v5703 = vrcp.pop %v5687
        %v5704 = vmul.f32 1.0, %v5703
        %v5705 = vrcp.pop %v5688
        %v5706 = vmul.f32 1.0, %v5705
        %v5707 = vrcp.pop %v5689
        %v5708 = vmul.f32 1.0, %v5707
        %v5709 = vrcp.pop %v5690
        %v5710 = vmul.f32 1.0, %v5709
        %v5711 = vrcp.pop %v5691
        %v5712 = vmul.f32 1.0, %v5711
        %v5713 = vrcp.pop %v5692
        %v5714 = vmul.f32 1.0, %v5713
        %v5715 = vrcp.pop %v5693
        %v5716 = vmul.f32 1.0, %v5715
        %v5717 = vrcp.pop %v5694
        %v5718 = vmul.f32 1.0, %v5717
        %v5719 = vrcp.pop %v5695
        %v5720 = vmul.f32 1.0, %v5719
        %v5721 = vrcp.pop %v5696
        %v5722 = vmul.f32 1.0, %v5721
        %v5723 = vrcp.pop %v5697
        %v5724 = vmul.f32 1.0, %v5723
        %v5725 = vrcp.pop %v5698
        %v5726 = vmul.f32 1.0, %v5725
        %v5727 = vrcp.pop %v5699
        %v5728 = vmul.f32 1.0, %v5727
        %v5729 = vrcp.pop %v5700
        %v5730 = vmul.f32 1.0, %v5729
        %v5731 = vrcp.pop %v5701
        %v5732 = vmul.f32 1.0, %v5731
        %v5733 = vrcp.pop %v5702
        %v5734 = vmul.f32 1.0, %v5733
        %v5735 = vmul.f32 %v5704, 1.0614054
        %v5736 = vmul.f32 %v5706, 1.0614054
        %v5737 = vmul.f32 %v5708, 1.0614054
        %v5738 = vmul.f32 %v5710, 1.0614054
        %v5739 = vmul.f32 %v5712, 1.0614054
        %v5740 = vmul.f32 %v5714, 1.0614054
        %v5741 = vmul.f32 %v5716, 1.0614054
        %v5742 = vmul.f32 %v5718, 1.0614054
        %v5743 = vmul.f32 %v5720, 1.0614054
        %v5744 = vmul.f32 %v5722, 1.0614054
        %v5745 = vmul.f32 %v5724, 1.0614054
        %v5746 = vmul.f32 %v5726, 1.0614054
        %v5747 = vmul.f32 %v5728, 1.0614054
        %v5748 = vmul.f32 %v5730, 1.0614054
        %v5749 = vmul.f32 %v5732, 1.0614054
        %v5750 = vmul.f32 %v5734, 1.0614054
        %v5751 = vadd.f32 %v5735, -1.4531521
        %v5752 = vadd.f32 %v5736, -1.4531521
        %v5753 = vadd.f32 %v5737, -1.4531521
        %v5754 = vadd.f32 %v5738, -1.4531521
        %v5755 = vadd.f32 %v5739, -1.4531521
        %v5756 = vadd.f32 %v5740, -1.4531521
        %v5757 = vadd.f32 %v5741, -1.4531521
        %v5758 = vadd.f32 %v5742, -1.4531521
        %v5759 = vadd.f32 %v5743, -1.4531521
        %v5760 = vadd.f32 %v5744, -1.4531521
        %v5761 = vadd.f32 %v5745, -1.4531521
        %v5762 = vadd.f32 %v5746, -1.4531521
        %v5763 = vadd.f32 %v5747, -1.4531521
        %v5764 = vadd.f32 %v5748, -1.4531521
        %v5765 = vadd.f32 %v5749, -1.4531521
        %v5766 = vadd.f32 %v5750, -1.4531521
        %v5767 = vmul.f32 %v5751, %v5704
        %v5768 = vmul.f32 %v5752, %v5706
        %v5769 = vmul.f32 %v5753, %v5708
        %v5770 = vmul.f32 %v5754, %v5710
        %v5771 = vmul.f32 %v5755, %v5712
        %v5772 = vmul.f32 %v5756, %v5714
        %v5773 = vmul.f32 %v5757, %v5716
        %v5774 = vmul.f32 %v5758, %v5718
        %v5775 = vmul.f32 %v5759, %v5720
        %v5776 = vmul.f32 %v5760, %v5722
        %v5777 = vmul.f32 %v5761, %v5724
        %v5778 = vmul.f32 %v5762, %v5726
        %v5779 = vmul.f32 %v5763, %v5728
        %v5780 = vmul.f32 %v5764, %v5730
        %v5781 = vmul.f32 %v5765, %v5732
        %v5782 = vmul.f32 %v5766, %v5734
        %v5783 = vadd.f32 %v5767, 1.4214138
        %v5784 = vadd.f32 %v5768, 1.4214138
        %v5785 = vadd.f32 %v5769, 1.4214138
        %v5786 = vadd.f32 %v5770, 1.4214138
        %v5787 = vadd.f32 %v5771, 1.4214138
        %v5788 = vadd.f32 %v5772, 1.4214138
        %v5789 = vadd.f32 %v5773, 1.4214138
        %v5790 = vadd.f32 %v5774, 1.4214138
        %v5791 = vadd.f32 %v5775, 1.4214138
        %v5792 = vadd.f32 %v5776, 1.4214138
        %v5793 = vadd.f32 %v5777, 1.4214138
        %v5794 = vadd.f32 %v5778, 1.4214138
        %v5795 = vadd.f32 %v5779, 1.4214138
        %v5796 = vadd.f32 %v5780, 1.4214138
        %v5797 = vadd.f32 %v5781, 1.4214138
        %v5798 = vadd.f32 %v5782, 1.4214138
        %v5799 = vmul.f32 %v5783, %v5704
        %v5800 = vmul.f32 %v5784, %v5706
        %v5801 = vmul.f32 %v5785, %v5708
        %v5802 = vmul.f32 %v5786, %v5710
        %v5803 = vmul.f32 %v5787, %v5712
        %v5804 = vmul.f32 %v5788, %v5714
        %v5805 = vmul.f32 %v5789, %v5716
        %v5806 = vmul.f32 %v5790, %v5718
        %v5807 = vmul.f32 %v5791, %v5720
        %v5808 = vmul.f32 %v5792, %v5722
        %v5809 = vmul.f32 %v5793, %v5724
        %v5810 = vmul.f32 %v5794, %v5726
        %v5811 = vmul.f32 %v5795, %v5728
        %v5812 = vmul.f32 %v5796, %v5730
        %v5813 = vmul.f32 %v5797, %v5732
        %v5814 = vmul.f32 %v5798, %v5734
        %v5815 = vadd.f32 %v5799, -0.28449672
        %v5816 = vadd.f32 %v5800, -0.28449672
        %v5817 = vadd.f32 %v5801, -0.28449672
        %v5818 = vadd.f32 %v5802, -0.28449672
        %v5819 = vadd.f32 %v5803, -0.28449672
        %v5820 = vadd.f32 %v5804, -0.28449672
        %v5821 = vadd.f32 %v5805, -0.28449672
        %v5822 = vadd.f32 %v5806, -0.28449672
        %v5823 = vadd.f32 %v5807, -0.28449672
        %v5824 = vadd.f32 %v5808, -0.28449672
        %v5825 = vadd.f32 %v5809, -0.28449672
        %v5826 = vadd.f32 %v5810, -0.28449672
        %v5827 = vadd.f32 %v5811, -0.28449672
        %v5828 = vadd.f32 %v5812, -0.28449672
        %v5829 = vadd.f32 %v5813, -0.28449672
        %v5830 = vadd.f32 %v5814, -0.28449672
        %v5831 = vmul.f32 %v5815, %v5704
        %v5832 = vmul.f32 %v5816, %v5706
        %v5833 = vmul.f32 %v5817, %v5708
        %v5834 = vmul.f32 %v5818, %v5710
        %v5835 = vmul.f32 %v5819, %v5712
        %v5836 = vmul.f32 %v5820, %v5714
        %v5837 = vmul.f32 %v5821, %v5716
        %v5838 = vmul.f32 %v5822, %v5718
        %v5839 = vmul.f32 %v5823, %v5720
        %v5840 = vmul.f32 %v5824, %v5722
        %v5841 = vmul.f32 %v5825, %v5724
        %v5842 = vmul.f32 %v5826, %v5726
        %v5843 = vmul.f32 %v5827, %v5728
        %v5844 = vmul.f32 %v5828, %v5730
        %v5845 = vmul.f32 %v5829, %v5732
        %v5846 = vmul.f32 %v5830, %v5734
        %v5847 = vadd.f32 %v5831, 0.2548296
        %v5848 = vadd.f32 %v5832, 0.2548296
        %v5849 = vadd.f32 %v5833, 0.2548296
        %v5850 = vadd.f32 %v5834, 0.2548296
        %v5851 = vadd.f32 %v5835, 0.2548296
        %v5852 = vadd.f32 %v5836, 0.2548296
        %v5853 = vadd.f32 %v5837, 0.2548296
        %v5854 = vadd.f32 %v5838, 0.2548296
        %v5855 = vadd.f32 %v5839, 0.2548296
        %v5856 = vadd.f32 %v5840, 0.2548296
        %v5857 = vadd.f32 %v5841, 0.2548296
        %v5858 = vadd.f32 %v5842, 0.2548296
        %v5859 = vadd.f32 %v5843, 0.2548296
        %v5860 = vadd.f32 %v5844, 0.2548296
        %v5861 = vadd.f32 %v5845, 0.2548296
        %v5862 = vadd.f32 %v5846, 0.2548296
        %v5863 = vmul.f32 %v5847, %v5704
        %v5864 = vmul.f32 %v5848, %v5706
        %v5865 = vmul.f32 %v5849, %v5708
        %v5866 = vmul.f32 %v5850, %v5710
        %v5867 = vmul.f32 %v5851, %v5712
        %v5868 = vmul.f32 %v5852, %v5714
        %v5869 = vmul.f32 %v5853, %v5716
        %v5870 = vmul.f32 %v5854, %v5718
        %v5871 = vmul.f32 %v5855, %v5720
        %v5872 = vmul.f32 %v5856, %v5722
        %v5873 = vmul.f32 %v5857, %v5724
        %v5874 = vmul.f32 %v5858, %v5726
        %v5875 = vmul.f32 %v5859, %v5728
        %v5876 = vmul.f32 %v5860, %v5730
        %v5877 = vmul.f32 %v5861, %v5732
        %v5878 = vmul.f32 %v5862, %v5734
        %v5879 = vsub.f32 0.0, %v5655
        %v5880 = vsub.f32 0.0, %v5656
        %v5881 = vsub.f32 0.0, %v5657
        %v5882 = vsub.f32 0.0, %v5658
        %v5883 = vsub.f32 0.0, %v5659
        %v5884 = vsub.f32 0.0, %v5660
        %v5885 = vsub.f32 0.0, %v5661
        %v5886 = vsub.f32 0.0, %v5662
        %v5887 = vsub.f32 0.0, %v5663
        %v5888 = vsub.f32 0.0, %v5664
        %v5889 = vsub.f32 0.0, %v5665
        %v5890 = vsub.f32 0.0, %v5666
        %v5891 = vsub.f32 0.0, %v5667
        %v5892 = vsub.f32 0.0, %v5668
        %v5893 = vsub.f32 0.0, %v5669
        %v5894 = vsub.f32 0.0, %v5670
        %v5895 = vmul.f32 %v5879, %v5655
        %v5896 = vmul.f32 %v5880, %v5656
        %v5897 = vmul.f32 %v5881, %v5657
        %v5898 = vmul.f32 %v5882, %v5658
        %v5899 = vmul.f32 %v5883, %v5659
        %v5900 = vmul.f32 %v5884, %v5660
        %v5901 = vmul.f32 %v5885, %v5661
        %v5902 = vmul.f32 %v5886, %v5662
        %v5903 = vmul.f32 %v5887, %v5663
        %v5904 = vmul.f32 %v5888, %v5664
        %v5905 = vmul.f32 %v5889, %v5665
        %v5906 = vmul.f32 %v5890, %v5666
        %v5907 = vmul.f32 %v5891, %v5667
        %v5908 = vmul.f32 %v5892, %v5668
        %v5909 = vmul.f32 %v5893, %v5669
        %v5910 = vmul.f32 %v5894, %v5670
        %v5911 = vmul.f32 %v5895, 1.442695
        %v5912 = vpow.pop %v5911
        %v5913 = vmul.f32 %v5896, 1.442695
        %v5914 = vpow.pop %v5913
        %v5915 = vmul.f32 %v5897, 1.442695
        %v5916 = vpow.pop %v5915
        %v5917 = vmul.f32 %v5898, 1.442695
        %v5918 = vpow.pop %v5917
        %v5919 = vmul.f32 %v5899, 1.442695
        %v5920 = vpow.pop %v5919
        %v5921 = vmul.f32 %v5900, 1.442695
        %v5922 = vpow.pop %v5921
        %v5923 = vmul.f32 %v5901, 1.442695
        %v5924 = vpow.pop %v5923
        %v5925 = vmul.f32 %v5902, 1.442695
        %v5926 = vpow.pop %v5925
        %v5927 = vmul.f32 %v5903, 1.442695
        %v5928 = vpow.pop %v5927
        %v5929 = vmul.f32 %v5904, 1.442695
        %v5930 = vpow.pop %v5929
        %v5931 = vmul.f32 %v5905, 1.442695
        %v5932 = vpow.pop %v5931
        %v5933 = vmul.f32 %v5906, 1.442695
        %v5934 = vpow.pop %v5933
        %v5935 = vmul.f32 %v5907, 1.442695
        %v5936 = vpow.pop %v5935
        %v5937 = vmul.f32 %v5908, 1.442695
        %v5938 = vpow.pop %v5937
        %v5939 = vmul.f32 %v5909, 1.442695
        %v5940 = vpow.pop %v5939
        %v5941 = vmul.f32 %v5910, 1.442695
        %v5942 = vpow.pop %v5941
        %v5943 = vmul.f32 %v5863, %v5912
        %v5944 = vmul.f32 %v5864, %v5914
        %v5945 = vmul.f32 %v5865, %v5916
        %v5946 = vmul.f32 %v5866, %v5918
        %v5947 = vmul.f32 %v5867, %v5920
        %v5948 = vmul.f32 %v5868, %v5922
        %v5949 = vmul.f32 %v5869, %v5924
        %v5950 = vmul.f32 %v5870, %v5926
        %v5951 = vmul.f32 %v5871, %v5928
        %v5952 = vmul.f32 %v5872, %v5930
        %v5953 = vmul.f32 %v5873, %v5932
        %v5954 = vmul.f32 %v5874, %v5934
        %v5955 = vmul.f32 %v5875, %v5936
        %v5956 = vmul.f32 %v5876, %v5938
        %v5957 = vmul.f32 %v5877, %v5940
        %v5958 = vmul.f32 %v5878, %v5942
        %v5959 = vsub.f32 1.0, %v5943
        %v5960 = vsub.f32 1.0, %v5944
        %v5961 = vsub.f32 1.0, %v5945
        %v5962 = vsub.f32 1.0, %v5946
        %v5963 = vsub.f32 1.0, %v5947
        %v5964 = vsub.f32 1.0, %v5948
        %v5965 = vsub.f32 1.0, %v5949
        %v5966 = vsub.f32 1.0, %v5950
        %v5967 = vsub.f32 1.0, %v5951
        %v5968 = vsub.f32 1.0, %v5952
        %v5969 = vsub.f32 1.0, %v5953
        %v5970 = vsub.f32 1.0, %v5954
        %v5971 = vsub.f32 1.0, %v5955
        %v5972 = vsub.f32 1.0, %v5956
        %v5973 = vsub.f32 1.0, %v5957
        %v5974 = vsub.f32 1.0, %v5958
        %vm5975 = vcmp.ge.f32.partialorder %v5639, 0.0
        %vm5976 = vcmp.ge.f32.partialorder %v5640, 0.0
        %vm5977 = vcmp.ge.f32.partialorder %v5641, 0.0
        %vm5978 = vcmp.ge.f32.partialorder %v5642, 0.0
        %vm5979 = vcmp.ge.f32.partialorder %v5643, 0.0
        %vm5980 = vcmp.ge.f32.partialorder %v5644, 0.0
        %vm5981 = vcmp.ge.f32.partialorder %v5645, 0.0
        %vm5982 = vcmp.ge.f32.partialorder %v5646, 0.0
        %vm5983 = vcmp.ge.f32.partialorder %v5647, 0.0
        %vm5984 = vcmp.ge.f32.partialorder %v5648, 0.0
        %vm5985 = vcmp.ge.f32.partialorder %v5649, 0.0
        %vm5986 = vcmp.ge.f32.partialorder %v5650, 0.0
        %vm5987 = vcmp.ge.f32.partialorder %v5651, 0.0
        %vm5988 = vcmp.ge.f32.partialorder %v5652, 0.0
        %vm5989 = vcmp.ge.f32.partialorder %v5653, 0.0
        %vm5990 = vcmp.ge.f32.partialorder %v5654, 0.0
        %v5991 = vsub.f32 0.0, %v5959
        %v5992 = vsub.f32 0.0, %v5960
        %v5993 = vsub.f32 0.0, %v5961
        %v5994 = vsub.f32 0.0, %v5962
        %v5995 = vsub.f32 0.0, %v5963
        %v5996 = vsub.f32 0.0, %v5964
        %v5997 = vsub.f32 0.0, %v5965
        %v5998 = vsub.f32 0.0, %v5966
        %v5999 = vsub.f32 0.0, %v5967
        %v6000 = vsub.f32 0.0, %v5968
        %v6001 = vsub.f32 0.0, %v5969
        %v6002 = vsub.f32 0.0, %v5970
        %v6003 = vsub.f32 0.0, %v5971
        %v6004 = vsub.f32 0.0, %v5972
        %v6005 = vsub.f32 0.0, %v5973
        %v6006 = vsub.f32 0.0, %v5974
        %v6007 = vsel %vm5975, %v5959, %v5991
        %v6008 = vsel %vm5976, %v5960, %v5992
        %v6009 = vsel %vm5977, %v5961, %v5993
        %v6010 = vsel %vm5978, %v5962, %v5994
        %v6011 = vsel %vm5979, %v5963, %v5995
        %v6012 = vsel %vm5980, %v5964, %v5996
        %v6013 = vsel %vm5981, %v5965, %v5997
        %v6014 = vsel %vm5982, %v5966, %v5998
        %v6015 = vsel %vm5983, %v5967, %v5999
        %v6016 = vsel %vm5984, %v5968, %v6000
        %v6017 = vsel %vm5985, %v5969, %v6001
        %v6018 = vsel %vm5986, %v5970, %v6002
        %v6019 = vsel %vm5987, %v5971, %v6003
        %v6020 = vsel %vm5988, %v5972, %v6004
        %v6021 = vsel %vm5989, %v5973, %v6005
        %v6022 = vsel %vm5990, %v5974, %v6006
        %v6023 = vadd.f32 %v6007, 1.0
        %v6024 = vadd.f32 %v6008, 1.0
        %v6025 = vadd.f32 %v6009, 1.0
        %v6026 = vadd.f32 %v6010, 1.0
        %v6027 = vadd.f32 %v6011, 1.0
        %v6028 = vadd.f32 %v6012, 1.0
        %v6029 = vadd.f32 %v6013, 1.0
        %v6030 = vadd.f32 %v6014, 1.0
        %v6031 = vadd.f32 %v6015, 1.0
        %v6032 = vadd.f32 %v6016, 1.0
        %v6033 = vadd.f32 %v6017, 1.0
        %v6034 = vadd.f32 %v6018, 1.0
        %v6035 = vadd.f32 %v6019, 1.0
        %v6036 = vadd.f32 %v6020, 1.0
        %v6037 = vadd.f32 %v6021, 1.0
        %v6038 = vadd.f32 %v6022, 1.0
        %v6039 = vmul.f32 %v5623, %v6023
        %v6040 = vmul.f32 %v5624, %v6024
        %v6041 = vmul.f32 %v5625, %v6025
        %v6042 = vmul.f32 %v5626, %v6026
        %v6043 = vmul.f32 %v5627, %v6027
        %v6044 = vmul.f32 %v5628, %v6028
        %v6045 = vmul.f32 %v5629, %v6029
        %v6046 = vmul.f32 %v5630, %v6030
        %v6047 = vmul.f32 %v5631, %v6031
        %v6048 = vmul.f32 %v5632, %v6032
        %v6049 = vmul.f32 %v5633, %v6033
        %v6050 = vmul.f32 %v5634, %v6034
        %v6051 = vmul.f32 %v5635, %v6035
        %v6052 = vmul.f32 %v5636, %v6036
        %v6053 = vmul.f32 %v5637, %v6037
        %v6054 = vmul.f32 %v5638, %v6038
        %v6055 = vld [vmem:[%s7] sm:$0x3]
        %v6057 = vlaneseq
        %v6058 = vshrl.u32 %v6057, 7
        %v6059 = vsub.s32 0, %v6058
        %v6060 = vrot.slane %v6055, %v6059
        %v6061 = vlaneseq
        %v6062 = vshrl.u32 %v6061, 7
        %v6063 = vsub.s32 1, %v6062
        %v6064 = vrot.slane %v6055, %v6063
        %vm6066 = vcmask 7168
        %v6067 = vsel %vm6066, %v6064, 0
        %6069 = vmatprep.subr.mxu0 0.0
        %6070 = vmatpush1.msra.mxu0 %v6054
        %6071 = vmatprep.subr.mxu0 0.0
        %6072 = vmatpush1.msra.mxu0 %v6053
        %6073 = vmatprep.subr.mxu0 0.0
        %6074 = vmatpush1.msra.mxu0 %v6052
        %6075 = vmatprep.subr.mxu0 0.0
        %6076 = vmatpush1.msra.mxu0 %v6051
        %6077 = vmatprep.subr.mxu0 0.0
        %6078 = vmatpush1.msra.mxu0 %v6050
        %6079 = vmatprep.subr.mxu0 0.0
        %6080 = vmatpush1.msra.mxu0 %v6049
        %6081 = vmatprep.subr.mxu0 0.0
        %6082 = vmatpush1.msra.mxu0 %v6048
        %6083 = vmatprep.subr.mxu0 0.0
        %6084 = vmatpush1.msra.mxu0 %v6047
        %6085 = vmatprep.subr.mxu0 0.0
        %6086 = vmatpush1.msra.mxu0 %v6046
        %6087 = vmatprep.subr.mxu0 0.0
        %6088 = vmatpush1.msra.mxu0 %v6045
        %6089 = vmatprep.subr.mxu0 0.0
        %6090 = vmatpush1.msra.mxu0 %v6044
        %6091 = vmatprep.subr.mxu0 0.0
        %6092 = vmatpush1.msra.mxu0 %v6043
        %6093 = vmatprep.subr.mxu0 0.0
        %6094 = vmatpush1.msra.mxu0 %v6042
        %6095 = vmatprep.subr.mxu0 0.0
        %6096 = vmatpush1.msra.mxu0 %v6041
        %6097 = vmatprep.subr.mxu0 0.0
        %6098 = vmatpush1.msra.mxu0 %v6040
        %6099 = vmatprep.subr.mxu0 0.0
        %6100 = vmatpush1.msra.mxu0 %v6039
        %6101 = vmatprep.subr.mxu0 0.0
        %6102 = vmatpush2.msra.mxu0 0.0
        %6103 = vmatprep.subr.mxu0 0.0
        %6104 = vmatpush2.msra.mxu0 0.0
        %6105 = vmatprep.subr.mxu0 0.0
        %6106 = vmatpush2.msra.mxu0 0.0
        %6107 = vmatprep.subr.mxu0 0.0
        %6108 = vmatpush2.msra.mxu0 0.0
        %6109 = vmatprep.subr.mxu0 0.0
        %6110 = vmatpush2.msra.mxu0 0.0
        %6111 = vmatprep.subr.mxu0 0.0
        %6112 = vmatpush2.msra.mxu0 0.0
        %6113 = vmatprep.subr.mxu0 0.0
        %6114 = vmatpush2.msra.mxu0 0.0
        %6115 = vmatprep.subr.mxu0 0.0
        %6116 = vmatpush2.msra.mxu0 0.0
        %6117 = vmatprep.subr.mxu0 0.0
        %6118 = vmatpush2.msra.mxu0 0.0
        %6119 = vmatprep.subr.mxu0 0.0
        %6120 = vmatpush2.msra.mxu0 0.0
        %6121 = vmatprep.subr.mxu0 0.0
        %6122 = vmatpush2.msra.mxu0 0.0
        %6123 = vmatprep.subr.mxu0 0.0
        %6124 = vmatpush2.msra.mxu0 0.0
        %6125 = vmatprep.subr.mxu0 0.0
        %6126 = vmatpush2.msra.mxu0 0.0
        %6127 = vmatprep.subr.mxu0 0.0
        %6128 = vmatpush2.msra.mxu0 0.0
        %6129 = vmatprep.subr.mxu0 0.0
        %6130 = vmatpush2.msra.mxu0 0.0
        %6131 = vmatprep.subr.mxu0 0.0
        %6132 = vmatpush2.msra.mxu0 %v1379
        %6133 = vmatprep.mubr.f32.mxu0 %v6067
        %6134 = vmatmul.mubr.f32.gmra.mxu0 %v6060
        %v6135 = vpop.f32.mrf.mxu0
        %v6136 = vadd.f32 0.0, %v6135
        %v6137 = vpop.f32.mrf.mxu0
        %6138 = vdwg.mxu0
        %vm6139 = vcmask 122880
        %6140 = vst.msk [vmem:[%s295] sm:$0x1] %vm6139, %v6136
        %s6141 = sand.u32 %s203, 1
        %s6142 = scalar_lea.sflag [#allocation3], %s6141
        %s6143 = sand.u32 %s203, 1
        %s6144 = scalar_lea.vmem [#allocation2], %s6143
        // Predicated region
        $region53: #{fno1d_forward.1} parent=51 // pred_check
          %p6145 = pneg %p213
        $region54: #{fno1d_forward.1} parent=51 // pred_check_branch
          %6147 = sbr.rel (%p6145) target = $region56
        $region55: #{fno1d_forward.1} parent=51 // pred_region
          %s6149 = ssub.s32 16, 16
          %6150 = vsyncadd %s6142, %s6149
          %s6151 = smul.addr %s22, 16
          %s6152 = scalar_lea.hbm %s8, %s6151
          %s6154 = sshll.u32 %s6144, 4
          %s6155 = int_to_ptr.vmem [resolvable:$true] %s6154
          %6157 = dma.vmem_to_hbm [thread:$0]  %s6155, 16, %s6152, %s6142
        $region56: #{fno1d_forward.1} parent=51 // pred_fallthru
          _
      $region52: #{fno1d_forward.1} parent=5 // pred_fallthru
        _
      %p6158 = scmp.le.s32.totalorder 2, %s17
      // Predicated region
      $region57: #{fno1d_forward.1} parent=5 // pred_check
        %p6159 = pneg %p6158
      $region58: #{fno1d_forward.1} parent=5 // pred_check_branch
        %6161 = sbr.rel (%p6159) target = $region60
      $region59: #{fno1d_forward.1} parent=5 // pred_region
        %s6162 = ssub.s32 %s17, 2
        // Predicated region
        $region61: #{fno1d_forward.1} parent=59 // pred_check
          %p6163 = pneg %p219
        $region62: #{fno1d_forward.1} parent=59 // pred_check_branch
          %6165 = sbr.rel (%p6163) target = $region64
        $region63: #{fno1d_forward.1} parent=59 // pred_region
          %s6166 = sand.u32 %s204, 1
          %s6167 = scalar_lea.sflag [#allocation3], %s6166
          %s6168 = sand.u32 %s204, 1
          %s6169 = scalar_lea.vmem [#allocation2], %s6168
          %6170 = dma.done %s6167, 16
        $region64: #{fno1d_forward.1} parent=59 // pred_fallthru
          _
      $region60: #{fno1d_forward.1} parent=5 // pred_fallthru
        _
    $region6: #{fno1d_forward.1} parent=1 // loop_footer
      %s21 = sadd.s32 1, %s17
    $region7: #{fno1d_forward.1} parent=1 // loop_footer_branch
      %16 = sbr.rel target = $region3
    $region8: #{fno1d_forward.1} parent=1 // loop_exit
      _
    %6171 = vsyncpa [#allocation3], 1
    %s6172 = scalar_lea.sflag [#allocation3], 1
    %6173 = vsyncpa %s6172, 1

</llo_original>
